<compile_context>
chip_gen: v7x
topology: tpu7x:2x2x1
jax: 0.10.0
libtpu: 0.0.40
codegen_flags: <defaults>
</compile_context>

<pallas_src>
import math

import jax
import jax.numpy as jnp
import numpy as np
from jax.experimental import pallas as pl
from jax.experimental.pallas import tpu as pltpu

LANES = 128


# --------------------------- host-side parameter folding ---------------------------

def _conv_col_matrix(w, dh, W_in, W_out, stride, pad, in_rows, out_cols):
    """Fold the KW taps + channel mixing of kernel row `dh` into one matrix:
    columns (w_in*Cin + cin) of the activation -> columns (w_out*Cout + cout)."""
    O, I, KH, KW = w.shape
    M = np.zeros((in_rows, out_cols), np.float32)
    for dw in range(KW):
        wt = np.asarray(w[:, :, dh, dw], np.float32).T          # (Cin, Cout)
        for wo in range(W_out):
            wi = stride * wo + dw - pad
            if 0 <= wi < W_in:
                M[wi * I:(wi + 1) * I, wo * O:(wo + 1) * O] += wt
    return M


def _bias_row(b, W_out, out_cols):
    O = b.shape[0]
    row = np.zeros((1, out_cols), np.float32)
    for wo in range(W_out):
        row[0, wo * O:(wo + 1) * O] = b
    return row


def _plan_conv(w, b, H_in, W_in, s_in, stride, pad, in_lanes):
    """Plan a conv layer in the row-lattice scheme.

    Returns (taps, M_cat, bias_row, H_out, W_out, s_out) where each tap is a
    static sublane shift (+ optional image-boundary mask) and M_cat stacks the
    per-kernel-row folded matrices so the conv is a single matmul."""
    O, I, KH, KW = w.shape
    H_out = (H_in + 2 * pad - KH) // stride + 1
    W_out = (W_in + 2 * pad - KW) // stride + 1
    s_out = s_in * stride
    hi_src = s_in * (H_in - 1)                       # last valid stored row offset
    taps, m_blocks = [], []
    for dh in range(KH):
        off = s_in * (dh - pad)                      # stored-row offset of this tap
        ok = [0 <= s_out * h + off <= hi_src for h in range(H_out)]
        if not any(ok):                              # tap never contributes -> drop
            continue
        taps.append(dict(off=off, lo=max(0, -off), hi=hi_src - off,
                         mask=not all(ok)))
        m_blocks.append(_conv_col_matrix(w, dh, W_in, W_out, stride, pad,
                                         in_lanes, LANES))
    M = np.concatenate(m_blocks, axis=0)
    brow = _bias_row(np.asarray(b, np.float32), W_out, LANES)
    return taps, M, brow, H_out, W_out, s_out


class _Packer:
    """Packs constant matrices into one (rows, 128) table, 16-row aligned."""

    def __init__(self, width=LANES, align=16):
        self.width, self.align = width, align
        self.chunks, self.rows = [], 0

    def add(self, mat):
        mat = np.asarray(mat, np.float32)
        r, c = mat.shape
        assert c <= self.width, (c, self.width)
        rp = ((r + self.align - 1) // self.align) * self.align
        buf = np.zeros((rp, self.width), np.float32)
        buf[:r, :c] = mat
        off = self.rows
        self.chunks.append(buf)
        self.rows += rp
        return (int(off), int(r), int(c))

    def finalize(self):
        return jnp.asarray(np.concatenate(self.chunks, axis=0), dtype=jnp.bfloat16)


def prepare_params(blocks, head, emb_dim, latent_size, batch_tile):
    """One-time host-side prep: fold all convs into the theta table + layout."""
    C = emb_dim
    H0 = latent_size
    assert latent_size * emb_dim <= LANES, \
        "dense column folding only supports W*C <= 128 (see TODO at top)"
    R = batch_tile * H0
    OB = max(8, ((batch_tile + 7) // 8) * 8)

    pk = _Packer()
    layout = dict(H0=H0, rows=R, out_rows=OB, batch_tile=batch_tile, blocks=[])
    flops = 0

    H = W = latent_size
    s = 1
    in_lanes = W * C                                  # raw first-layer width (64)
    for p in blocks:
        w1 = np.asarray(jax.device_get(p['w1'])); b1 = np.asarray(jax.device_get(p['b1']))
        w2 = np.asarray(jax.device_get(p['w2'])); b2 = np.asarray(jax.device_get(p['b2']))
        wd = np.asarray(jax.device_get(p['wd'])); bd = np.asarray(jax.device_get(p['bd']))
        c1_taps, M1, b1row, H1, W1, s1 = _plan_conv(w1, b1, H, W, s, 1, 1, in_lanes)
        c2_taps, M2, b2row, H2, W2, s2 = _plan_conv(w2, b2, H1, W1, s1, 2, 1, LANES)
        dn_taps, Md, bdrow, Hd, Wd, sd = _plan_conv(wd, bd, H, W, s, 2, 0, in_lanes)
        assert (H2, W2, s2) == (Hd, Wd, sd)
        M2d = np.concatenate([M2, Md], axis=0)        # conv2 + downsample fused
        layout['blocks'].append(dict(
            c1_taps=c1_taps, c1_m=pk.add(M1), c1_b=pk.add(b1row),
            c2_taps=c2_taps, dn_taps=dn_taps,
            c2_m=pk.add(M2d), c2_b=pk.add(b2row + bdrow)))
        flops += 2 * R * (M1.shape[0] + M2d.shape[0]) * LANES
        H, W, s, in_lanes = H2, W2, s2, LANES
    assert H == 1 and W == 1, "latent_size must reduce to 1x1 over the blocks"

    wc1, bc1, wc2, bc2 = head
    wc1 = np.asarray(jax.device_get(wc1)); bc1 = np.asarray(jax.device_get(bc1))
    wc2 = np.asarray(jax.device_get(wc2)); bc2 = np.asarray(jax.device_get(bc2))
    # gather the B per-image rows (stored at b*H0) into a compact (OB,128) tile
    Sf = np.zeros((OB, R), np.float32)
    for b in range(batch_tile):
        Sf[b, b * H0] = 1.0
    layout['sel'] = pk.add(Sf)
    _, Mh1, bh1, _, _, _ = _plan_conv(wc1, bc1, 1, 1, 1, 1, 0, LANES)
    layout['h1_m'] = pk.add(Mh1)
    layout['h1_b'] = pk.add(bh1)
    w2row = np.zeros((1, LANES), np.float32)
    w2row[0, :C] = wc2[:, :, 0, 0].reshape(-1)
    layout['h2_w'] = pk.add(w2row)
    layout['h2_b'] = pk.add(np.asarray(bc2, np.float32).reshape(1, 1))
    flops += 2 * OB * (R + LANES) * LANES
    layout['flops'] = int(flops)
    return pk.finalize(), layout


# ----------------------------------- Pallas kernel -----------------------------------

def _make_kernel(layout):
    H0 = layout['H0']
    R = layout['rows']
    OB = layout['out_rows']
    pow2 = (H0 & (H0 - 1)) == 0
    bf16, f32 = jnp.bfloat16, jnp.float32

    def leaky(v):
        return jnp.where(v > 0, v, 0.2 * v)

    def kernel(x_ref, theta_ref, out_ref):
        def tread(slc):
            off, r, c = slc
            return theta_ref[off:off + r, :] if c == LANES else theta_ref[off:off + r, :c]

        # per-image row index, used only for the image-boundary (zero padding) masks
        row = jax.lax.broadcasted_iota(jnp.int32, (R, LANES), 0)
        rmod = (row & (H0 - 1)) if pow2 else (row % H0)

        def slabs(src, taps):
            """Row-shifted (zero filled + boundary masked) copies of `src`,
            concatenated along lanes.  No MXU work: shifts are sublane
            slice+concat, masks are VPU selects."""
            rows, cols = src.shape
            parts = []
            for t in taps:
                off = t['off']
                if off == 0:
                    s = src
                elif off > 0:
                    s = jnp.concatenate(
                        [src[off:, :], jnp.zeros((off, cols), src.dtype)], axis=0)
                else:
                    s = jnp.concatenate(
                        [jnp.zeros((-off, cols), src.dtype), src[:rows + off, :]], axis=0)
                if t['mask']:
                    m = rmod[:, :cols]
                    keep = (m >= t['lo']) & (m <= t['hi'])
                    s = jnp.where(keep, s, jnp.zeros_like(s))
                parts.append(s)
            return parts[0] if len(parts) == 1 else jnp.concatenate(parts, axis=1)

        def matmul_bias(xcat, m_slc, b_slc):
            z = jnp.dot(xcat, tread(m_slc), preferred_element_type=f32)
            return z + tread(b_slc).astype(f32)

        act = x_ref[...].astype(bf16)                               # (R, W0*C)
        for blk in layout['blocks']:                                # DownResBlocks
            y1 = leaky(matmul_bias(slabs(act, blk['c1_taps']),
                                   blk['c1_m'], blk['c1_b'])).astype(bf16)
            xcat = jnp.concatenate([slabs(y1, blk['c2_taps']),
                                    slabs(act, blk['dn_taps'])], axis=1)
            act = leaky(matmul_bias(xcat, blk['c2_m'], blk['c2_b'])).astype(bf16)

        # head: gather per-image rows, 1x1 conv + LeakyReLU + 1x1 conv (lane dot)
        sel = jnp.dot(tread(layout['sel']), act,
                      preferred_element_type=f32).astype(bf16)       # (OB, 128)
        h = leaky(jnp.dot(sel, tread(layout['h1_m']),
                          preferred_element_type=f32)
                  + tread(layout['h1_b']).astype(f32))               # (OB, 128)
        w2 = tread(layout['h2_w']).astype(f32)                       # (1, 128)
        b2 = tread(layout['h2_b']).astype(f32)                       # (1, 1)
        o = jnp.sum(h * w2, axis=-1, keepdims=True) + b2             # (OB, 1)
        out_ref[0] = jnp.broadcast_to(o, (OB, LANES))                # unmasked tile
    return kernel


def forward(x_nchw, theta, layout):
    N, C, H, W = x_nchw.shape
    B = layout['batch_tile']
    OB = layout['out_rows']
    assert N % B == 0
    nt = N // B
    # NOTE: NHWC-native callers can pass (N,H,W,C) and skip this permute; it is
    # the only non-kernel op left in the forward pass.
    xp = jnp.transpose(x_nchw, (0, 2, 3, 1)).reshape(N * H, W * C)

    bytes_accessed = int(xp.size * 4 + theta.size * 2 + nt * OB * LANES * 4)
    out = pl.pallas_call(
        _make_kernel(layout),
        out_shape=jax.ShapeDtypeStruct((nt, OB, LANES), jnp.float32),
        grid=(nt,),
        in_specs=[
            pl.BlockSpec((B * H, W * C), lambda i: (i, 0)),
            # constant block index -> theta is DMA'd once and stays resident.
            # (pipeline_mode=pl.Buffered(1) would also drop the unused second
            #  pipeline buffer; left at default for portability, theta ~1 MB.)
            pl.BlockSpec(theta.shape, lambda i: (0, 0)),
        ],
        out_specs=pl.BlockSpec((1, OB, LANES), lambda i: (i, 0, 0)),
        compiler_params=pltpu.CompilerParams(
            dimension_semantics=("parallel",),
            vmem_limit_bytes=32 * 1024 * 1024),
        cost_estimate=pl.CostEstimate(flops=layout['flops'] * nt,
                                      transcendentals=0,
                                      bytes_accessed=bytes_accessed),
    )(xp, theta)
    return out[:, :B, 0].reshape(N)


# ------------------------------------ parameters ------------------------------------

def init_conv(key, o, i, kh, kw):
    k1, k2 = jax.random.split(key)
    bound = 1.0 / math.sqrt(i * kh * kw)
    w = jax.random.uniform(k1, (o, i, kh, kw), jnp.float32, -bound, bound)
    b = jax.random.uniform(k2, (o,), jnp.float32, -bound, bound)
    return w, b


def init_params(key, emb_dim, latent_size, baseline=8):
    num_blocks = int(math.log2(latent_size // baseline)) + 3
    keys = jax.random.split(key, num_blocks * 3 + 2)
    blocks, ki = [], 0
    for _ in range(num_blocks):
        w1, b1 = init_conv(keys[ki], emb_dim, emb_dim, 3, 3); ki += 1
        w2, b2 = init_conv(keys[ki], emb_dim, emb_dim, 4, 4); ki += 1
        wd, bd = init_conv(keys[ki], emb_dim, emb_dim, 1, 1); ki += 1
        blocks.append(dict(w1=w1, b1=b1, w2=w2, b2=b2, wd=wd, bd=bd))
    wc1, bc1 = init_conv(keys[ki], emb_dim, emb_dim, 1, 1); ki += 1
    wc2, bc2 = init_conv(keys[ki], 1, emb_dim, 1, 1)
    return blocks, (wc1, bc1, wc2, bc2)


# --------------------------------- pure-JAX reference ---------------------------------

def _conv_ref(x, w, b, stride, pad):
    wj = jnp.transpose(w, (2, 3, 1, 0))  # OIHW -> HWIO
    y = jax.lax.conv_general_dilated(x, wj, (stride, stride),
                                     [(pad, pad), (pad, pad)],
                                     dimension_numbers=('NHWC', 'HWIO', 'NHWC'))
    return y + b


def _leaky(x):
    return jnp.where(x > 0, x, 0.2 * x)


def forward_ref(x_nchw, blocks, head):
    x = jnp.transpose(x_nchw, (0, 2, 3, 1))
    for p in blocks:
        y = _leaky(_conv_ref(x, p['w1'], p['b1'], 1, 1))
        y = _conv_ref(y, p['w2'], p['b2'], 2, 1)
        d = _conv_ref(x, p['wd'], p['bd'], 2, 0)
        x = _leaky(y + d)
    wc1, bc1, wc2, bc2 = head
    h = _leaky(_conv_ref(x, wc1, bc1, 1, 0))
    return _conv_ref(h, wc2, bc2, 1, 0).reshape(-1)


# ---------------------------------------- main ----------------------------------------

if __name__ == "__main__":
    emb_dim, latent_size, batch = 4, 16, 2     # 4 DownResBlocks: 16 -> 8 -> 4 -> 2 -> 1
    key = jax.random.PRNGKey(0)
    kx, kp = jax.random.split(key)
    x = jax.random.normal(kx, (batch, emb_dim, latent_size, latent_size), jnp.float32)
    blocks, head = init_params(kp, emb_dim, latent_size)

    # batch tile per grid step (all images per step here; keep it a divisor of N,
    # and >= 8 images / even grid for v7x megacore when batch allows).
    batch_tile = 1
    for cand in range(min(batch, 8), 0, -1):
        if batch % cand == 0:
            batch_tile = cand
            break

    theta, layout = prepare_params(blocks, head, emb_dim, latent_size, batch_tile)
    fwd = jax.jit(lambda xx, th: forward(xx, th, layout))

    out = jax.block_until_ready(fwd(x, theta))
    ref = forward_ref(x, blocks, head)

    assert out.shape == (batch,), out.shape
    # bf16 MXU operands (f32 accumulation) -> tolerance loosened vs the f32 version.
    assert jnp.allclose(out, ref, atol=3e-2, rtol=3e-2), (out, ref)
    print("KERNEL_OK")
</pallas_src>

<mosaic_0001>
module attributes {stable_mosaic.version = 11 : i64} {
  func.func @kernel(%arg0: i32, %arg1: memref<32x64xf32, #tpu.memory_space<vmem>>, %arg2: memref<3904x128xbf16, #tpu.memory_space<vmem>>, %arg3: memref<1x8x128xf32, #tpu.memory_space<vmem>>) attributes {dimension_semantics = [#tpu.dimension_semantics<parallel>], iteration_bounds = array<i64: 1>, scalar_prefetch = 0 : i64, scratch_operands = 0 : i64, tpu.core_type = #tpu.core_type<tc>, window_params = [{transform_indices = @transform_0, window_bounds = array<i64: 32, 64>}, {pipeline_mode = #tpu.pipeline_mode<synchronous>, transform_indices = @transform_1, window_bounds = array<i64: 3904, 128>}, {transform_indices = @transform_2, window_bounds = array<i64: 1, 8, 128>}]} {
    %0 = tpu.iota {dimensions = array<i32: 0>} : vector<32x128xi32>
    %c15_i32 = arith.constant 15 : i32
    %1 = vector.broadcast %c15_i32 : i32 to vector<32x128xi32>
    %2 = arith.andi %0, %1 : vector<32x128xi32>
    %c0 = arith.constant 0 : index
    %c0_0 = arith.constant 0 : index
    %3 = vector.load %arg1[%c0, %c0_0] : memref<32x64xf32, #tpu.memory_space<vmem>>, vector<32x64xf32>
    %4 = arith.truncf %3 : vector<32x64xf32> to vector<32x64xbf16>
    %cst = arith.constant 0.000000e+00 : bf16
    %5 = vector.broadcast %cst : bf16 to vector<1x64xbf16>
    %6 = vector.extract_strided_slice %4 {offsets = [0, 0], sizes = [31, 64], strides = [1, 1]} : vector<32x64xbf16> to vector<31x64xbf16>
    %7 = tpu.concatenate %5, %6 in 0 : vector<1x64xbf16>, vector<31x64xbf16> -> vector<32x64xbf16>
    %8 = vector.extract_strided_slice %2 {offsets = [0, 0], sizes = [32, 64], strides = [1, 1]} : vector<32x128xi32> to vector<32x64xi32>
    %c1_i32 = arith.constant 1 : i32
    %9 = vector.broadcast %c1_i32 : i32 to vector<32x64xi32>
    %10 = arith.cmpi sge, %8, %9 : vector<32x64xi32>
    %c16_i32 = arith.constant 16 : i32
    %11 = vector.broadcast %c16_i32 : i32 to vector<32x64xi32>
    %12 = arith.cmpi sle, %8, %11 : vector<32x64xi32>
    %13 = arith.andi %10, %12 : vector<32x64xi1>
    %cst_1 = arith.constant 0.000000e+00 : bf16
    %14 = vector.broadcast %cst_1 : bf16 to vector<32x64xbf16>
    %15 = arith.select %13, %7, %14 : vector<32x64xi1>, vector<32x64xbf16>
    %16 = vector.extract_strided_slice %4 {offsets = [1, 0], sizes = [31, 64], strides = [1, 1]} : vector<32x64xbf16> to vector<31x64xbf16>
    %cst_2 = arith.constant 0.000000e+00 : bf16
    %17 = vector.broadcast %cst_2 : bf16 to vector<1x64xbf16>
    %18 = tpu.concatenate %16, %17 in 0 : vector<31x64xbf16>, vector<1x64xbf16> -> vector<32x64xbf16>
    %19 = vector.extract_strided_slice %2 {offsets = [0, 0], sizes = [32, 64], strides = [1, 1]} : vector<32x128xi32> to vector<32x64xi32>
    %c0_i32 = arith.constant 0 : i32
    %20 = vector.broadcast %c0_i32 : i32 to vector<32x64xi32>
    %21 = arith.cmpi sge, %19, %20 : vector<32x64xi32>
    %c14_i32 = arith.constant 14 : i32
    %22 = vector.broadcast %c14_i32 : i32 to vector<32x64xi32>
    %23 = arith.cmpi sle, %19, %22 : vector<32x64xi32>
    %24 = arith.andi %21, %23 : vector<32x64xi1>
    %cst_3 = arith.constant 0.000000e+00 : bf16
    %25 = vector.broadcast %cst_3 : bf16 to vector<32x64xbf16>
    %26 = arith.select %24, %18, %25 : vector<32x64xi1>, vector<32x64xbf16>
    %27 = tpu.concatenate %15, %4, %26 in 1 : vector<32x64xbf16>, vector<32x64xbf16>, vector<32x64xbf16> -> vector<32x192xbf16>
    %c0_4 = arith.constant 0 : index
    %c0_5 = arith.constant 0 : index
    %28 = vector.load %arg2[%c0_4, %c0_5] : memref<3904x128xbf16, #tpu.memory_space<vmem>>, vector<192x128xbf16>
    %cst_6 = arith.constant dense<0.000000e+00> : vector<32x128xf32>
    %29 = tpu.matmul %27, %28, %cst_6 {dimension_numbers = #tpu.dot_dimension_numbers<[1], [0], [0], [1], [0, 0, 1, 1], [], []>} : vector<32x192xbf16>, vector<192x128xbf16>, vector<32x128xf32> -> vector<32x128xf32>
    %c192 = arith.constant 192 : index
    %c0_7 = arith.constant 0 : index
    %30 = vector.load %arg2[%c192, %c0_7] : memref<3904x128xbf16, #tpu.memory_space<vmem>>, vector<1x128xbf16>
    %31 = arith.extf %30 : vector<1x128xbf16> to vector<1x128xf32>
    %32 = vector.broadcast %31 : vector<1x128xf32> to vector<32x128xf32>
    %33 = arith.addf %29, %32 : vector<32x128xf32>
    %cst_8 = arith.constant 0.000000e+00 : f32
    %34 = vector.broadcast %cst_8 : f32 to vector<32x128xf32>
    %35 = arith.cmpf ogt, %33, %34 : vector<32x128xf32>
    %cst_9 = arith.constant 2.000000e-01 : f32
    %36 = vector.broadcast %cst_9 : f32 to vector<32x128xf32>
    %37 = arith.mulf %36, %33 : vector<32x128xf32>
    %38 = arith.select %35, %33, %37 : vector<32x128xi1>, vector<32x128xf32>
    %39 = arith.truncf %38 : vector<32x128xf32> to vector<32x128xbf16>
    %cst_10 = arith.constant 0.000000e+00 : bf16
    %40 = vector.broadcast %cst_10 : bf16 to vector<1x128xbf16>
    %41 = vector.extract_strided_slice %39 {offsets = [0, 0], sizes = [31, 128], strides = [1, 1]} : vector<32x128xbf16> to vector<31x128xbf16>
    %42 = tpu.concatenate %40, %41 in 0 : vector<1x128xbf16>, vector<31x128xbf16> -> vector<32x128xbf16>
    %c1_i32_11 = arith.constant 1 : i32
    %43 = vector.broadcast %c1_i32_11 : i32 to vector<32x128xi32>
    %44 = arith.cmpi sge, %2, %43 : vector<32x128xi32>
    %c16_i32_12 = arith.constant 16 : i32
    %45 = vector.broadcast %c16_i32_12 : i32 to vector<32x128xi32>
    %46 = arith.cmpi sle, %2, %45 : vector<32x128xi32>
    %47 = arith.andi %44, %46 : vector<32x128xi1>
    %cst_13 = arith.constant 0.000000e+00 : bf16
    %48 = vector.broadcast %cst_13 : bf16 to vector<32x128xbf16>
    %49 = arith.select %47, %42, %48 : vector<32x128xi1>, vector<32x128xbf16>
    %50 = vector.extract_strided_slice %39 {offsets = [1, 0], sizes = [31, 128], strides = [1, 1]} : vector<32x128xbf16> to vector<31x128xbf16>
    %cst_14 = arith.constant 0.000000e+00 : bf16
    %51 = vector.broadcast %cst_14 : bf16 to vector<1x128xbf16>
    %52 = tpu.concatenate %50, %51 in 0 : vector<31x128xbf16>, vector<1x128xbf16> -> vector<32x128xbf16>
    %53 = vector.extract_strided_slice %39 {offsets = [2, 0], sizes = [30, 128], strides = [1, 1]} : vector<32x128xbf16> to vector<30x128xbf16>
    %cst_15 = arith.constant 0.000000e+00 : bf16
    %54 = vector.broadcast %cst_15 : bf16 to vector<2x128xbf16>
    %55 = tpu.concatenate %53, %54 in 0 : vector<30x128xbf16>, vector<2x128xbf16> -> vector<32x128xbf16>
    %c0_i32_16 = arith.constant 0 : i32
    %56 = vector.broadcast %c0_i32_16 : i32 to vector<32x128xi32>
    %57 = arith.cmpi sge, %2, %56 : vector<32x128xi32>
    %c13_i32 = arith.constant 13 : i32
    %58 = vector.broadcast %c13_i32 : i32 to vector<32x128xi32>
    %59 = arith.cmpi sle, %2, %58 : vector<32x128xi32>
    %60 = arith.andi %57, %59 : vector<32x128xi1>
    %cst_17 = arith.constant 0.000000e+00 : bf16
    %61 = vector.broadcast %cst_17 : bf16 to vector<32x128xbf16>
    %62 = arith.select %60, %55, %61 : vector<32x128xi1>, vector<32x128xbf16>
    %63 = tpu.concatenate %49, %39, %52, %62 in 1 : vector<32x128xbf16>, vector<32x128xbf16>, vector<32x128xbf16>, vector<32x128xbf16> -> vector<32x512xbf16>
    %64 = tpu.concatenate %63, %4 in 1 : vector<32x512xbf16>, vector<32x64xbf16> -> vector<32x576xbf16>
    %c208 = arith.constant 208 : index
    %c0_18 = arith.constant 0 : index
    %65 = vector.load %arg2[%c208, %c0_18] : memref<3904x128xbf16, #tpu.memory_space<vmem>>, vector<576x128xbf16>
    %cst_19 = arith.constant dense<0.000000e+00> : vector<32x128xf32>
    %66 = tpu.matmul %64, %65, %cst_19 {dimension_numbers = #tpu.dot_dimension_numbers<[1], [0], [0], [1], [0, 0, 1, 1], [], []>} : vector<32x576xbf16>, vector<576x128xbf16>, vector<32x128xf32> -> vector<32x128xf32>
    %c784 = arith.constant 784 : index
    %c0_20 = arith.constant 0 : index
    %67 = vector.load %arg2[%c784, %c0_20] : memref<3904x128xbf16, #tpu.memory_space<vmem>>, vector<1x128xbf16>
    %68 = arith.extf %67 : vector<1x128xbf16> to vector<1x128xf32>
    %69 = vector.broadcast %68 : vector<1x128xf32> to vector<32x128xf32>
    %70 = arith.addf %66, %69 : vector<32x128xf32>
    %cst_21 = arith.constant 0.000000e+00 : f32
    %71 = vector.broadcast %cst_21 : f32 to vector<32x128xf32>
    %72 = arith.cmpf ogt, %70, %71 : vector<32x128xf32>
    %cst_22 = arith.constant 2.000000e-01 : f32
    %73 = vector.broadcast %cst_22 : f32 to vector<32x128xf32>
    %74 = arith.mulf %73, %70 : vector<32x128xf32>
    %75 = arith.select %72, %70, %74 : vector<32x128xi1>, vector<32x128xf32>
    %76 = arith.truncf %75 : vector<32x128xf32> to vector<32x128xbf16>
    %cst_23 = arith.constant 0.000000e+00 : bf16
    %77 = vector.broadcast %cst_23 : bf16 to vector<2x128xbf16>
    %78 = vector.extract_strided_slice %76 {offsets = [0, 0], sizes = [30, 128], strides = [1, 1]} : vector<32x128xbf16> to vector<30x128xbf16>
    %79 = tpu.concatenate %77, %78 in 0 : vector<2x128xbf16>, vector<30x128xbf16> -> vector<32x128xbf16>
    %c2_i32 = arith.constant 2 : i32
    %80 = vector.broadcast %c2_i32 : i32 to vector<32x128xi32>
    %81 = arith.cmpi sge, %2, %80 : vector<32x128xi32>
    %c16_i32_24 = arith.constant 16 : i32
    %82 = vector.broadcast %c16_i32_24 : i32 to vector<32x128xi32>
    %83 = arith.cmpi sle, %2, %82 : vector<32x128xi32>
    %84 = arith.andi %81, %83 : vector<32x128xi1>
    %cst_25 = arith.constant 0.000000e+00 : bf16
    %85 = vector.broadcast %cst_25 : bf16 to vector<32x128xbf16>
    %86 = arith.select %84, %79, %85 : vector<32x128xi1>, vector<32x128xbf16>
    %87 = vector.extract_strided_slice %76 {offsets = [2, 0], sizes = [30, 128], strides = [1, 1]} : vector<32x128xbf16> to vector<30x128xbf16>
    %cst_26 = arith.constant 0.000000e+00 : bf16
    %88 = vector.broadcast %cst_26 : bf16 to vector<2x128xbf16>
    %89 = tpu.concatenate %87, %88 in 0 : vector<30x128xbf16>, vector<2x128xbf16> -> vector<32x128xbf16>
    %c0_i32_27 = arith.constant 0 : i32
    %90 = vector.broadcast %c0_i32_27 : i32 to vector<32x128xi32>
    %91 = arith.cmpi sge, %2, %90 : vector<32x128xi32>
    %c12_i32 = arith.constant 12 : i32
    %92 = vector.broadcast %c12_i32 : i32 to vector<32x128xi32>
    %93 = arith.cmpi sle, %2, %92 : vector<32x128xi32>
    %94 = arith.andi %91, %93 : vector<32x128xi1>
    %cst_28 = arith.constant 0.000000e+00 : bf16
    %95 = vector.broadcast %cst_28 : bf16 to vector<32x128xbf16>
    %96 = arith.select %94, %89, %95 : vector<32x128xi1>, vector<32x128xbf16>
    %97 = tpu.concatenate %86, %76, %96 in 1 : vector<32x128xbf16>, vector<32x128xbf16>, vector<32x128xbf16> -> vector<32x384xbf16>
    %c800 = arith.constant 800 : index
    %c0_29 = arith.constant 0 : index
    %98 = vector.load %arg2[%c800, %c0_29] : memref<3904x128xbf16, #tpu.memory_space<vmem>>, vector<384x128xbf16>
    %cst_30 = arith.constant dense<0.000000e+00> : vector<32x128xf32>
    %99 = tpu.matmul %97, %98, %cst_30 {dimension_numbers = #tpu.dot_dimension_numbers<[1], [0], [0], [1], [0, 0, 1, 1], [], []>} : vector<32x384xbf16>, vector<384x128xbf16>, vector<32x128xf32> -> vector<32x128xf32>
    %c1184 = arith.constant 1184 : index
    %c0_31 = arith.constant 0 : index
    %100 = vector.load %arg2[%c1184, %c0_31] : memref<3904x128xbf16, #tpu.memory_space<vmem>>, vector<1x128xbf16>
    %101 = arith.extf %100 : vector<1x128xbf16> to vector<1x128xf32>
    %102 = vector.broadcast %101 : vector<1x128xf32> to vector<32x128xf32>
    %103 = arith.addf %99, %102 : vector<32x128xf32>
    %cst_32 = arith.constant 0.000000e+00 : f32
    %104 = vector.broadcast %cst_32 : f32 to vector<32x128xf32>
    %105 = arith.cmpf ogt, %103, %104 : vector<32x128xf32>
    %cst_33 = arith.constant 2.000000e-01 : f32
    %106 = vector.broadcast %cst_33 : f32 to vector<32x128xf32>
    %107 = arith.mulf %106, %103 : vector<32x128xf32>
    %108 = arith.select %105, %103, %107 : vector<32x128xi1>, vector<32x128xf32>
    %109 = arith.truncf %108 : vector<32x128xf32> to vector<32x128xbf16>
    %cst_34 = arith.constant 0.000000e+00 : bf16
    %110 = vector.broadcast %cst_34 : bf16 to vector<2x128xbf16>
    %111 = vector.extract_strided_slice %109 {offsets = [0, 0], sizes = [30, 128], strides = [1, 1]} : vector<32x128xbf16> to vector<30x128xbf16>
    %112 = tpu.concatenate %110, %111 in 0 : vector<2x128xbf16>, vector<30x128xbf16> -> vector<32x128xbf16>
    %c2_i32_35 = arith.constant 2 : i32
    %113 = vector.broadcast %c2_i32_35 : i32 to vector<32x128xi32>
    %114 = arith.cmpi sge, %2, %113 : vector<32x128xi32>
    %c16_i32_36 = arith.constant 16 : i32
    %115 = vector.broadcast %c16_i32_36 : i32 to vector<32x128xi32>
    %116 = arith.cmpi sle, %2, %115 : vector<32x128xi32>
    %117 = arith.andi %114, %116 : vector<32x128xi1>
    %cst_37 = arith.constant 0.000000e+00 : bf16
    %118 = vector.broadcast %cst_37 : bf16 to vector<32x128xbf16>
    %119 = arith.select %117, %112, %118 : vector<32x128xi1>, vector<32x128xbf16>
    %120 = vector.extract_strided_slice %109 {offsets = [2, 0], sizes = [30, 128], strides = [1, 1]} : vector<32x128xbf16> to vector<30x128xbf16>
    %cst_38 = arith.constant 0.000000e+00 : bf16
    %121 = vector.broadcast %cst_38 : bf16 to vector<2x128xbf16>
    %122 = tpu.concatenate %120, %121 in 0 : vector<30x128xbf16>, vector<2x128xbf16> -> vector<32x128xbf16>
    %123 = vector.extract_strided_slice %109 {offsets = [4, 0], sizes = [28, 128], strides = [1, 1]} : vector<32x128xbf16> to vector<28x128xbf16>
    %cst_39 = arith.constant 0.000000e+00 : bf16
    %124 = vector.broadcast %cst_39 : bf16 to vector<4x128xbf16>
    %125 = tpu.concatenate %123, %124 in 0 : vector<28x128xbf16>, vector<4x128xbf16> -> vector<32x128xbf16>
    %c0_i32_40 = arith.constant 0 : i32
    %126 = vector.broadcast %c0_i32_40 : i32 to vector<32x128xi32>
    %127 = arith.cmpi sge, %2, %126 : vector<32x128xi32>
    %c10_i32 = arith.constant 10 : i32
    %128 = vector.broadcast %c10_i32 : i32 to vector<32x128xi32>
    %129 = arith.cmpi sle, %2, %128 : vector<32x128xi32>
    %130 = arith.andi %127, %129 : vector<32x128xi1>
    %cst_41 = arith.constant 0.000000e+00 : bf16
    %131 = vector.broadcast %cst_41 : bf16 to vector<32x128xbf16>
    %132 = arith.select %130, %125, %131 : vector<32x128xi1>, vector<32x128xbf16>
    %133 = tpu.concatenate %119, %109, %122, %132 in 1 : vector<32x128xbf16>, vector<32x128xbf16>, vector<32x128xbf16>, vector<32x128xbf16> -> vector<32x512xbf16>
    %134 = tpu.concatenate %133, %76 in 1 : vector<32x512xbf16>, vector<32x128xbf16> -> vector<32x640xbf16>
    %c1200 = arith.constant 1200 : index
    %c0_42 = arith.constant 0 : index
    %135 = vector.load %arg2[%c1200, %c0_42] : memref<3904x128xbf16, #tpu.memory_space<vmem>>, vector<640x128xbf16>
    %cst_43 = arith.constant dense<0.000000e+00> : vector<32x128xf32>
    %136 = tpu.matmul %134, %135, %cst_43 {dimension_numbers = #tpu.dot_dimension_numbers<[1], [0], [0], [1], [0, 0, 1, 1], [], []>} : vector<32x640xbf16>, vector<640x128xbf16>, vector<32x128xf32> -> vector<32x128xf32>
    %c1840 = arith.constant 1840 : index
    %c0_44 = arith.constant 0 : index
    %137 = vector.load %arg2[%c1840, %c0_44] : memref<3904x128xbf16, #tpu.memory_space<vmem>>, vector<1x128xbf16>
    %138 = arith.extf %137 : vector<1x128xbf16> to vector<1x128xf32>
    %139 = vector.broadcast %138 : vector<1x128xf32> to vector<32x128xf32>
    %140 = arith.addf %136, %139 : vector<32x128xf32>
    %cst_45 = arith.constant 0.000000e+00 : f32
    %141 = vector.broadcast %cst_45 : f32 to vector<32x128xf32>
    %142 = arith.cmpf ogt, %140, %141 : vector<32x128xf32>
    %cst_46 = arith.constant 2.000000e-01 : f32
    %143 = vector.broadcast %cst_46 : f32 to vector<32x128xf32>
    %144 = arith.mulf %143, %140 : vector<32x128xf32>
    %145 = arith.select %142, %140, %144 : vector<32x128xi1>, vector<32x128xf32>
    %146 = arith.truncf %145 : vector<32x128xf32> to vector<32x128xbf16>
    %cst_47 = arith.constant 0.000000e+00 : bf16
    %147 = vector.broadcast %cst_47 : bf16 to vector<4x128xbf16>
    %148 = vector.extract_strided_slice %146 {offsets = [0, 0], sizes = [28, 128], strides = [1, 1]} : vector<32x128xbf16> to vector<28x128xbf16>
    %149 = tpu.concatenate %147, %148 in 0 : vector<4x128xbf16>, vector<28x128xbf16> -> vector<32x128xbf16>
    %c4_i32 = arith.constant 4 : i32
    %150 = vector.broadcast %c4_i32 : i32 to vector<32x128xi32>
    %151 = arith.cmpi sge, %2, %150 : vector<32x128xi32>
    %c16_i32_48 = arith.constant 16 : i32
    %152 = vector.broadcast %c16_i32_48 : i32 to vector<32x128xi32>
    %153 = arith.cmpi sle, %2, %152 : vector<32x128xi32>
    %154 = arith.andi %151, %153 : vector<32x128xi1>
    %cst_49 = arith.constant 0.000000e+00 : bf16
    %155 = vector.broadcast %cst_49 : bf16 to vector<32x128xbf16>
    %156 = arith.select %154, %149, %155 : vector<32x128xi1>, vector<32x128xbf16>
    %157 = vector.extract_strided_slice %146 {offsets = [4, 0], sizes = [28, 128], strides = [1, 1]} : vector<32x128xbf16> to vector<28x128xbf16>
    %cst_50 = arith.constant 0.000000e+00 : bf16
    %158 = vector.broadcast %cst_50 : bf16 to vector<4x128xbf16>
    %159 = tpu.concatenate %157, %158 in 0 : vector<28x128xbf16>, vector<4x128xbf16> -> vector<32x128xbf16>
    %c0_i32_51 = arith.constant 0 : i32
    %160 = vector.broadcast %c0_i32_51 : i32 to vector<32x128xi32>
    %161 = arith.cmpi sge, %2, %160 : vector<32x128xi32>
    %c8_i32 = arith.constant 8 : i32
    %162 = vector.broadcast %c8_i32 : i32 to vector<32x128xi32>
    %163 = arith.cmpi sle, %2, %162 : vector<32x128xi32>
    %164 = arith.andi %161, %163 : vector<32x128xi1>
    %cst_52 = arith.constant 0.000000e+00 : bf16
    %165 = vector.broadcast %cst_52 : bf16 to vector<32x128xbf16>
    %166 = arith.select %164, %159, %165 : vector<32x128xi1>, vector<32x128xbf16>
    %167 = tpu.concatenate %156, %146, %166 in 1 : vector<32x128xbf16>, vector<32x128xbf16>, vector<32x128xbf16> -> vector<32x384xbf16>
    %c1856 = arith.constant 1856 : index
    %c0_53 = arith.constant 0 : index
    %168 = vector.load %arg2[%c1856, %c0_53] : memref<3904x128xbf16, #tpu.memory_space<vmem>>, vector<384x128xbf16>
    %cst_54 = arith.constant dense<0.000000e+00> : vector<32x128xf32>
    %169 = tpu.matmul %167, %168, %cst_54 {dimension_numbers = #tpu.dot_dimension_numbers<[1], [0], [0], [1], [0, 0, 1, 1], [], []>} : vector<32x384xbf16>, vector<384x128xbf16>, vector<32x128xf32> -> vector<32x128xf32>
    %c2240 = arith.constant 2240 : index
    %c0_55 = arith.constant 0 : index
    %170 = vector.load %arg2[%c2240, %c0_55] : memref<3904x128xbf16, #tpu.memory_space<vmem>>, vector<1x128xbf16>
    %171 = arith.extf %170 : vector<1x128xbf16> to vector<1x128xf32>
    %172 = vector.broadcast %171 : vector<1x128xf32> to vector<32x128xf32>
    %173 = arith.addf %169, %172 : vector<32x128xf32>
    %cst_56 = arith.constant 0.000000e+00 : f32
    %174 = vector.broadcast %cst_56 : f32 to vector<32x128xf32>
    %175 = arith.cmpf ogt, %173, %174 : vector<32x128xf32>
    %cst_57 = arith.constant 2.000000e-01 : f32
    %176 = vector.broadcast %cst_57 : f32 to vector<32x128xf32>
    %177 = arith.mulf %176, %173 : vector<32x128xf32>
    %178 = arith.select %175, %173, %177 : vector<32x128xi1>, vector<32x128xf32>
    %179 = arith.truncf %178 : vector<32x128xf32> to vector<32x128xbf16>
    %cst_58 = arith.constant 0.000000e+00 : bf16
    %180 = vector.broadcast %cst_58 : bf16 to vector<4x128xbf16>
    %181 = vector.extract_strided_slice %179 {offsets = [0, 0], sizes = [28, 128], strides = [1, 1]} : vector<32x128xbf16> to vector<28x128xbf16>
    %182 = tpu.concatenate %180, %181 in 0 : vector<4x128xbf16>, vector<28x128xbf16> -> vector<32x128xbf16>
    %c4_i32_59 = arith.constant 4 : i32
    %183 = vector.broadcast %c4_i32_59 : i32 to vector<32x128xi32>
    %184 = arith.cmpi sge, %2, %183 : vector<32x128xi32>
    %c16_i32_60 = arith.constant 16 : i32
    %185 = vector.broadcast %c16_i32_60 : i32 to vector<32x128xi32>
    %186 = arith.cmpi sle, %2, %185 : vector<32x128xi32>
    %187 = arith.andi %184, %186 : vector<32x128xi1>
    %cst_61 = arith.constant 0.000000e+00 : bf16
    %188 = vector.broadcast %cst_61 : bf16 to vector<32x128xbf16>
    %189 = arith.select %187, %182, %188 : vector<32x128xi1>, vector<32x128xbf16>
    %190 = vector.extract_strided_slice %179 {offsets = [4, 0], sizes = [28, 128], strides = [1, 1]} : vector<32x128xbf16> to vector<28x128xbf16>
    %cst_62 = arith.constant 0.000000e+00 : bf16
    %191 = vector.broadcast %cst_62 : bf16 to vector<4x128xbf16>
    %192 = tpu.concatenate %190, %191 in 0 : vector<28x128xbf16>, vector<4x128xbf16> -> vector<32x128xbf16>
    %193 = vector.extract_strided_slice %179 {offsets = [8, 0], sizes = [24, 128], strides = [1, 1]} : vector<32x128xbf16> to vector<24x128xbf16>
    %cst_63 = arith.constant 0.000000e+00 : bf16
    %194 = vector.broadcast %cst_63 : bf16 to vector<8x128xbf16>
    %195 = tpu.concatenate %193, %194 in 0 : vector<24x128xbf16>, vector<8x128xbf16> -> vector<32x128xbf16>
    %c0_i32_64 = arith.constant 0 : i32
    %196 = vector.broadcast %c0_i32_64 : i32 to vector<32x128xi32>
    %197 = arith.cmpi sge, %2, %196 : vector<32x128xi32>
    %c4_i32_65 = arith.constant 4 : i32
    %198 = vector.broadcast %c4_i32_65 : i32 to vector<32x128xi32>
    %199 = arith.cmpi sle, %2, %198 : vector<32x128xi32>
    %200 = arith.andi %197, %199 : vector<32x128xi1>
    %cst_66 = arith.constant 0.000000e+00 : bf16
    %201 = vector.broadcast %cst_66 : bf16 to vector<32x128xbf16>
    %202 = arith.select %200, %195, %201 : vector<32x128xi1>, vector<32x128xbf16>
    %203 = tpu.concatenate %189, %179, %192, %202 in 1 : vector<32x128xbf16>, vector<32x128xbf16>, vector<32x128xbf16>, vector<32x128xbf16> -> vector<32x512xbf16>
    %204 = tpu.concatenate %203, %146 in 1 : vector<32x512xbf16>, vector<32x128xbf16> -> vector<32x640xbf16>
    %c2256 = arith.constant 2256 : index
    %c0_67 = arith.constant 0 : index
    %205 = vector.load %arg2[%c2256, %c0_67] : memref<3904x128xbf16, #tpu.memory_space<vmem>>, vector<640x128xbf16>
    %cst_68 = arith.constant dense<0.000000e+00> : vector<32x128xf32>
    %206 = tpu.matmul %204, %205, %cst_68 {dimension_numbers = #tpu.dot_dimension_numbers<[1], [0], [0], [1], [0, 0, 1, 1], [], []>} : vector<32x640xbf16>, vector<640x128xbf16>, vector<32x128xf32> -> vector<32x128xf32>
    %c2896 = arith.constant 2896 : index
    %c0_69 = arith.constant 0 : index
    %207 = vector.load %arg2[%c2896, %c0_69] : memref<3904x128xbf16, #tpu.memory_space<vmem>>, vector<1x128xbf16>
    %208 = arith.extf %207 : vector<1x128xbf16> to vector<1x128xf32>
    %209 = vector.broadcast %208 : vector<1x128xf32> to vector<32x128xf32>
    %210 = arith.addf %206, %209 : vector<32x128xf32>
    %cst_70 = arith.constant 0.000000e+00 : f32
    %211 = vector.broadcast %cst_70 : f32 to vector<32x128xf32>
    %212 = arith.cmpf ogt, %210, %211 : vector<32x128xf32>
    %cst_71 = arith.constant 2.000000e-01 : f32
    %213 = vector.broadcast %cst_71 : f32 to vector<32x128xf32>
    %214 = arith.mulf %213, %210 : vector<32x128xf32>
    %215 = arith.select %212, %210, %214 : vector<32x128xi1>, vector<32x128xf32>
    %216 = arith.truncf %215 : vector<32x128xf32> to vector<32x128xbf16>
    %cst_72 = arith.constant 0.000000e+00 : bf16
    %217 = vector.broadcast %cst_72 : bf16 to vector<8x128xbf16>
    %218 = vector.extract_strided_slice %216 {offsets = [0, 0], sizes = [24, 128], strides = [1, 1]} : vector<32x128xbf16> to vector<24x128xbf16>
    %219 = tpu.concatenate %217, %218 in 0 : vector<8x128xbf16>, vector<24x128xbf16> -> vector<32x128xbf16>
    %c8_i32_73 = arith.constant 8 : i32
    %220 = vector.broadcast %c8_i32_73 : i32 to vector<32x128xi32>
    %221 = arith.cmpi sge, %2, %220 : vector<32x128xi32>
    %c16_i32_74 = arith.constant 16 : i32
    %222 = vector.broadcast %c16_i32_74 : i32 to vector<32x128xi32>
    %223 = arith.cmpi sle, %2, %222 : vector<32x128xi32>
    %224 = arith.andi %221, %223 : vector<32x128xi1>
    %cst_75 = arith.constant 0.000000e+00 : bf16
    %225 = vector.broadcast %cst_75 : bf16 to vector<32x128xbf16>
    %226 = arith.select %224, %219, %225 : vector<32x128xi1>, vector<32x128xbf16>
    %227 = vector.extract_strided_slice %216 {offsets = [8, 0], sizes = [24, 128], strides = [1, 1]} : vector<32x128xbf16> to vector<24x128xbf16>
    %cst_76 = arith.constant 0.000000e+00 : bf16
    %228 = vector.broadcast %cst_76 : bf16 to vector<8x128xbf16>
    %229 = tpu.concatenate %227, %228 in 0 : vector<24x128xbf16>, vector<8x128xbf16> -> vector<32x128xbf16>
    %c0_i32_77 = arith.constant 0 : i32
    %230 = vector.broadcast %c0_i32_77 : i32 to vector<32x128xi32>
    %231 = arith.cmpi sge, %2, %230 : vector<32x128xi32>
    %c0_i32_78 = arith.constant 0 : i32
    %232 = vector.broadcast %c0_i32_78 : i32 to vector<32x128xi32>
    %233 = arith.cmpi sle, %2, %232 : vector<32x128xi32>
    %234 = arith.andi %231, %233 : vector<32x128xi1>
    %cst_79 = arith.constant 0.000000e+00 : bf16
    %235 = vector.broadcast %cst_79 : bf16 to vector<32x128xbf16>
    %236 = arith.select %234, %229, %235 : vector<32x128xi1>, vector<32x128xbf16>
    %237 = tpu.concatenate %226, %216, %236 in 1 : vector<32x128xbf16>, vector<32x128xbf16>, vector<32x128xbf16> -> vector<32x384xbf16>
    %c2912 = arith.constant 2912 : index
    %c0_80 = arith.constant 0 : index
    %238 = vector.load %arg2[%c2912, %c0_80] : memref<3904x128xbf16, #tpu.memory_space<vmem>>, vector<384x128xbf16>
    %cst_81 = arith.constant dense<0.000000e+00> : vector<32x128xf32>
    %239 = tpu.matmul %237, %238, %cst_81 {dimension_numbers = #tpu.dot_dimension_numbers<[1], [0], [0], [1], [0, 0, 1, 1], [], []>} : vector<32x384xbf16>, vector<384x128xbf16>, vector<32x128xf32> -> vector<32x128xf32>
    %c3296 = arith.constant 3296 : index
    %c0_82 = arith.constant 0 : index
    %240 = vector.load %arg2[%c3296, %c0_82] : memref<3904x128xbf16, #tpu.memory_space<vmem>>, vector<1x128xbf16>
    %241 = arith.extf %240 : vector<1x128xbf16> to vector<1x128xf32>
    %242 = vector.broadcast %241 : vector<1x128xf32> to vector<32x128xf32>
    %243 = arith.addf %239, %242 : vector<32x128xf32>
    %cst_83 = arith.constant 0.000000e+00 : f32
    %244 = vector.broadcast %cst_83 : f32 to vector<32x128xf32>
    %245 = arith.cmpf ogt, %243, %244 : vector<32x128xf32>
    %cst_84 = arith.constant 2.000000e-01 : f32
    %246 = vector.broadcast %cst_84 : f32 to vector<32x128xf32>
    %247 = arith.mulf %246, %243 : vector<32x128xf32>
    %248 = arith.select %245, %243, %247 : vector<32x128xi1>, vector<32x128xf32>
    %249 = arith.truncf %248 : vector<32x128xf32> to vector<32x128xbf16>
    %250 = vector.extract_strided_slice %249 {offsets = [8, 0], sizes = [24, 128], strides = [1, 1]} : vector<32x128xbf16> to vector<24x128xbf16>
    %cst_85 = arith.constant 0.000000e+00 : bf16
    %251 = vector.broadcast %cst_85 : bf16 to vector<8x128xbf16>
    %252 = tpu.concatenate %250, %251 in 0 : vector<24x128xbf16>, vector<8x128xbf16> -> vector<32x128xbf16>
    %253 = tpu.concatenate %249, %252 in 1 : vector<32x128xbf16>, vector<32x128xbf16> -> vector<32x256xbf16>
    %254 = tpu.concatenate %253, %216 in 1 : vector<32x256xbf16>, vector<32x128xbf16> -> vector<32x384xbf16>
    %c3312 = arith.constant 3312 : index
    %c0_86 = arith.constant 0 : index
    %255 = vector.load %arg2[%c3312, %c0_86] : memref<3904x128xbf16, #tpu.memory_space<vmem>>, vector<384x128xbf16>
    %cst_87 = arith.constant dense<0.000000e+00> : vector<32x128xf32>
    %256 = tpu.matmul %254, %255, %cst_87 {dimension_numbers = #tpu.dot_dimension_numbers<[1], [0], [0], [1], [0, 0, 1, 1], [], []>} : vector<32x384xbf16>, vector<384x128xbf16>, vector<32x128xf32> -> vector<32x128xf32>
    %c3696 = arith.constant 3696 : index
    %c0_88 = arith.constant 0 : index
    %257 = vector.load %arg2[%c3696, %c0_88] : memref<3904x128xbf16, #tpu.memory_space<vmem>>, vector<1x128xbf16>
    %258 = arith.extf %257 : vector<1x128xbf16> to vector<1x128xf32>
    %259 = vector.broadcast %258 : vector<1x128xf32> to vector<32x128xf32>
    %260 = arith.addf %256, %259 : vector<32x128xf32>
    %cst_89 = arith.constant 0.000000e+00 : f32
    %261 = vector.broadcast %cst_89 : f32 to vector<32x128xf32>
    %262 = arith.cmpf ogt, %260, %261 : vector<32x128xf32>
    %cst_90 = arith.constant 2.000000e-01 : f32
    %263 = vector.broadcast %cst_90 : f32 to vector<32x128xf32>
    %264 = arith.mulf %263, %260 : vector<32x128xf32>
    %265 = arith.select %262, %260, %264 : vector<32x128xi1>, vector<32x128xf32>
    %266 = arith.truncf %265 : vector<32x128xf32> to vector<32x128xbf16>
    %c3712 = arith.constant 3712 : index
    %c0_91 = arith.constant 0 : index
    %267 = vector.load %arg2[%c3712, %c0_91] : memref<3904x128xbf16, #tpu.memory_space<vmem>>, vector<8x32xbf16>
    %cst_92 = arith.constant dense<0.000000e+00> : vector<8x128xf32>
    %268 = tpu.matmul %267, %266, %cst_92 {dimension_numbers = #tpu.dot_dimension_numbers<[1], [0], [0], [1], [0, 0, 1, 1], [], []>} : vector<8x32xbf16>, vector<32x128xbf16>, vector<8x128xf32> -> vector<8x128xf32>
    %269 = arith.truncf %268 : vector<8x128xf32> to vector<8x128xbf16>
    %c3728 = arith.constant 3728 : index
    %c0_93 = arith.constant 0 : index
    %270 = vector.load %arg2[%c3728, %c0_93] : memref<3904x128xbf16, #tpu.memory_space<vmem>>, vector<128x128xbf16>
    %cst_94 = arith.constant dense<0.000000e+00> : vector<8x128xf32>
    %271 = tpu.matmul %269, %270, %cst_94 {dimension_numbers = #tpu.dot_dimension_numbers<[1], [0], [0], [1], [0, 0, 1, 1], [], []>} : vector<8x128xbf16>, vector<128x128xbf16>, vector<8x128xf32> -> vector<8x128xf32>
    %c3856 = arith.constant 3856 : index
    %c0_95 = arith.constant 0 : index
    %272 = vector.load %arg2[%c3856, %c0_95] : memref<3904x128xbf16, #tpu.memory_space<vmem>>, vector<1x128xbf16>
    %273 = arith.extf %272 : vector<1x128xbf16> to vector<1x128xf32>
    %274 = vector.broadcast %273 : vector<1x128xf32> to vector<8x128xf32>
    %275 = arith.addf %271, %274 : vector<8x128xf32>
    %cst_96 = arith.constant 0.000000e+00 : f32
    %276 = vector.broadcast %cst_96 : f32 to vector<8x128xf32>
    %277 = arith.cmpf ogt, %275, %276 : vector<8x128xf32>
    %cst_97 = arith.constant 2.000000e-01 : f32
    %278 = vector.broadcast %cst_97 : f32 to vector<8x128xf32>
    %279 = arith.mulf %278, %275 : vector<8x128xf32>
    %280 = arith.select %277, %275, %279 : vector<8x128xi1>, vector<8x128xf32>
    %c3872 = arith.constant 3872 : index
    %c0_98 = arith.constant 0 : index
    %281 = vector.load %arg2[%c3872, %c0_98] : memref<3904x128xbf16, #tpu.memory_space<vmem>>, vector<1x128xbf16>
    %282 = arith.extf %281 : vector<1x128xbf16> to vector<1x128xf32>
    %c3888 = arith.constant 3888 : index
    %c0_99 = arith.constant 0 : index
    %283 = vector.load %arg2[%c3888, %c0_99] : memref<3904x128xbf16, #tpu.memory_space<vmem>>, vector<1x1xbf16>
    %284 = arith.extf %283 : vector<1x1xbf16> to vector<1x1xf32>
    %285 = vector.broadcast %282 : vector<1x128xf32> to vector<8x128xf32>
    %286 = arith.mulf %280, %285 : vector<8x128xf32>
    %cst_100 = arith.constant dense<0.000000e+00> : vector<8xf32>
    %287 = vector.multi_reduction <add>, %286, %cst_100 [1] : vector<8x128xf32> to vector<8xf32>
    %288 = vector.shape_cast %287 : vector<8xf32> to vector<8x1xf32>
    %289 = vector.broadcast %284 : vector<1x1xf32> to vector<8x1xf32>
    %290 = arith.addf %288, %289 : vector<8x1xf32>
    %291 = vector.shape_cast %290 : vector<8x1xf32> to vector<8x1xf32>
    %292 = vector.broadcast %291 : vector<8x1xf32> to vector<8x128xf32>
    %c0_101 = arith.constant 0 : index
    %c0_102 = arith.constant 0 : index
    %c0_103 = arith.constant 0 : index
    %293 = vector.load %arg3[%c0_101, %c0_102, %c0_103] : memref<1x8x128xf32, #tpu.memory_space<vmem>>, vector<1x8x128xf32>
    %294 = vector.shape_cast %293 : vector<1x8x128xf32> to vector<8x128xf32>
    %295 = vector.shape_cast %292 : vector<8x128xf32> to vector<1x8x128xf32>
    tpu.vector_store %arg3[%c0_101, %c0_102, %c0_103], %295 {strides = array<i32>} : memref<1x8x128xf32, #tpu.memory_space<vmem>>, vector<1x8x128xf32>,
    return
  }
  func.func @transform_0(%arg0: i32) -> (i32, i32) {
    %c0_i32 = arith.constant 0 : i32
    %c0_i32_0 = arith.constant 0 : i32
    return %arg0, %c0_i32 : i32, i32
  }
  func.func @transform_1(%arg0: i32) -> (i32, i32) {
    %c0_i32 = arith.constant 0 : i32
    %c0_i32_0 = arith.constant 0 : i32
    %c0_i32_1 = arith.constant 0 : i32
    return %c0_i32, %c0_i32_0 : i32, i32
  }
  func.func @transform_2(%arg0: i32) -> (i32, i32, i32) {
    %c0_i32 = arith.constant 0 : i32
    %c0_i32_0 = arith.constant 0 : i32
    %c0_i32_1 = arith.constant 0 : i32
    return %arg0, %c0_i32, %c0_i32_0 : i32, i32, i32
  }
}

</mosaic_0001>

<llo_original>
// kernel: _lambda_.1
$region0: #{_lambda_.1}
  #allocation0 [shape = 'u32[]', space=smem, size = 0x4, offset = 0x4, fixed_abs, tag = 'smem constant byte address 0x4 - core index']
  #allocation1 [shape = 'u32[144,128]{1,0:T(1,128)}', space=vmem, size = 0x12000, scoped, tag = 'internal scratch']
  %s0 = inlined_call_operand.vmem [shape: f32[32,64], index: 0, kind: input, shape index: {}]
  %s1 = inlined_call_operand.hbm [shape: bf16[3904,128], index: 1, kind: input, shape index: {}]
  %s2 = inlined_call_operand.vmem [shape: f32[1,8,128], index: 2, kind: output, shape index: {}]
  %s3 = sld [smem:[#allocation0]]
  $region22: #{_lambda_.1} parent=0
    _
  %s5 = ssub.s32 1, %s3
  %s6 = scalar_select 0, %s5, %s3
  $region1: #{_lambda_.1} parent=0
    #allocation2 [shape = 'u8[999424]{0}', space=vmem, size = 0xf4000, scoped, tag = 'input window, operand 1, single buffered']
    #allocation3 [shape = 's32[1]{0}', space=sflag, size = 0x4, scoped, tag = 'scoped memory for _lambda_.1']
    %7 = vsyncpa [#allocation3], 0
    // Predicated region
    $region2: #{_lambda_.1} parent=1 // pred_check
      _
    $region3: #{_lambda_.1} parent=1 // pred_check_branch
      %9 = sbr.rel (0) target = $region5
    $region4: #{_lambda_.1} parent=1 // pred_region
      _
    $region5: #{_lambda_.1} parent=1 // pred_fallthru
      _
    // Predicated region
    $region6: #{_lambda_.1} parent=1 // pred_check
      _
    $region7: #{_lambda_.1} parent=1 // pred_check_branch
      %11 = sbr.rel (0) target = $region9
    $region8: #{_lambda_.1} parent=1 // pred_region
      %s13 = ssub.s32 31232, 31232
      %14 = vsyncadd [#allocation3], %s13
      %s15 = sshll.u32 [#allocation2], 4
      %s16 = int_to_ptr.vmem [resolvable:$true] %s15
      %21 = dma.hbm_to_vmem [thread:$0]  %s1, 31232, %s16, [#allocation3], 64, 64, 4
    $region9: #{_lambda_.1} parent=1 // pred_fallthru
      _
    // Predicated region
    $region10: #{_lambda_.1} parent=1 // pred_check
      _
    $region11: #{_lambda_.1} parent=1 // pred_check_branch
      %23 = sbr.rel (0) target = $region13
    $region12: #{_lambda_.1} parent=1 // pred_region
      %24 = dma.done [#allocation3], 31232
    $region13: #{_lambda_.1} parent=1 // pred_fallthru
      _
    %v28 = vlaneseq
    %v29 = vshrl.u32 %v28, 7
    %v30 = vadd.s32 %v29, 8
    %v31 = vadd.s32 %v29, 16
    %v32 = vadd.s32 %v29, 24
    %v33 = vand.u32 %v29, 15
    %v34 = vand.u32 %v30, 15
    %v35 = vand.u32 %v31, 15
    %v36 = vand.u32 %v32, 15
    %v37 = vld [vmem:[%s0] sm:$0xff]
    %v38 = vld [vmem:[%s0 + $0x8] sm:$0xff]
    %v39 = vld [vmem:[%s0 + $0x10] sm:$0xff]
    %v40 = vld [vmem:[%s0 + $0x18] sm:$0xff]
    %v41 = vpack.c.bf16 %v38, %v37
    %v42 = vpack.c.bf16 %v40, %v39
    %vm43 = vsmask.f32 256
    %v45 = vshrl.u32 %v41, 16
    %v47 = vrot.slane %v45, 7
    %v48 = vshll.u32 %v41, 16
    %v50 = vor.u32 %v47, %v48
    %v52 = vshrl.u32 %v42, 16
    %v54 = vrot.slane %v52, 7
    %v55 = vshll.u32 %v42, 16
    %v57 = vor.u32 %v54, %v55
    %v58 = vsel %vm43, %v47, %v57
    %vm61 = vcmask 1040384
    %vm62 = vmand %vm61, %vm43
    %v63 = vsel %vm62, 0, %v50
    %vm64 = vcmp.ge.s32.totalorder %v33, 1
    %vm65 = vcmp.ge.s32.totalorder %v34, 1
    %vm66 = vcmp.ge.s32.totalorder %v35, 1
    %vm67 = vcmp.ge.s32.totalorder %v36, 1
    %vm68 = vcmp.le.s32.totalorder %v33, 16
    %vm69 = vcmp.le.s32.totalorder %v34, 16
    %vm70 = vcmp.le.s32.totalorder %v35, 16
    %vm71 = vcmp.le.s32.totalorder %v36, 16
    %vm72 = vmand %vm64, %vm68
    %vm73 = vmand %vm65, %vm69
    %vm74 = vmand %vm66, %vm70
    %vm75 = vmand %vm67, %vm71
    %vm76 = vmpackc.low %vm72, %vm72
    %vm77 = vmpackc.low %vm73, %vm73
    %vm78 = vmpackc.low %vm74, %vm74
    %vm79 = vmpackc.low %vm75, %vm75
    %v80 = vsel %vm76, 65537, 0
    %v81 = vsel %vm77, 65537, 0
    %v82 = vsel %vm78, 65537, 0
    %v83 = vsel %vm79, 65537, 0
    %v84 = vunpack.c.l.b16 %v80
    %v85 = vunpack.c.l.b16 %v81
    %v86 = vunpack.c.l.b16 %v82
    %v87 = vunpack.c.l.b16 %v83
    %v88 = vpack.c.b16 %v85, %v84
    %v89 = vpack.c.b16 %v87, %v86
    %vm90 = vcmp.ne.s16.totalorder %v88, 0
    %vm91 = vcmp.ne.s16.totalorder %v89, 0
    %v92 = vsel %vm90, %v63, 0
    %v93 = vsel %vm91, %v58, 0
    %vm94 = vsmask.f32 7424
    %v95 = vrot.slane %v48, 1
    %v96 = vor.u32 %v45, %v95
    %v97 = vrot.slane %v55, 1
    %v98 = vsel %vm94, %v96, %v97
    %v99 = vor.u32 %v52, %v97
    %vm102 = vcmask 1047552
    %vm103 = vmand %vm102, %vm94
    %v104 = vsel %vm103, %v99, 0
    %vm105 = vcmp.ge.s32.totalorder %v33, 0
    %vm106 = vcmp.ge.s32.totalorder %v34, 0
    %vm107 = vcmp.ge.s32.totalorder %v35, 0
    %vm108 = vcmp.ge.s32.totalorder %v36, 0
    %vm109 = vcmp.le.s32.totalorder %v33, 14
    %vm110 = vcmp.le.s32.totalorder %v34, 14
    %vm111 = vcmp.le.s32.totalorder %v35, 14
    %vm112 = vcmp.le.s32.totalorder %v36, 14
    %vm113 = vmand %vm105, %vm109
    %vm114 = vmand %vm106, %vm110
    %vm115 = vmand %vm107, %vm111
    %vm116 = vmand %vm108, %vm112
    %vm117 = vmpackc.low %vm113, %vm113
    %vm118 = vmpackc.low %vm114, %vm114
    %vm119 = vmpackc.low %vm115, %vm115
    %vm120 = vmpackc.low %vm116, %vm116
    %v121 = vsel %vm117, 65537, 0
    %v122 = vsel %vm118, 65537, 0
    %v123 = vsel %vm119, 65537, 0
    %v124 = vsel %vm120, 65537, 0
    %v125 = vunpack.c.l.b16 %v121
    %v126 = vunpack.c.l.b16 %v122
    %v127 = vunpack.c.l.b16 %v123
    %v128 = vunpack.c.l.b16 %v124
    %v129 = vpack.c.b16 %v126, %v125
    %v130 = vpack.c.b16 %v128, %v127
    %vm131 = vcmp.ne.s16.totalorder %v129, 0
    %vm132 = vcmp.ne.s16.totalorder %v130, 0
    %v133 = vsel %vm131, %v98, 0
    %v134 = vsel %vm132, %v104, 0
    %137 = vrot.lane.b32.xlu0 %v41, 64
    %v138 = vpop.permute.xlu0 %137
    %139 = vrot.lane.b32.xlu0 %v42, 64
    %v140 = vpop.permute.xlu0 %139
    %vm141 = vcmask 523264
    %v144 = vsel %vm141, %v92, %v138
    %v148 = vsel %vm141, %v93, %v140
    %v150 = vld [vmem:[#allocation2] sm:$0xf]
    %v151 = vld [vmem:[#allocation2 + $0x4] sm:$0xf]
    %v152 = vld [vmem:[#allocation2 + $0x8] sm:$0xf]
    %v153 = vld [vmem:[#allocation2 + $0xc] sm:$0xf]
    %v154 = vld [vmem:[#allocation2 + $0x10] sm:$0xf]
    %v155 = vld [vmem:[#allocation2 + $0x14] sm:$0xf]
    %v156 = vld [vmem:[#allocation2 + $0x18] sm:$0xf]
    %v157 = vld [vmem:[#allocation2 + $0x1c] sm:$0xf]
    %v158 = vld [vmem:[#allocation2 + $0x20] sm:$0xf]
    %v159 = vld [vmem:[#allocation2 + $0x24] sm:$0xf]
    %v160 = vld [vmem:[#allocation2 + $0x28] sm:$0xf]
    %v161 = vld [vmem:[#allocation2 + $0x2c] sm:$0xf]
    %v162 = vld [vmem:[#allocation2 + $0x30] sm:$0xf]
    %v163 = vld [vmem:[#allocation2 + $0x34] sm:$0xf]
    %v164 = vld [vmem:[#allocation2 + $0x38] sm:$0xf]
    %v165 = vld [vmem:[#allocation2 + $0x3c] sm:$0xf]
    %v166 = vld [vmem:[#allocation2 + $0x40] sm:$0xf]
    %v167 = vld [vmem:[#allocation2 + $0x44] sm:$0xf]
    %v168 = vld [vmem:[#allocation2 + $0x48] sm:$0xf]
    %v169 = vld [vmem:[#allocation2 + $0x4c] sm:$0xf]
    %v170 = vld [vmem:[#allocation2 + $0x50] sm:$0xf]
    %v171 = vld [vmem:[#allocation2 + $0x54] sm:$0xf]
    %v172 = vld [vmem:[#allocation2 + $0x58] sm:$0xf]
    %v173 = vld [vmem:[#allocation2 + $0x5c] sm:$0xf]
    %v174 = vld [vmem:[#allocation2 + $0x60] sm:$0x1]
    %v175 = vunpack.c.l.bf16 %v174
    %v176 = vlaneseq
    %v177 = vshrl.u32 %v176, 7
    %v178 = vsub.s32 0, %v177
    %v179 = vrot.slane %v175, %v178
    %v204 = vunpack.c.l.b16 %v150
    %v205 = vunpack.c.l.b16 %v151
    %v206 = vunpack.c.l.b16 %v152
    %v207 = vunpack.c.l.b16 %v153
    %v208 = vunpack.c.l.b16 %v154
    %v209 = vunpack.c.l.b16 %v155
    %v210 = vunpack.c.l.b16 %v156
    %v211 = vunpack.c.l.b16 %v157
    %v212 = vunpack.c.l.b16 %v158
    %v213 = vunpack.c.l.b16 %v159
    %v214 = vunpack.c.l.b16 %v160
    %v215 = vunpack.c.l.b16 %v161
    %v216 = vunpack.c.l.b16 %v162
    %v217 = vunpack.c.l.b16 %v163
    %v218 = vunpack.c.l.b16 %v164
    %v219 = vunpack.c.l.b16 %v165
    %v220 = vunpack.c.l.b16 %v166
    %v221 = vunpack.c.l.b16 %v167
    %v222 = vunpack.c.l.b16 %v168
    %v223 = vunpack.c.l.b16 %v169
    %v224 = vunpack.c.l.b16 %v170
    %v225 = vunpack.c.l.b16 %v171
    %v226 = vunpack.c.l.b16 %v172
    %v227 = vunpack.c.l.b16 %v173
    %v228 = vpack.c.b16 %v205, %v204
    %v229 = vpack.c.b16 %v207, %v206
    %v230 = vpack.c.b16 %v209, %v208
    %v231 = vpack.c.b16 %v211, %v210
    %v232 = vpack.c.b16 %v213, %v212
    %v233 = vpack.c.b16 %v215, %v214
    %v234 = vpack.c.b16 %v217, %v216
    %v235 = vpack.c.b16 %v219, %v218
    %v236 = vpack.c.b16 %v221, %v220
    %v237 = vpack.c.b16 %v223, %v222
    %v238 = vpack.c.b16 %v225, %v224
    %v239 = vpack.c.b16 %v227, %v226
    %v253 = vsel %vm141, %v133, 0
    %v256 = vsel %vm141, %v134, 0
    %258 = vmatprep.subr.bf16.mxu0 0
    %259 = vmatpush1.bf16.msra.mxu0 %v228
    %260 = vmatprep.subr.bf16.mxu0 0
    %261 = vmatpush1.bf16.msra.mxu0 %v229
    %262 = vmatprep.subr.bf16.mxu0 0
    %263 = vmatpush1.bf16.msra.mxu0 %v230
    %264 = vmatprep.subr.bf16.mxu0 0
    %265 = vmatpush1.bf16.msra.mxu0 %v231
    %266 = vmatprep.subr.bf16.mxu0 0
    %267 = vmatpush1.bf16.msra.mxu0 %v232
    %268 = vmatprep.subr.bf16.mxu0 0
    %269 = vmatpush1.bf16.msra.mxu0 %v233
    %270 = vmatprep.subr.bf16.mxu0 0
    %271 = vmatpush1.bf16.msra.mxu0 %v234
    %272 = vmatprep.subr.bf16.mxu0 0
    %273 = vmatpush1.bf16.msra.mxu0 %v235
    %274 = vmatprep.subr.bf16.mxu0 0
    %275 = vmatpush1.bf16.msra.mxu0 %v236
    %276 = vmatprep.subr.bf16.mxu0 0
    %277 = vmatpush1.bf16.msra.mxu0 %v237
    %278 = vmatprep.subr.bf16.mxu0 0
    %279 = vmatpush1.bf16.msra.mxu0 %v238
    %280 = vmatprep.subr.bf16.mxu0 0
    %281 = vmatpush1.bf16.msra.mxu0 %v239
    %282 = vmatprep.subr.bf16.mxu0 0
    %283 = vmatpush1.bf16.msra.mxu0 0
    %284 = vmatprep.subr.bf16.mxu0 0
    %285 = vmatpush1.bf16.msra.mxu0 0
    %286 = vmatprep.subr.bf16.mxu0 0
    %287 = vmatpush1.bf16.msra.mxu0 0
    %288 = vmatprep.subr.bf16.mxu0 0
    %289 = vmatpush1.bf16.msra.mxu0 0
    %290 = vmatprep.mubr.bf16.mxu0 %v253
    %291 = vmatmul.mubr.bf16.gmra.mrb[0].mxu0 %v144
    %v292 = vpop.f32.mrb[0].mxu0
    %v293 = vadd.f32 %v179, %v292
    %v294 = vpop.f32.mrb[0].mxu0
    %v295 = vpop.f32.mrb[0].mxu0
    %v296 = vadd.f32 %v179, %v295
    %v297 = vpop.f32.mrb[0].mxu0
    %298 = vmatprep.mubr.bf16.mxu0 %v256
    %299 = vmatmul.mubr.bf16.gmra.mrb[0].mxu0 %v148
    %v300 = vpop.f32.mrb[0].mxu0
    %v301 = vadd.f32 %v179, %v300
    %v302 = vpop.f32.mrb[0].mxu0
    %v303 = vpop.f32.mrb[0].mxu0
    %v304 = vadd.f32 %v179, %v303
    %v305 = vpop.f32.mrb[0].mxu0
    %306 = vdwg.mxu0
    %vm307 = vcmp.gt.f32.partialorder %v293, 0.0
    %vm308 = vcmp.gt.f32.partialorder %v296, 0.0
    %vm309 = vcmp.gt.f32.partialorder %v301, 0.0
    %vm310 = vcmp.gt.f32.partialorder %v304, 0.0
    %v311 = vmul.f32 %v293, 0.2
    %v312 = vmul.f32 %v296, 0.2
    %v313 = vmul.f32 %v301, 0.2
    %v314 = vmul.f32 %v304, 0.2
    %v315 = vsel %vm307, %v293, %v311
    %v316 = vsel %vm308, %v296, %v312
    %v317 = vsel %vm309, %v301, %v313
    %v318 = vsel %vm310, %v304, %v314
    %v319 = vpack.c.bf16 %v316, %v315
    %v320 = vpack.c.bf16 %v318, %v317
    %v322 = vshrl.u32 %v319, 16
    %v324 = vrot.slane %v322, 7
    %v325 = vshll.u32 %v319, 16
    %v327 = vor.u32 %v324, %v325
    %v329 = vshrl.u32 %v320, 16
    %v331 = vrot.slane %v329, 7
    %v332 = vshll.u32 %v320, 16
    %v334 = vor.u32 %v331, %v332
    %v335 = vsel %vm43, %v324, %v334
    %v338 = vsel %vm62, 0, %v327
    %v339 = vsel %vm90, %v338, 0
    %v340 = vsel %vm91, %v335, 0
    %v341 = vrot.slane %v325, 1
    %v342 = vor.u32 %v322, %v341
    %v343 = vrot.slane %v332, 1
    %v344 = vsel %vm94, %v342, %v343
    %v345 = vor.u32 %v329, %v343
    %v348 = vsel %vm103, %v345, 0
    %vm351 = vcmask 1046528
    %v352 = vrot.slane %v319, 1
    %v353 = vrot.slane %v320, 1
    %v354 = vsel %vm351, %v352, %v353
    %vm356 = vcmask 1046528
    %v359 = vsel %vm356, %v353, 0
    %vm361 = vcmp.le.s32.totalorder %v33, 13
    %vm362 = vcmp.le.s32.totalorder %v34, 13
    %vm363 = vcmp.le.s32.totalorder %v35, 13
    %vm364 = vcmp.le.s32.totalorder %v36, 13
    %vm365 = vmand %vm105, %vm361
    %vm366 = vmand %vm106, %vm362
    %vm367 = vmand %vm107, %vm363
    %vm368 = vmand %vm108, %vm364
    %vm369 = vmpackc.low %vm365, %vm365
    %vm370 = vmpackc.low %vm366, %vm366
    %vm371 = vmpackc.low %vm367, %vm367
    %vm372 = vmpackc.low %vm368, %vm368
    %v373 = vsel %vm369, 65537, 0
    %v374 = vsel %vm370, 65537, 0
    %v375 = vsel %vm371, 65537, 0
    %v376 = vsel %vm372, 65537, 0
    %v377 = vunpack.c.l.b16 %v373
    %v378 = vunpack.c.l.b16 %v374
    %v379 = vunpack.c.l.b16 %v375
    %v380 = vunpack.c.l.b16 %v376
    %v381 = vpack.c.b16 %v378, %v377
    %v382 = vpack.c.b16 %v380, %v379
    %vm383 = vcmp.ne.s16.totalorder %v381, 0
    %vm384 = vcmp.ne.s16.totalorder %v382, 0
    %v385 = vsel %vm383, %v354, 0
    %v386 = vsel %vm384, %v359, 0
    %v387 = vld [vmem:[#allocation2 + $0x68] sm:$0xf]
    %v388 = vld [vmem:[#allocation2 + $0x6c] sm:$0xf]
    %v389 = vld [vmem:[#allocation2 + $0x70] sm:$0xf]
    %v390 = vld [vmem:[#allocation2 + $0x74] sm:$0xf]
    %v391 = vld [vmem:[#allocation2 + $0x78] sm:$0xf]
    %v392 = vld [vmem:[#allocation2 + $0x7c] sm:$0xf]
    %v393 = vld [vmem:[#allocation2 + $0x80] sm:$0xf]
    %v394 = vld [vmem:[#allocation2 + $0x84] sm:$0xf]
    %v395 = vld [vmem:[#allocation2 + $0x88] sm:$0xf]
    %v396 = vld [vmem:[#allocation2 + $0x8c] sm:$0xf]
    %v397 = vld [vmem:[#allocation2 + $0x90] sm:$0xf]
    %v398 = vld [vmem:[#allocation2 + $0x94] sm:$0xf]
    %v399 = vld [vmem:[#allocation2 + $0x98] sm:$0xf]
    %v400 = vld [vmem:[#allocation2 + $0x9c] sm:$0xf]
    %v401 = vld [vmem:[#allocation2 + $0xa0] sm:$0xf]
    %v402 = vld [vmem:[#allocation2 + $0xa4] sm:$0xf]
    %v403 = vld [vmem:[#allocation2 + $0xa8] sm:$0xf]
    %v404 = vld [vmem:[#allocation2 + $0xac] sm:$0xf]
    %v405 = vld [vmem:[#allocation2 + $0xb0] sm:$0xf]
    %v406 = vld [vmem:[#allocation2 + $0xb4] sm:$0xf]
    %v407 = vld [vmem:[#allocation2 + $0xb8] sm:$0xf]
    %v408 = vld [vmem:[#allocation2 + $0xbc] sm:$0xf]
    %v409 = vld [vmem:[#allocation2 + $0xc0] sm:$0xf]
    %v410 = vld [vmem:[#allocation2 + $0xc4] sm:$0xf]
    %v411 = vld [vmem:[#allocation2 + $0xc8] sm:$0xf]
    %v412 = vld [vmem:[#allocation2 + $0xcc] sm:$0xf]
    %v413 = vld [vmem:[#allocation2 + $0xd0] sm:$0xf]
    %v414 = vld [vmem:[#allocation2 + $0xd4] sm:$0xf]
    %v415 = vld [vmem:[#allocation2 + $0xd8] sm:$0xf]
    %v416 = vld [vmem:[#allocation2 + $0xdc] sm:$0xf]
    %v417 = vld [vmem:[#allocation2 + $0xe0] sm:$0xf]
    %v418 = vld [vmem:[#allocation2 + $0xe4] sm:$0xf]
    %v419 = vld [vmem:[#allocation2 + $0xe8] sm:$0xf]
    %v420 = vld [vmem:[#allocation2 + $0xec] sm:$0xf]
    %v421 = vld [vmem:[#allocation2 + $0xf0] sm:$0xf]
    %v422 = vld [vmem:[#allocation2 + $0xf4] sm:$0xf]
    %v423 = vld [vmem:[#allocation2 + $0xf8] sm:$0xf]
    %v424 = vld [vmem:[#allocation2 + $0xfc] sm:$0xf]
    %v425 = vld [vmem:[#allocation2 + $0x100] sm:$0xf]
    %v426 = vld [vmem:[#allocation2 + $0x104] sm:$0xf]
    %v427 = vld [vmem:[#allocation2 + $0x108] sm:$0xf]
    %v428 = vld [vmem:[#allocation2 + $0x10c] sm:$0xf]
    %v429 = vld [vmem:[#allocation2 + $0x110] sm:$0xf]
    %v430 = vld [vmem:[#allocation2 + $0x114] sm:$0xf]
    %v431 = vld [vmem:[#allocation2 + $0x118] sm:$0xf]
    %v432 = vld [vmem:[#allocation2 + $0x11c] sm:$0xf]
    %v433 = vld [vmem:[#allocation2 + $0x120] sm:$0xf]
    %v434 = vld [vmem:[#allocation2 + $0x124] sm:$0xf]
    %v435 = vld [vmem:[#allocation2 + $0x128] sm:$0xf]
    %v436 = vld [vmem:[#allocation2 + $0x12c] sm:$0xf]
    %v437 = vld [vmem:[#allocation2 + $0x130] sm:$0xf]
    %v438 = vld [vmem:[#allocation2 + $0x134] sm:$0xf]
    %v439 = vld [vmem:[#allocation2 + $0x138] sm:$0xf]
    %v440 = vld [vmem:[#allocation2 + $0x13c] sm:$0xf]
    %v441 = vld [vmem:[#allocation2 + $0x140] sm:$0xf]
    %v442 = vld [vmem:[#allocation2 + $0x144] sm:$0xf]
    %v443 = vld [vmem:[#allocation2 + $0x148] sm:$0xf]
    %v444 = vld [vmem:[#allocation2 + $0x14c] sm:$0xf]
    %v445 = vld [vmem:[#allocation2 + $0x150] sm:$0xf]
    %v446 = vld [vmem:[#allocation2 + $0x154] sm:$0xf]
    %v447 = vld [vmem:[#allocation2 + $0x158] sm:$0xf]
    %v448 = vld [vmem:[#allocation2 + $0x15c] sm:$0xf]
    %v449 = vld [vmem:[#allocation2 + $0x160] sm:$0xf]
    %v450 = vld [vmem:[#allocation2 + $0x164] sm:$0xf]
    %v451 = vld [vmem:[#allocation2 + $0x168] sm:$0xf]
    %v452 = vld [vmem:[#allocation2 + $0x16c] sm:$0xf]
    %v453 = vld [vmem:[#allocation2 + $0x170] sm:$0xf]
    %v454 = vld [vmem:[#allocation2 + $0x174] sm:$0xf]
    %v455 = vld [vmem:[#allocation2 + $0x178] sm:$0xf]
    %v456 = vld [vmem:[#allocation2 + $0x17c] sm:$0xf]
    %v457 = vld [vmem:[#allocation2 + $0x180] sm:$0xf]
    %v458 = vld [vmem:[#allocation2 + $0x184] sm:$0xf]
    %v459 = vld [vmem:[#allocation2 + $0x188] sm:$0x1]
    %v460 = vunpack.c.l.bf16 %v459
    %v461 = vlaneseq
    %v462 = vshrl.u32 %v461, 7
    %v463 = vsub.s32 0, %v462
    %v464 = vrot.slane %v460, %v463
    %v537 = vunpack.c.l.b16 %v387
    %v538 = vunpack.c.l.b16 %v388
    %v539 = vunpack.c.l.b16 %v389
    %v540 = vunpack.c.l.b16 %v390
    %v541 = vunpack.c.l.b16 %v391
    %v542 = vunpack.c.l.b16 %v392
    %v543 = vunpack.c.l.b16 %v393
    %v544 = vunpack.c.l.b16 %v394
    %v545 = vunpack.c.l.b16 %v395
    %v546 = vunpack.c.l.b16 %v396
    %v547 = vunpack.c.l.b16 %v397
    %v548 = vunpack.c.l.b16 %v398
    %v549 = vunpack.c.l.b16 %v399
    %v550 = vunpack.c.l.b16 %v400
    %v551 = vunpack.c.l.b16 %v401
    %v552 = vunpack.c.l.b16 %v402
    %v553 = vunpack.c.l.b16 %v403
    %v554 = vunpack.c.l.b16 %v404
    %v555 = vunpack.c.l.b16 %v405
    %v556 = vunpack.c.l.b16 %v406
    %v557 = vunpack.c.l.b16 %v407
    %v558 = vunpack.c.l.b16 %v408
    %v559 = vunpack.c.l.b16 %v409
    %v560 = vunpack.c.l.b16 %v410
    %v561 = vunpack.c.l.b16 %v411
    %v562 = vunpack.c.l.b16 %v412
    %v563 = vunpack.c.l.b16 %v413
    %v564 = vunpack.c.l.b16 %v414
    %v565 = vunpack.c.l.b16 %v415
    %v566 = vunpack.c.l.b16 %v416
    %v567 = vunpack.c.l.b16 %v417
    %v568 = vunpack.c.l.b16 %v418
    %v569 = vunpack.c.l.b16 %v419
    %v570 = vunpack.c.l.b16 %v420
    %v571 = vunpack.c.l.b16 %v421
    %v572 = vunpack.c.l.b16 %v422
    %v573 = vunpack.c.l.b16 %v423
    %v574 = vunpack.c.l.b16 %v424
    %v575 = vunpack.c.l.b16 %v425
    %v576 = vunpack.c.l.b16 %v426
    %v577 = vunpack.c.l.b16 %v427
    %v578 = vunpack.c.l.b16 %v428
    %v579 = vunpack.c.l.b16 %v429
    %v580 = vunpack.c.l.b16 %v430
    %v581 = vunpack.c.l.b16 %v431
    %v582 = vunpack.c.l.b16 %v432
    %v583 = vunpack.c.l.b16 %v433
    %v584 = vunpack.c.l.b16 %v434
    %v585 = vunpack.c.l.b16 %v435
    %v586 = vunpack.c.l.b16 %v436
    %v587 = vunpack.c.l.b16 %v437
    %v588 = vunpack.c.l.b16 %v438
    %v589 = vunpack.c.l.b16 %v439
    %v590 = vunpack.c.l.b16 %v440
    %v591 = vunpack.c.l.b16 %v441
    %v592 = vunpack.c.l.b16 %v442
    %v593 = vunpack.c.l.b16 %v443
    %v594 = vunpack.c.l.b16 %v444
    %v595 = vunpack.c.l.b16 %v445
    %v596 = vunpack.c.l.b16 %v446
    %v597 = vunpack.c.l.b16 %v447
    %v598 = vunpack.c.l.b16 %v448
    %v599 = vunpack.c.l.b16 %v449
    %v600 = vunpack.c.l.b16 %v450
    %v601 = vunpack.c.l.b16 %v451
    %v602 = vunpack.c.l.b16 %v452
    %v603 = vunpack.c.l.b16 %v453
    %v604 = vunpack.c.l.b16 %v454
    %v605 = vunpack.c.l.b16 %v455
    %v606 = vunpack.c.l.b16 %v456
    %v607 = vunpack.c.l.b16 %v457
    %v608 = vunpack.c.l.b16 %v458
    %v609 = vpack.c.b16 %v538, %v537
    %v610 = vpack.c.b16 %v540, %v539
    %v611 = vpack.c.b16 %v542, %v541
    %v612 = vpack.c.b16 %v544, %v543
    %v613 = vpack.c.b16 %v546, %v545
    %v614 = vpack.c.b16 %v548, %v547
    %v615 = vpack.c.b16 %v550, %v549
    %v616 = vpack.c.b16 %v552, %v551
    %v617 = vpack.c.b16 %v554, %v553
    %v618 = vpack.c.b16 %v556, %v555
    %v619 = vpack.c.b16 %v558, %v557
    %v620 = vpack.c.b16 %v560, %v559
    %v621 = vpack.c.b16 %v562, %v561
    %v622 = vpack.c.b16 %v564, %v563
    %v623 = vpack.c.b16 %v566, %v565
    %v624 = vpack.c.b16 %v568, %v567
    %v625 = vpack.c.b16 %v570, %v569
    %v626 = vpack.c.b16 %v572, %v571
    %v627 = vpack.c.b16 %v574, %v573
    %v628 = vpack.c.b16 %v576, %v575
    %v629 = vpack.c.b16 %v578, %v577
    %v630 = vpack.c.b16 %v580, %v579
    %v631 = vpack.c.b16 %v582, %v581
    %v632 = vpack.c.b16 %v584, %v583
    %v633 = vpack.c.b16 %v586, %v585
    %v634 = vpack.c.b16 %v588, %v587
    %v635 = vpack.c.b16 %v590, %v589
    %v636 = vpack.c.b16 %v592, %v591
    %v637 = vpack.c.b16 %v594, %v593
    %v638 = vpack.c.b16 %v596, %v595
    %v639 = vpack.c.b16 %v598, %v597
    %v640 = vpack.c.b16 %v600, %v599
    %v641 = vpack.c.b16 %v602, %v601
    %v642 = vpack.c.b16 %v604, %v603
    %v643 = vpack.c.b16 %v606, %v605
    %v644 = vpack.c.b16 %v608, %v607
    %v681 = vsel %vm141, %v41, 0
    %v683 = vsel %vm141, %v42, 0
    %685 = vmatprep.subr.bf16.mxu0 0
    %686 = vmatpush1.bf16.msra.mxu0 %v609
    %687 = vmatprep.subr.bf16.mxu0 0
    %688 = vmatpush1.bf16.msra.mxu0 %v610
    %689 = vmatprep.subr.bf16.mxu0 0
    %690 = vmatpush1.bf16.msra.mxu0 %v611
    %691 = vmatprep.subr.bf16.mxu0 0
    %692 = vmatpush1.bf16.msra.mxu0 %v612
    %693 = vmatprep.subr.bf16.mxu0 0
    %694 = vmatpush1.bf16.msra.mxu0 %v613
    %695 = vmatprep.subr.bf16.mxu0 0
    %696 = vmatpush1.bf16.msra.mxu0 %v614
    %697 = vmatprep.subr.bf16.mxu0 0
    %698 = vmatpush1.bf16.msra.mxu0 %v615
    %699 = vmatprep.subr.bf16.mxu0 0
    %700 = vmatpush1.bf16.msra.mxu0 %v616
    %701 = vmatprep.subr.bf16.mxu0 0
    %702 = vmatpush1.bf16.msra.mxu0 %v617
    %703 = vmatprep.subr.bf16.mxu0 0
    %704 = vmatpush1.bf16.msra.mxu0 %v618
    %705 = vmatprep.subr.bf16.mxu0 0
    %706 = vmatpush1.bf16.msra.mxu0 %v619
    %707 = vmatprep.subr.bf16.mxu0 0
    %708 = vmatpush1.bf16.msra.mxu0 %v620
    %709 = vmatprep.subr.bf16.mxu0 0
    %710 = vmatpush1.bf16.msra.mxu0 %v621
    %711 = vmatprep.subr.bf16.mxu0 0
    %712 = vmatpush1.bf16.msra.mxu0 %v622
    %713 = vmatprep.subr.bf16.mxu0 0
    %714 = vmatpush1.bf16.msra.mxu0 %v623
    %715 = vmatprep.subr.bf16.mxu0 0
    %716 = vmatpush1.bf16.msra.mxu0 %v624
    %717 = vmatprep.mubr.bf16.mxu0 %v319
    %718 = vmatmul.mubr.bf16.gmra.mrb[0].mxu0 %v339
    %v719 = vpop.f32.mrb[0].mxu0
    %v720 = vadd.f32 %v464, %v719
    %v721 = vpop.f32.mrb[0].mxu0
    %v722 = vpop.f32.mrb[0].mxu0
    %v723 = vadd.f32 %v464, %v722
    %v724 = vpop.f32.mrb[0].mxu0
    %725 = vmatprep.mubr.bf16.mxu0 %v320
    %726 = vmatmul.mubr.bf16.gmra.mrb[0].mxu0 %v340
    %v727 = vpop.f32.mrb[0].mxu0
    %v728 = vadd.f32 %v464, %v727
    %v729 = vpop.f32.mrb[0].mxu0
    %v730 = vpop.f32.mrb[0].mxu0
    %v731 = vadd.f32 %v464, %v730
    %v732 = vpop.f32.mrb[0].mxu0
    %733 = vdwg.mxu0
    %734 = vmatprep.subr.bf16.mxu0 0
    %735 = vmatpush1.bf16.msra.mxu0 %v625
    %736 = vmatprep.subr.bf16.mxu0 0
    %737 = vmatpush1.bf16.msra.mxu0 %v626
    %738 = vmatprep.subr.bf16.mxu0 0
    %739 = vmatpush1.bf16.msra.mxu0 %v627
    %740 = vmatprep.subr.bf16.mxu0 0
    %741 = vmatpush1.bf16.msra.mxu0 %v628
    %742 = vmatprep.subr.bf16.mxu0 0
    %743 = vmatpush1.bf16.msra.mxu0 %v629
    %744 = vmatprep.subr.bf16.mxu0 0
    %745 = vmatpush1.bf16.msra.mxu0 %v630
    %746 = vmatprep.subr.bf16.mxu0 0
    %747 = vmatpush1.bf16.msra.mxu0 %v631
    %748 = vmatprep.subr.bf16.mxu0 0
    %749 = vmatpush1.bf16.msra.mxu0 %v632
    %750 = vmatprep.subr.bf16.mxu0 0
    %751 = vmatpush1.bf16.msra.mxu0 %v633
    %752 = vmatprep.subr.bf16.mxu0 0
    %753 = vmatpush1.bf16.msra.mxu0 %v634
    %754 = vmatprep.subr.bf16.mxu0 0
    %755 = vmatpush1.bf16.msra.mxu0 %v635
    %756 = vmatprep.subr.bf16.mxu0 0
    %757 = vmatpush1.bf16.msra.mxu0 %v636
    %758 = vmatprep.subr.bf16.mxu0 0
    %759 = vmatpush1.bf16.msra.mxu0 %v637
    %760 = vmatprep.subr.bf16.mxu0 0
    %761 = vmatpush1.bf16.msra.mxu0 %v638
    %762 = vmatprep.subr.bf16.mxu0 0
    %763 = vmatpush1.bf16.msra.mxu0 %v639
    %764 = vmatprep.subr.bf16.mxu0 0
    %765 = vmatpush1.bf16.msra.mxu0 %v640
    %766 = vmatprep.mubr.bf16.mxu0 %v385
    %767 = vmatmul.mubr.bf16.gmra.mrb[0].mxu0 %v344
    %v768 = vpop.f32.mrb[0].mxu0
    %v769 = vadd.f32 %v720, %v768
    %v770 = vpop.f32.mrb[0].mxu0
    %v771 = vpop.f32.mrb[0].mxu0
    %v772 = vadd.f32 %v723, %v771
    %v773 = vpop.f32.mrb[0].mxu0
    %774 = vmatprep.mubr.bf16.mxu0 %v386
    %775 = vmatmul.mubr.bf16.gmra.mrb[0].mxu0 %v348
    %v776 = vpop.f32.mrb[0].mxu0
    %v777 = vadd.f32 %v728, %v776
    %v778 = vpop.f32.mrb[0].mxu0
    %v779 = vpop.f32.mrb[0].mxu0
    %v780 = vadd.f32 %v731, %v779
    %v781 = vpop.f32.mrb[0].mxu0
    %782 = vdwg.mxu0
    %783 = vmatprep.subr.bf16.mxu0 0
    %784 = vmatpush1.bf16.msra.mxu0 %v641
    %785 = vmatprep.subr.bf16.mxu0 0
    %786 = vmatpush1.bf16.msra.mxu0 %v642
    %787 = vmatprep.subr.bf16.mxu0 0
    %788 = vmatpush1.bf16.msra.mxu0 %v643
    %789 = vmatprep.subr.bf16.mxu0 0
    %790 = vmatpush1.bf16.msra.mxu0 %v644
    %791 = vmatprep.subr.bf16.mxu0 0
    %792 = vmatpush1.bf16.msra.mxu0 0
    %793 = vmatprep.subr.bf16.mxu0 0
    %794 = vmatpush1.bf16.msra.mxu0 0
    %795 = vmatprep.subr.bf16.mxu0 0
    %796 = vmatpush1.bf16.msra.mxu0 0
    %797 = vmatprep.subr.bf16.mxu0 0
    %798 = vmatpush1.bf16.msra.mxu0 0
    %799 = vmatprep.subr.bf16.mxu0 0
    %800 = vmatpush1.bf16.msra.mxu0 0
    %801 = vmatprep.subr.bf16.mxu0 0
    %802 = vmatpush1.bf16.msra.mxu0 0
    %803 = vmatprep.subr.bf16.mxu0 0
    %804 = vmatpush1.bf16.msra.mxu0 0
    %805 = vmatprep.subr.bf16.mxu0 0
    %806 = vmatpush1.bf16.msra.mxu0 0
    %807 = vmatprep.subr.bf16.mxu0 0
    %808 = vmatpush1.bf16.msra.mxu0 0
    %809 = vmatprep.subr.bf16.mxu0 0
    %810 = vmatpush1.bf16.msra.mxu0 0
    %811 = vmatprep.subr.bf16.mxu0 0
    %812 = vmatpush1.bf16.msra.mxu0 0
    %813 = vmatprep.subr.bf16.mxu0 0
    %814 = vmatpush1.bf16.msra.mxu0 0
    %815 = vmatprep.mubr.bf16.mxu0 0
    %816 = vmatmul.mubr.bf16.gmra.mrb[0].mxu0 %v681
    %v817 = vpop.f32.mrb[0].mxu0
    %v818 = vadd.f32 %v769, %v817
    %v819 = vpop.f32.mrb[0].mxu0
    %v820 = vpop.f32.mrb[0].mxu0
    %v821 = vadd.f32 %v772, %v820
    %v822 = vpop.f32.mrb[0].mxu0
    %823 = vmatprep.mubr.bf16.mxu0 0
    %824 = vmatmul.mubr.bf16.gmra.mrb[0].mxu0 %v683
    %v825 = vpop.f32.mrb[0].mxu0
    %v826 = vadd.f32 %v777, %v825
    %v827 = vpop.f32.mrb[0].mxu0
    %v828 = vpop.f32.mrb[0].mxu0
    %v829 = vadd.f32 %v780, %v828
    %v830 = vpop.f32.mrb[0].mxu0
    %831 = vdwg.mxu0
    %vm832 = vcmp.gt.f32.partialorder %v818, 0.0
    %vm833 = vcmp.gt.f32.partialorder %v821, 0.0
    %vm834 = vcmp.gt.f32.partialorder %v826, 0.0
    %vm835 = vcmp.gt.f32.partialorder %v829, 0.0
    %v836 = vmul.f32 %v818, 0.2
    %v837 = vmul.f32 %v821, 0.2
    %v838 = vmul.f32 %v826, 0.2
    %v839 = vmul.f32 %v829, 0.2
    %v840 = vsel %vm832, %v818, %v836
    %v841 = vsel %vm833, %v821, %v837
    %v842 = vsel %vm834, %v826, %v838
    %v843 = vsel %vm835, %v829, %v839
    %v844 = vpack.c.bf16 %v841, %v840
    %v845 = vpack.c.bf16 %v843, %v842
    %v848 = vrot.slane %v844, 7
    %v849 = vrot.slane %v845, 7
    %v850 = vsel %vm61, %v848, %v849
    %vm852 = vcmask 1040384
    %v854 = vsel %vm852, 0, %v848
    %vm856 = vcmp.ge.s32.totalorder %v33, 2
    %vm857 = vcmp.ge.s32.totalorder %v34, 2
    %vm858 = vcmp.ge.s32.totalorder %v35, 2
    %vm859 = vcmp.ge.s32.totalorder %v36, 2
    %vm860 = vmand %vm856, %vm68
    %vm861 = vmand %vm857, %vm69
    %vm862 = vmand %vm858, %vm70
    %vm863 = vmand %vm859, %vm71
    %vm864 = vmpackc.low %vm860, %vm860
    %vm865 = vmpackc.low %vm861, %vm861
    %vm866 = vmpackc.low %vm862, %vm862
    %vm867 = vmpackc.low %vm863, %vm863
    %v868 = vsel %vm864, 65537, 0
    %v869 = vsel %vm865, 65537, 0
    %v870 = vsel %vm866, 65537, 0
    %v871 = vsel %vm867, 65537, 0
    %v872 = vunpack.c.l.b16 %v868
    %v873 = vunpack.c.l.b16 %v869
    %v874 = vunpack.c.l.b16 %v870
    %v875 = vunpack.c.l.b16 %v871
    %v876 = vpack.c.b16 %v873, %v872
    %v877 = vpack.c.b16 %v875, %v874
    %vm878 = vcmp.ne.s16.totalorder %v876, 0
    %vm879 = vcmp.ne.s16.totalorder %v877, 0
    %v880 = vsel %vm878, %v854, 0
    %v881 = vsel %vm879, %v850, 0
    %v882 = vrot.slane %v844, 1
    %v883 = vrot.slane %v845, 1
    %v884 = vsel %vm351, %v882, %v883
    %v887 = vsel %vm356, %v883, 0
    %vm889 = vcmp.le.s32.totalorder %v33, 12
    %vm890 = vcmp.le.s32.totalorder %v34, 12
    %vm891 = vcmp.le.s32.totalorder %v35, 12
    %vm892 = vcmp.le.s32.totalorder %v36, 12
    %vm893 = vmand %vm105, %vm889
    %vm894 = vmand %vm106, %vm890
    %vm895 = vmand %vm107, %vm891
    %vm896 = vmand %vm108, %vm892
    %vm897 = vmpackc.low %vm893, %vm893
    %vm898 = vmpackc.low %vm894, %vm894
    %vm899 = vmpackc.low %vm895, %vm895
    %vm900 = vmpackc.low %vm896, %vm896
    %v901 = vsel %vm897, 65537, 0
    %v902 = vsel %vm898, 65537, 0
    %v903 = vsel %vm899, 65537, 0
    %v904 = vsel %vm900, 65537, 0
    %v905 = vunpack.c.l.b16 %v901
    %v906 = vunpack.c.l.b16 %v902
    %v907 = vunpack.c.l.b16 %v903
    %v908 = vunpack.c.l.b16 %v904
    %v909 = vpack.c.b16 %v906, %v905
    %v910 = vpack.c.b16 %v908, %v907
    %vm911 = vcmp.ne.s16.totalorder %v909, 0
    %vm912 = vcmp.ne.s16.totalorder %v910, 0
    %v913 = vsel %vm911, %v884, 0
    %v914 = vsel %vm912, %v887, 0
    %v915 = vld [vmem:[#allocation2 + $0x190] sm:$0xf]
    %v916 = vld [vmem:[#allocation2 + $0x194] sm:$0xf]
    %v917 = vld [vmem:[#allocation2 + $0x198] sm:$0xf]
    %v918 = vld [vmem:[#allocation2 + $0x19c] sm:$0xf]
    %v919 = vld [vmem:[#allocation2 + $0x1a0] sm:$0xf]
    %v920 = vld [vmem:[#allocation2 + $0x1a4] sm:$0xf]
    %v921 = vld [vmem:[#allocation2 + $0x1a8] sm:$0xf]
    %v922 = vld [vmem:[#allocation2 + $0x1ac] sm:$0xf]
    %v923 = vld [vmem:[#allocation2 + $0x1b0] sm:$0xf]
    %v924 = vld [vmem:[#allocation2 + $0x1b4] sm:$0xf]
    %v925 = vld [vmem:[#allocation2 + $0x1b8] sm:$0xf]
    %v926 = vld [vmem:[#allocation2 + $0x1bc] sm:$0xf]
    %v927 = vld [vmem:[#allocation2 + $0x1c0] sm:$0xf]
    %v928 = vld [vmem:[#allocation2 + $0x1c4] sm:$0xf]
    %v929 = vld [vmem:[#allocation2 + $0x1c8] sm:$0xf]
    %v930 = vld [vmem:[#allocation2 + $0x1cc] sm:$0xf]
    %v931 = vld [vmem:[#allocation2 + $0x1d0] sm:$0xf]
    %v932 = vld [vmem:[#allocation2 + $0x1d4] sm:$0xf]
    %v933 = vld [vmem:[#allocation2 + $0x1d8] sm:$0xf]
    %v934 = vld [vmem:[#allocation2 + $0x1dc] sm:$0xf]
    %v935 = vld [vmem:[#allocation2 + $0x1e0] sm:$0xf]
    %v936 = vld [vmem:[#allocation2 + $0x1e4] sm:$0xf]
    %v937 = vld [vmem:[#allocation2 + $0x1e8] sm:$0xf]
    %v938 = vld [vmem:[#allocation2 + $0x1ec] sm:$0xf]
    %v939 = vld [vmem:[#allocation2 + $0x1f0] sm:$0xf]
    %v940 = vld [vmem:[#allocation2 + $0x1f4] sm:$0xf]
    %v941 = vld [vmem:[#allocation2 + $0x1f8] sm:$0xf]
    %v942 = vld [vmem:[#allocation2 + $0x1fc] sm:$0xf]
    %v943 = vld [vmem:[#allocation2 + $0x200] sm:$0xf]
    %v944 = vld [vmem:[#allocation2 + $0x204] sm:$0xf]
    %v945 = vld [vmem:[#allocation2 + $0x208] sm:$0xf]
    %v946 = vld [vmem:[#allocation2 + $0x20c] sm:$0xf]
    %v947 = vld [vmem:[#allocation2 + $0x210] sm:$0xf]
    %v948 = vld [vmem:[#allocation2 + $0x214] sm:$0xf]
    %v949 = vld [vmem:[#allocation2 + $0x218] sm:$0xf]
    %v950 = vld [vmem:[#allocation2 + $0x21c] sm:$0xf]
    %v951 = vld [vmem:[#allocation2 + $0x220] sm:$0xf]
    %v952 = vld [vmem:[#allocation2 + $0x224] sm:$0xf]
    %v953 = vld [vmem:[#allocation2 + $0x228] sm:$0xf]
    %v954 = vld [vmem:[#allocation2 + $0x22c] sm:$0xf]
    %v955 = vld [vmem:[#allocation2 + $0x230] sm:$0xf]
    %v956 = vld [vmem:[#allocation2 + $0x234] sm:$0xf]
    %v957 = vld [vmem:[#allocation2 + $0x238] sm:$0xf]
    %v958 = vld [vmem:[#allocation2 + $0x23c] sm:$0xf]
    %v959 = vld [vmem:[#allocation2 + $0x240] sm:$0xf]
    %v960 = vld [vmem:[#allocation2 + $0x244] sm:$0xf]
    %v961 = vld [vmem:[#allocation2 + $0x248] sm:$0xf]
    %v962 = vld [vmem:[#allocation2 + $0x24c] sm:$0xf]
    %v963 = vld [vmem:[#allocation2 + $0x250] sm:$0x1]
    %v964 = vunpack.c.l.bf16 %v963
    %v965 = vlaneseq
    %v966 = vshrl.u32 %v965, 7
    %v967 = vsub.s32 0, %v966
    %v968 = vrot.slane %v964, %v967
    %v1017 = vunpack.c.l.b16 %v915
    %v1018 = vunpack.c.l.b16 %v916
    %v1019 = vunpack.c.l.b16 %v917
    %v1020 = vunpack.c.l.b16 %v918
    %v1021 = vunpack.c.l.b16 %v919
    %v1022 = vunpack.c.l.b16 %v920
    %v1023 = vunpack.c.l.b16 %v921
    %v1024 = vunpack.c.l.b16 %v922
    %v1025 = vunpack.c.l.b16 %v923
    %v1026 = vunpack.c.l.b16 %v924
    %v1027 = vunpack.c.l.b16 %v925
    %v1028 = vunpack.c.l.b16 %v926
    %v1029 = vunpack.c.l.b16 %v927
    %v1030 = vunpack.c.l.b16 %v928
    %v1031 = vunpack.c.l.b16 %v929
    %v1032 = vunpack.c.l.b16 %v930
    %v1033 = vunpack.c.l.b16 %v931
    %v1034 = vunpack.c.l.b16 %v932
    %v1035 = vunpack.c.l.b16 %v933
    %v1036 = vunpack.c.l.b16 %v934
    %v1037 = vunpack.c.l.b16 %v935
    %v1038 = vunpack.c.l.b16 %v936
    %v1039 = vunpack.c.l.b16 %v937
    %v1040 = vunpack.c.l.b16 %v938
    %v1041 = vunpack.c.l.b16 %v939
    %v1042 = vunpack.c.l.b16 %v940
    %v1043 = vunpack.c.l.b16 %v941
    %v1044 = vunpack.c.l.b16 %v942
    %v1045 = vunpack.c.l.b16 %v943
    %v1046 = vunpack.c.l.b16 %v944
    %v1047 = vunpack.c.l.b16 %v945
    %v1048 = vunpack.c.l.b16 %v946
    %v1049 = vunpack.c.l.b16 %v947
    %v1050 = vunpack.c.l.b16 %v948
    %v1051 = vunpack.c.l.b16 %v949
    %v1052 = vunpack.c.l.b16 %v950
    %v1053 = vunpack.c.l.b16 %v951
    %v1054 = vunpack.c.l.b16 %v952
    %v1055 = vunpack.c.l.b16 %v953
    %v1056 = vunpack.c.l.b16 %v954
    %v1057 = vunpack.c.l.b16 %v955
    %v1058 = vunpack.c.l.b16 %v956
    %v1059 = vunpack.c.l.b16 %v957
    %v1060 = vunpack.c.l.b16 %v958
    %v1061 = vunpack.c.l.b16 %v959
    %v1062 = vunpack.c.l.b16 %v960
    %v1063 = vunpack.c.l.b16 %v961
    %v1064 = vunpack.c.l.b16 %v962
    %v1065 = vpack.c.b16 %v1018, %v1017
    %v1066 = vpack.c.b16 %v1020, %v1019
    %v1067 = vpack.c.b16 %v1022, %v1021
    %v1068 = vpack.c.b16 %v1024, %v1023
    %v1069 = vpack.c.b16 %v1026, %v1025
    %v1070 = vpack.c.b16 %v1028, %v1027
    %v1071 = vpack.c.b16 %v1030, %v1029
    %v1072 = vpack.c.b16 %v1032, %v1031
    %v1073 = vpack.c.b16 %v1034, %v1033
    %v1074 = vpack.c.b16 %v1036, %v1035
    %v1075 = vpack.c.b16 %v1038, %v1037
    %v1076 = vpack.c.b16 %v1040, %v1039
    %v1077 = vpack.c.b16 %v1042, %v1041
    %v1078 = vpack.c.b16 %v1044, %v1043
    %v1079 = vpack.c.b16 %v1046, %v1045
    %v1080 = vpack.c.b16 %v1048, %v1047
    %v1081 = vpack.c.b16 %v1050, %v1049
    %v1082 = vpack.c.b16 %v1052, %v1051
    %v1083 = vpack.c.b16 %v1054, %v1053
    %v1084 = vpack.c.b16 %v1056, %v1055
    %v1085 = vpack.c.b16 %v1058, %v1057
    %v1086 = vpack.c.b16 %v1060, %v1059
    %v1087 = vpack.c.b16 %v1062, %v1061
    %v1088 = vpack.c.b16 %v1064, %v1063
    %1113 = vmatprep.subr.bf16.mxu0 0
    %1114 = vmatpush1.bf16.msra.mxu0 %v1065
    %1115 = vmatprep.subr.bf16.mxu0 0
    %1116 = vmatpush1.bf16.msra.mxu0 %v1066
    %1117 = vmatprep.subr.bf16.mxu0 0
    %1118 = vmatpush1.bf16.msra.mxu0 %v1067
    %1119 = vmatprep.subr.bf16.mxu0 0
    %1120 = vmatpush1.bf16.msra.mxu0 %v1068
    %1121 = vmatprep.subr.bf16.mxu0 0
    %1122 = vmatpush1.bf16.msra.mxu0 %v1069
    %1123 = vmatprep.subr.bf16.mxu0 0
    %1124 = vmatpush1.bf16.msra.mxu0 %v1070
    %1125 = vmatprep.subr.bf16.mxu0 0
    %1126 = vmatpush1.bf16.msra.mxu0 %v1071
    %1127 = vmatprep.subr.bf16.mxu0 0
    %1128 = vmatpush1.bf16.msra.mxu0 %v1072
    %1129 = vmatprep.subr.bf16.mxu0 0
    %1130 = vmatpush1.bf16.msra.mxu0 %v1073
    %1131 = vmatprep.subr.bf16.mxu0 0
    %1132 = vmatpush1.bf16.msra.mxu0 %v1074
    %1133 = vmatprep.subr.bf16.mxu0 0
    %1134 = vmatpush1.bf16.msra.mxu0 %v1075
    %1135 = vmatprep.subr.bf16.mxu0 0
    %1136 = vmatpush1.bf16.msra.mxu0 %v1076
    %1137 = vmatprep.subr.bf16.mxu0 0
    %1138 = vmatpush1.bf16.msra.mxu0 %v1077
    %1139 = vmatprep.subr.bf16.mxu0 0
    %1140 = vmatpush1.bf16.msra.mxu0 %v1078
    %1141 = vmatprep.subr.bf16.mxu0 0
    %1142 = vmatpush1.bf16.msra.mxu0 %v1079
    %1143 = vmatprep.subr.bf16.mxu0 0
    %1144 = vmatpush1.bf16.msra.mxu0 %v1080
    %1145 = vmatprep.mubr.bf16.mxu0 %v844
    %1146 = vmatmul.mubr.bf16.gmra.mrb[0].mxu0 %v880
    %v1147 = vpop.f32.mrb[0].mxu0
    %v1148 = vadd.f32 %v968, %v1147
    %v1149 = vpop.f32.mrb[0].mxu0
    %v1150 = vpop.f32.mrb[0].mxu0
    %v1151 = vadd.f32 %v968, %v1150
    %v1152 = vpop.f32.mrb[0].mxu0
    %1153 = vmatprep.mubr.bf16.mxu0 %v845
    %1154 = vmatmul.mubr.bf16.gmra.mrb[0].mxu0 %v881
    %v1155 = vpop.f32.mrb[0].mxu0
    %v1156 = vadd.f32 %v968, %v1155
    %v1157 = vpop.f32.mrb[0].mxu0
    %v1158 = vpop.f32.mrb[0].mxu0
    %v1159 = vadd.f32 %v968, %v1158
    %v1160 = vpop.f32.mrb[0].mxu0
    %1161 = vdwg.mxu0
    %1162 = vmatprep.subr.bf16.mxu0 0
    %1163 = vmatpush1.bf16.msra.mxu0 %v1081
    %1164 = vmatprep.subr.bf16.mxu0 0
    %1165 = vmatpush1.bf16.msra.mxu0 %v1082
    %1166 = vmatprep.subr.bf16.mxu0 0
    %1167 = vmatpush1.bf16.msra.mxu0 %v1083
    %1168 = vmatprep.subr.bf16.mxu0 0
    %1169 = vmatpush1.bf16.msra.mxu0 %v1084
    %1170 = vmatprep.subr.bf16.mxu0 0
    %1171 = vmatpush1.bf16.msra.mxu0 %v1085
    %1172 = vmatprep.subr.bf16.mxu0 0
    %1173 = vmatpush1.bf16.msra.mxu0 %v1086
    %1174 = vmatprep.subr.bf16.mxu0 0
    %1175 = vmatpush1.bf16.msra.mxu0 %v1087
    %1176 = vmatprep.subr.bf16.mxu0 0
    %1177 = vmatpush1.bf16.msra.mxu0 %v1088
    %1178 = vmatprep.subr.bf16.mxu0 0
    %1179 = vmatpush1.bf16.msra.mxu0 0
    %1180 = vmatprep.subr.bf16.mxu0 0
    %1181 = vmatpush1.bf16.msra.mxu0 0
    %1182 = vmatprep.subr.bf16.mxu0 0
    %1183 = vmatpush1.bf16.msra.mxu0 0
    %1184 = vmatprep.subr.bf16.mxu0 0
    %1185 = vmatpush1.bf16.msra.mxu0 0
    %1186 = vmatprep.subr.bf16.mxu0 0
    %1187 = vmatpush1.bf16.msra.mxu0 0
    %1188 = vmatprep.subr.bf16.mxu0 0
    %1189 = vmatpush1.bf16.msra.mxu0 0
    %1190 = vmatprep.subr.bf16.mxu0 0
    %1191 = vmatpush1.bf16.msra.mxu0 0
    %1192 = vmatprep.subr.bf16.mxu0 0
    %1193 = vmatpush1.bf16.msra.mxu0 0
    %1194 = vmatprep.mubr.bf16.mxu0 0
    %1195 = vmatmul.mubr.bf16.gmra.mrb[0].mxu0 %v913
    %v1196 = vpop.f32.mrb[0].mxu0
    %v1197 = vadd.f32 %v1148, %v1196
    %v1198 = vpop.f32.mrb[0].mxu0
    %v1199 = vpop.f32.mrb[0].mxu0
    %v1200 = vadd.f32 %v1151, %v1199
    %v1201 = vpop.f32.mrb[0].mxu0
    %1202 = vmatprep.mubr.bf16.mxu0 0
    %1203 = vmatmul.mubr.bf16.gmra.mrb[0].mxu0 %v914
    %v1204 = vpop.f32.mrb[0].mxu0
    %v1205 = vadd.f32 %v1156, %v1204
    %v1206 = vpop.f32.mrb[0].mxu0
    %v1207 = vpop.f32.mrb[0].mxu0
    %v1208 = vadd.f32 %v1159, %v1207
    %v1209 = vpop.f32.mrb[0].mxu0
    %1210 = vdwg.mxu0
    %vm1211 = vcmp.gt.f32.partialorder %v1197, 0.0
    %vm1212 = vcmp.gt.f32.partialorder %v1200, 0.0
    %vm1213 = vcmp.gt.f32.partialorder %v1205, 0.0
    %vm1214 = vcmp.gt.f32.partialorder %v1208, 0.0
    %v1215 = vmul.f32 %v1197, 0.2
    %v1216 = vmul.f32 %v1200, 0.2
    %v1217 = vmul.f32 %v1205, 0.2
    %v1218 = vmul.f32 %v1208, 0.2
    %v1219 = vsel %vm1211, %v1197, %v1215
    %v1220 = vsel %vm1212, %v1200, %v1216
    %v1221 = vsel %vm1213, %v1205, %v1217
    %v1222 = vsel %vm1214, %v1208, %v1218
    %v1223 = vpack.c.bf16 %v1220, %v1219
    %v1224 = vpack.c.bf16 %v1222, %v1221
    %v1227 = vrot.slane %v1223, 7
    %v1228 = vrot.slane %v1224, 7
    %v1229 = vsel %vm61, %v1227, %v1228
    %v1232 = vsel %vm852, 0, %v1227
    %v1234 = vsel %vm878, %v1232, 0
    %v1235 = vsel %vm879, %v1229, 0
    %v1236 = vrot.slane %v1223, 1
    %v1237 = vrot.slane %v1224, 1
    %v1238 = vsel %vm351, %v1236, %v1237
    %v1241 = vsel %vm356, %v1237, 0
    %vm1243 = vcmask 1045504
    %v1244 = vrot.slane %v1223, 2
    %v1245 = vrot.slane %v1224, 2
    %v1246 = vsel %vm1243, %v1244, %v1245
    %vm1248 = vcmask 1045504
    %v1250 = vsel %vm1248, %v1245, 0
    %vm1252 = vcmp.le.s32.totalorder %v33, 10
    %vm1253 = vcmp.le.s32.totalorder %v34, 10
    %vm1254 = vcmp.le.s32.totalorder %v35, 10
    %vm1255 = vcmp.le.s32.totalorder %v36, 10
    %vm1256 = vmand %vm105, %vm1252
    %vm1257 = vmand %vm106, %vm1253
    %vm1258 = vmand %vm107, %vm1254
    %vm1259 = vmand %vm108, %vm1255
    %vm1260 = vmpackc.low %vm1256, %vm1256
    %vm1261 = vmpackc.low %vm1257, %vm1257
    %vm1262 = vmpackc.low %vm1258, %vm1258
    %vm1263 = vmpackc.low %vm1259, %vm1259
    %v1264 = vsel %vm1260, 65537, 0
    %v1265 = vsel %vm1261, 65537, 0
    %v1266 = vsel %vm1262, 65537, 0
    %v1267 = vsel %vm1263, 65537, 0
    %v1268 = vunpack.c.l.b16 %v1264
    %v1269 = vunpack.c.l.b16 %v1265
    %v1270 = vunpack.c.l.b16 %v1266
    %v1271 = vunpack.c.l.b16 %v1267
    %v1272 = vpack.c.b16 %v1269, %v1268
    %v1273 = vpack.c.b16 %v1271, %v1270
    %vm1274 = vcmp.ne.s16.totalorder %v1272, 0
    %vm1275 = vcmp.ne.s16.totalorder %v1273, 0
    %v1276 = vsel %vm1274, %v1246, 0
    %v1277 = vsel %vm1275, %v1250, 0
    %v1278 = vld [vmem:[#allocation2 + $0x258] sm:$0xf]
    %v1279 = vld [vmem:[#allocation2 + $0x25c] sm:$0xf]
    %v1280 = vld [vmem:[#allocation2 + $0x260] sm:$0xf]
    %v1281 = vld [vmem:[#allocation2 + $0x264] sm:$0xf]
    %v1282 = vld [vmem:[#allocation2 + $0x268] sm:$0xf]
    %v1283 = vld [vmem:[#allocation2 + $0x26c] sm:$0xf]
    %v1284 = vld [vmem:[#allocation2 + $0x270] sm:$0xf]
    %v1285 = vld [vmem:[#allocation2 + $0x274] sm:$0xf]
    %v1286 = vld [vmem:[#allocation2 + $0x278] sm:$0xf]
    %v1287 = vld [vmem:[#allocation2 + $0x27c] sm:$0xf]
    %v1288 = vld [vmem:[#allocation2 + $0x280] sm:$0xf]
    %v1289 = vld [vmem:[#allocation2 + $0x284] sm:$0xf]
    %v1290 = vld [vmem:[#allocation2 + $0x288] sm:$0xf]
    %v1291 = vld [vmem:[#allocation2 + $0x28c] sm:$0xf]
    %v1292 = vld [vmem:[#allocation2 + $0x290] sm:$0xf]
    %v1293 = vld [vmem:[#allocation2 + $0x294] sm:$0xf]
    %v1294 = vld [vmem:[#allocation2 + $0x298] sm:$0xf]
    %v1295 = vld [vmem:[#allocation2 + $0x29c] sm:$0xf]
    %v1296 = vld [vmem:[#allocation2 + $0x2a0] sm:$0xf]
    %v1297 = vld [vmem:[#allocation2 + $0x2a4] sm:$0xf]
    %v1298 = vld [vmem:[#allocation2 + $0x2a8] sm:$0xf]
    %v1299 = vld [vmem:[#allocation2 + $0x2ac] sm:$0xf]
    %v1300 = vld [vmem:[#allocation2 + $0x2b0] sm:$0xf]
    %v1301 = vld [vmem:[#allocation2 + $0x2b4] sm:$0xf]
    %v1302 = vld [vmem:[#allocation2 + $0x2b8] sm:$0xf]
    %v1303 = vld [vmem:[#allocation2 + $0x2bc] sm:$0xf]
    %v1304 = vld [vmem:[#allocation2 + $0x2c0] sm:$0xf]
    %v1305 = vld [vmem:[#allocation2 + $0x2c4] sm:$0xf]
    %v1306 = vld [vmem:[#allocation2 + $0x2c8] sm:$0xf]
    %v1307 = vld [vmem:[#allocation2 + $0x2cc] sm:$0xf]
    %v1308 = vld [vmem:[#allocation2 + $0x2d0] sm:$0xf]
    %v1309 = vld [vmem:[#allocation2 + $0x2d4] sm:$0xf]
    %v1310 = vld [vmem:[#allocation2 + $0x2d8] sm:$0xf]
    %v1311 = vld [vmem:[#allocation2 + $0x2dc] sm:$0xf]
    %v1312 = vld [vmem:[#allocation2 + $0x2e0] sm:$0xf]
    %v1313 = vld [vmem:[#allocation2 + $0x2e4] sm:$0xf]
    %v1314 = vld [vmem:[#allocation2 + $0x2e8] sm:$0xf]
    %v1315 = vld [vmem:[#allocation2 + $0x2ec] sm:$0xf]
    %v1316 = vld [vmem:[#allocation2 + $0x2f0] sm:$0xf]
    %v1317 = vld [vmem:[#allocation2 + $0x2f4] sm:$0xf]
    %v1318 = vld [vmem:[#allocation2 + $0x2f8] sm:$0xf]
    %v1319 = vld [vmem:[#allocation2 + $0x2fc] sm:$0xf]
    %v1320 = vld [vmem:[#allocation2 + $0x300] sm:$0xf]
    %v1321 = vld [vmem:[#allocation2 + $0x304] sm:$0xf]
    %v1322 = vld [vmem:[#allocation2 + $0x308] sm:$0xf]
    %v1323 = vld [vmem:[#allocation2 + $0x30c] sm:$0xf]
    %v1324 = vld [vmem:[#allocation2 + $0x310] sm:$0xf]
    %v1325 = vld [vmem:[#allocation2 + $0x314] sm:$0xf]
    %v1326 = vld [vmem:[#allocation2 + $0x318] sm:$0xf]
    %v1327 = vld [vmem:[#allocation2 + $0x31c] sm:$0xf]
    %v1328 = vld [vmem:[#allocation2 + $0x320] sm:$0xf]
    %v1329 = vld [vmem:[#allocation2 + $0x324] sm:$0xf]
    %v1330 = vld [vmem:[#allocation2 + $0x328] sm:$0xf]
    %v1331 = vld [vmem:[#allocation2 + $0x32c] sm:$0xf]
    %v1332 = vld [vmem:[#allocation2 + $0x330] sm:$0xf]
    %v1333 = vld [vmem:[#allocation2 + $0x334] sm:$0xf]
    %v1334 = vld [vmem:[#allocation2 + $0x338] sm:$0xf]
    %v1335 = vld [vmem:[#allocation2 + $0x33c] sm:$0xf]
    %v1336 = vld [vmem:[#allocation2 + $0x340] sm:$0xf]
    %v1337 = vld [vmem:[#allocation2 + $0x344] sm:$0xf]
    %v1338 = vld [vmem:[#allocation2 + $0x348] sm:$0xf]
    %v1339 = vld [vmem:[#allocation2 + $0x34c] sm:$0xf]
    %v1340 = vld [vmem:[#allocation2 + $0x350] sm:$0xf]
    %v1341 = vld [vmem:[#allocation2 + $0x354] sm:$0xf]
    %v1342 = vld [vmem:[#allocation2 + $0x358] sm:$0xf]
    %v1343 = vld [vmem:[#allocation2 + $0x35c] sm:$0xf]
    %v1344 = vld [vmem:[#allocation2 + $0x360] sm:$0xf]
    %v1345 = vld [vmem:[#allocation2 + $0x364] sm:$0xf]
    %v1346 = vld [vmem:[#allocation2 + $0x368] sm:$0xf]
    %v1347 = vld [vmem:[#allocation2 + $0x36c] sm:$0xf]
    %v1348 = vld [vmem:[#allocation2 + $0x370] sm:$0xf]
    %v1349 = vld [vmem:[#allocation2 + $0x374] sm:$0xf]
    %v1350 = vld [vmem:[#allocation2 + $0x378] sm:$0xf]
    %v1351 = vld [vmem:[#allocation2 + $0x37c] sm:$0xf]
    %v1352 = vld [vmem:[#allocation2 + $0x380] sm:$0xf]
    %v1353 = vld [vmem:[#allocation2 + $0x384] sm:$0xf]
    %v1354 = vld [vmem:[#allocation2 + $0x388] sm:$0xf]
    %v1355 = vld [vmem:[#allocation2 + $0x38c] sm:$0xf]
    %v1356 = vld [vmem:[#allocation2 + $0x390] sm:$0xf]
    %v1357 = vld [vmem:[#allocation2 + $0x394] sm:$0xf]
    %v1358 = vld [vmem:[#allocation2 + $0x398] sm:$0x1]
    %v1359 = vunpack.c.l.bf16 %v1358
    %v1360 = vlaneseq
    %v1361 = vshrl.u32 %v1360, 7
    %v1362 = vsub.s32 0, %v1361
    %v1363 = vrot.slane %v1359, %v1362
    %v1444 = vunpack.c.l.b16 %v1278
    %v1445 = vunpack.c.l.b16 %v1279
    %v1446 = vunpack.c.l.b16 %v1280
    %v1447 = vunpack.c.l.b16 %v1281
    %v1448 = vunpack.c.l.b16 %v1282
    %v1449 = vunpack.c.l.b16 %v1283
    %v1450 = vunpack.c.l.b16 %v1284
    %v1451 = vunpack.c.l.b16 %v1285
    %v1452 = vunpack.c.l.b16 %v1286
    %v1453 = vunpack.c.l.b16 %v1287
    %v1454 = vunpack.c.l.b16 %v1288
    %v1455 = vunpack.c.l.b16 %v1289
    %v1456 = vunpack.c.l.b16 %v1290
    %v1457 = vunpack.c.l.b16 %v1291
    %v1458 = vunpack.c.l.b16 %v1292
    %v1459 = vunpack.c.l.b16 %v1293
    %v1460 = vunpack.c.l.b16 %v1294
    %v1461 = vunpack.c.l.b16 %v1295
    %v1462 = vunpack.c.l.b16 %v1296
    %v1463 = vunpack.c.l.b16 %v1297
    %v1464 = vunpack.c.l.b16 %v1298
    %v1465 = vunpack.c.l.b16 %v1299
    %v1466 = vunpack.c.l.b16 %v1300
    %v1467 = vunpack.c.l.b16 %v1301
    %v1468 = vunpack.c.l.b16 %v1302
    %v1469 = vunpack.c.l.b16 %v1303
    %v1470 = vunpack.c.l.b16 %v1304
    %v1471 = vunpack.c.l.b16 %v1305
    %v1472 = vunpack.c.l.b16 %v1306
    %v1473 = vunpack.c.l.b16 %v1307
    %v1474 = vunpack.c.l.b16 %v1308
    %v1475 = vunpack.c.l.b16 %v1309
    %v1476 = vunpack.c.l.b16 %v1310
    %v1477 = vunpack.c.l.b16 %v1311
    %v1478 = vunpack.c.l.b16 %v1312
    %v1479 = vunpack.c.l.b16 %v1313
    %v1480 = vunpack.c.l.b16 %v1314
    %v1481 = vunpack.c.l.b16 %v1315
    %v1482 = vunpack.c.l.b16 %v1316
    %v1483 = vunpack.c.l.b16 %v1317
    %v1484 = vunpack.c.l.b16 %v1318
    %v1485 = vunpack.c.l.b16 %v1319
    %v1486 = vunpack.c.l.b16 %v1320
    %v1487 = vunpack.c.l.b16 %v1321
    %v1488 = vunpack.c.l.b16 %v1322
    %v1489 = vunpack.c.l.b16 %v1323
    %v1490 = vunpack.c.l.b16 %v1324
    %v1491 = vunpack.c.l.b16 %v1325
    %v1492 = vunpack.c.l.b16 %v1326
    %v1493 = vunpack.c.l.b16 %v1327
    %v1494 = vunpack.c.l.b16 %v1328
    %v1495 = vunpack.c.l.b16 %v1329
    %v1496 = vunpack.c.l.b16 %v1330
    %v1497 = vunpack.c.l.b16 %v1331
    %v1498 = vunpack.c.l.b16 %v1332
    %v1499 = vunpack.c.l.b16 %v1333
    %v1500 = vunpack.c.l.b16 %v1334
    %v1501 = vunpack.c.l.b16 %v1335
    %v1502 = vunpack.c.l.b16 %v1336
    %v1503 = vunpack.c.l.b16 %v1337
    %v1504 = vunpack.c.l.b16 %v1338
    %v1505 = vunpack.c.l.b16 %v1339
    %v1506 = vunpack.c.l.b16 %v1340
    %v1507 = vunpack.c.l.b16 %v1341
    %v1508 = vunpack.c.l.b16 %v1342
    %v1509 = vunpack.c.l.b16 %v1343
    %v1510 = vunpack.c.l.b16 %v1344
    %v1511 = vunpack.c.l.b16 %v1345
    %v1512 = vunpack.c.l.b16 %v1346
    %v1513 = vunpack.c.l.b16 %v1347
    %v1514 = vunpack.c.l.b16 %v1348
    %v1515 = vunpack.c.l.b16 %v1349
    %v1516 = vunpack.c.l.b16 %v1350
    %v1517 = vunpack.c.l.b16 %v1351
    %v1518 = vunpack.c.l.b16 %v1352
    %v1519 = vunpack.c.l.b16 %v1353
    %v1520 = vunpack.c.l.b16 %v1354
    %v1521 = vunpack.c.l.b16 %v1355
    %v1522 = vunpack.c.l.b16 %v1356
    %v1523 = vunpack.c.l.b16 %v1357
    %v1524 = vpack.c.b16 %v1445, %v1444
    %v1525 = vpack.c.b16 %v1447, %v1446
    %v1526 = vpack.c.b16 %v1449, %v1448
    %v1527 = vpack.c.b16 %v1451, %v1450
    %v1528 = vpack.c.b16 %v1453, %v1452
    %v1529 = vpack.c.b16 %v1455, %v1454
    %v1530 = vpack.c.b16 %v1457, %v1456
    %v1531 = vpack.c.b16 %v1459, %v1458
    %v1532 = vpack.c.b16 %v1461, %v1460
    %v1533 = vpack.c.b16 %v1463, %v1462
    %v1534 = vpack.c.b16 %v1465, %v1464
    %v1535 = vpack.c.b16 %v1467, %v1466
    %v1536 = vpack.c.b16 %v1469, %v1468
    %v1537 = vpack.c.b16 %v1471, %v1470
    %v1538 = vpack.c.b16 %v1473, %v1472
    %v1539 = vpack.c.b16 %v1475, %v1474
    %v1540 = vpack.c.b16 %v1477, %v1476
    %v1541 = vpack.c.b16 %v1479, %v1478
    %v1542 = vpack.c.b16 %v1481, %v1480
    %v1543 = vpack.c.b16 %v1483, %v1482
    %v1544 = vpack.c.b16 %v1485, %v1484
    %v1545 = vpack.c.b16 %v1487, %v1486
    %v1546 = vpack.c.b16 %v1489, %v1488
    %v1547 = vpack.c.b16 %v1491, %v1490
    %v1548 = vpack.c.b16 %v1493, %v1492
    %v1549 = vpack.c.b16 %v1495, %v1494
    %v1550 = vpack.c.b16 %v1497, %v1496
    %v1551 = vpack.c.b16 %v1499, %v1498
    %v1552 = vpack.c.b16 %v1501, %v1500
    %v1553 = vpack.c.b16 %v1503, %v1502
    %v1554 = vpack.c.b16 %v1505, %v1504
    %v1555 = vpack.c.b16 %v1507, %v1506
    %v1556 = vpack.c.b16 %v1509, %v1508
    %v1557 = vpack.c.b16 %v1511, %v1510
    %v1558 = vpack.c.b16 %v1513, %v1512
    %v1559 = vpack.c.b16 %v1515, %v1514
    %v1560 = vpack.c.b16 %v1517, %v1516
    %v1561 = vpack.c.b16 %v1519, %v1518
    %v1562 = vpack.c.b16 %v1521, %v1520
    %v1563 = vpack.c.b16 %v1523, %v1522
    %1604 = vmatprep.subr.bf16.mxu0 0
    %1605 = vmatpush1.bf16.msra.mxu0 %v1524
    %1606 = vmatprep.subr.bf16.mxu0 0
    %1607 = vmatpush1.bf16.msra.mxu0 %v1525
    %1608 = vmatprep.subr.bf16.mxu0 0
    %1609 = vmatpush1.bf16.msra.mxu0 %v1526
    %1610 = vmatprep.subr.bf16.mxu0 0
    %1611 = vmatpush1.bf16.msra.mxu0 %v1527
    %1612 = vmatprep.subr.bf16.mxu0 0
    %1613 = vmatpush1.bf16.msra.mxu0 %v1528
    %1614 = vmatprep.subr.bf16.mxu0 0
    %1615 = vmatpush1.bf16.msra.mxu0 %v1529
    %1616 = vmatprep.subr.bf16.mxu0 0
    %1617 = vmatpush1.bf16.msra.mxu0 %v1530
    %1618 = vmatprep.subr.bf16.mxu0 0
    %1619 = vmatpush1.bf16.msra.mxu0 %v1531
    %1620 = vmatprep.subr.bf16.mxu0 0
    %1621 = vmatpush1.bf16.msra.mxu0 %v1532
    %1622 = vmatprep.subr.bf16.mxu0 0
    %1623 = vmatpush1.bf16.msra.mxu0 %v1533
    %1624 = vmatprep.subr.bf16.mxu0 0
    %1625 = vmatpush1.bf16.msra.mxu0 %v1534
    %1626 = vmatprep.subr.bf16.mxu0 0
    %1627 = vmatpush1.bf16.msra.mxu0 %v1535
    %1628 = vmatprep.subr.bf16.mxu0 0
    %1629 = vmatpush1.bf16.msra.mxu0 %v1536
    %1630 = vmatprep.subr.bf16.mxu0 0
    %1631 = vmatpush1.bf16.msra.mxu0 %v1537
    %1632 = vmatprep.subr.bf16.mxu0 0
    %1633 = vmatpush1.bf16.msra.mxu0 %v1538
    %1634 = vmatprep.subr.bf16.mxu0 0
    %1635 = vmatpush1.bf16.msra.mxu0 %v1539
    %1636 = vmatprep.mubr.bf16.mxu0 %v1223
    %1637 = vmatmul.mubr.bf16.gmra.mrb[0].mxu0 %v1234
    %v1638 = vpop.f32.mrb[0].mxu0
    %v1639 = vadd.f32 %v1363, %v1638
    %v1640 = vpop.f32.mrb[0].mxu0
    %v1641 = vpop.f32.mrb[0].mxu0
    %v1642 = vadd.f32 %v1363, %v1641
    %v1643 = vpop.f32.mrb[0].mxu0
    %1644 = vmatprep.mubr.bf16.mxu0 %v1224
    %1645 = vmatmul.mubr.bf16.gmra.mrb[0].mxu0 %v1235
    %v1646 = vpop.f32.mrb[0].mxu0
    %v1647 = vadd.f32 %v1363, %v1646
    %v1648 = vpop.f32.mrb[0].mxu0
    %v1649 = vpop.f32.mrb[0].mxu0
    %v1650 = vadd.f32 %v1363, %v1649
    %v1651 = vpop.f32.mrb[0].mxu0
    %1652 = vdwg.mxu0
    %1653 = vmatprep.subr.bf16.mxu0 0
    %1654 = vmatpush1.bf16.msra.mxu0 %v1540
    %1655 = vmatprep.subr.bf16.mxu0 0
    %1656 = vmatpush1.bf16.msra.mxu0 %v1541
    %1657 = vmatprep.subr.bf16.mxu0 0
    %1658 = vmatpush1.bf16.msra.mxu0 %v1542
    %1659 = vmatprep.subr.bf16.mxu0 0
    %1660 = vmatpush1.bf16.msra.mxu0 %v1543
    %1661 = vmatprep.subr.bf16.mxu0 0
    %1662 = vmatpush1.bf16.msra.mxu0 %v1544
    %1663 = vmatprep.subr.bf16.mxu0 0
    %1664 = vmatpush1.bf16.msra.mxu0 %v1545
    %1665 = vmatprep.subr.bf16.mxu0 0
    %1666 = vmatpush1.bf16.msra.mxu0 %v1546
    %1667 = vmatprep.subr.bf16.mxu0 0
    %1668 = vmatpush1.bf16.msra.mxu0 %v1547
    %1669 = vmatprep.subr.bf16.mxu0 0
    %1670 = vmatpush1.bf16.msra.mxu0 %v1548
    %1671 = vmatprep.subr.bf16.mxu0 0
    %1672 = vmatpush1.bf16.msra.mxu0 %v1549
    %1673 = vmatprep.subr.bf16.mxu0 0
    %1674 = vmatpush1.bf16.msra.mxu0 %v1550
    %1675 = vmatprep.subr.bf16.mxu0 0
    %1676 = vmatpush1.bf16.msra.mxu0 %v1551
    %1677 = vmatprep.subr.bf16.mxu0 0
    %1678 = vmatpush1.bf16.msra.mxu0 %v1552
    %1679 = vmatprep.subr.bf16.mxu0 0
    %1680 = vmatpush1.bf16.msra.mxu0 %v1553
    %1681 = vmatprep.subr.bf16.mxu0 0
    %1682 = vmatpush1.bf16.msra.mxu0 %v1554
    %1683 = vmatprep.subr.bf16.mxu0 0
    %1684 = vmatpush1.bf16.msra.mxu0 %v1555
    %1685 = vmatprep.mubr.bf16.mxu0 %v1276
    %1686 = vmatmul.mubr.bf16.gmra.mrb[0].mxu0 %v1238
    %v1687 = vpop.f32.mrb[0].mxu0
    %v1688 = vadd.f32 %v1639, %v1687
    %v1689 = vpop.f32.mrb[0].mxu0
    %v1690 = vpop.f32.mrb[0].mxu0
    %v1691 = vadd.f32 %v1642, %v1690
    %v1692 = vpop.f32.mrb[0].mxu0
    %1693 = vmatprep.mubr.bf16.mxu0 %v1277
    %1694 = vmatmul.mubr.bf16.gmra.mrb[0].mxu0 %v1241
    %v1695 = vpop.f32.mrb[0].mxu0
    %v1696 = vadd.f32 %v1647, %v1695
    %v1697 = vpop.f32.mrb[0].mxu0
    %v1698 = vpop.f32.mrb[0].mxu0
    %v1699 = vadd.f32 %v1650, %v1698
    %v1700 = vpop.f32.mrb[0].mxu0
    %1701 = vdwg.mxu0
    %1702 = vmatprep.subr.bf16.mxu0 0
    %1703 = vmatpush1.bf16.msra.mxu0 %v1556
    %1704 = vmatprep.subr.bf16.mxu0 0
    %1705 = vmatpush1.bf16.msra.mxu0 %v1557
    %1706 = vmatprep.subr.bf16.mxu0 0
    %1707 = vmatpush1.bf16.msra.mxu0 %v1558
    %1708 = vmatprep.subr.bf16.mxu0 0
    %1709 = vmatpush1.bf16.msra.mxu0 %v1559
    %1710 = vmatprep.subr.bf16.mxu0 0
    %1711 = vmatpush1.bf16.msra.mxu0 %v1560
    %1712 = vmatprep.subr.bf16.mxu0 0
    %1713 = vmatpush1.bf16.msra.mxu0 %v1561
    %1714 = vmatprep.subr.bf16.mxu0 0
    %1715 = vmatpush1.bf16.msra.mxu0 %v1562
    %1716 = vmatprep.subr.bf16.mxu0 0
    %1717 = vmatpush1.bf16.msra.mxu0 %v1563
    %1718 = vmatprep.subr.bf16.mxu0 0
    %1719 = vmatpush1.bf16.msra.mxu0 0
    %1720 = vmatprep.subr.bf16.mxu0 0
    %1721 = vmatpush1.bf16.msra.mxu0 0
    %1722 = vmatprep.subr.bf16.mxu0 0
    %1723 = vmatpush1.bf16.msra.mxu0 0
    %1724 = vmatprep.subr.bf16.mxu0 0
    %1725 = vmatpush1.bf16.msra.mxu0 0
    %1726 = vmatprep.subr.bf16.mxu0 0
    %1727 = vmatpush1.bf16.msra.mxu0 0
    %1728 = vmatprep.subr.bf16.mxu0 0
    %1729 = vmatpush1.bf16.msra.mxu0 0
    %1730 = vmatprep.subr.bf16.mxu0 0
    %1731 = vmatpush1.bf16.msra.mxu0 0
    %1732 = vmatprep.subr.bf16.mxu0 0
    %1733 = vmatpush1.bf16.msra.mxu0 0
    %1734 = vmatprep.mubr.bf16.mxu0 0
    %1735 = vmatmul.mubr.bf16.gmra.mrb[0].mxu0 %v844
    %v1736 = vpop.f32.mrb[0].mxu0
    %v1737 = vadd.f32 %v1688, %v1736
    %v1738 = vpop.f32.mrb[0].mxu0
    %v1739 = vpop.f32.mrb[0].mxu0
    %v1740 = vadd.f32 %v1691, %v1739
    %v1741 = vpop.f32.mrb[0].mxu0
    %1742 = vmatprep.mubr.bf16.mxu0 0
    %1743 = vmatmul.mubr.bf16.gmra.mrb[0].mxu0 %v845
    %v1744 = vpop.f32.mrb[0].mxu0
    %v1745 = vadd.f32 %v1696, %v1744
    %v1746 = vpop.f32.mrb[0].mxu0
    %v1747 = vpop.f32.mrb[0].mxu0
    %v1748 = vadd.f32 %v1699, %v1747
    %v1749 = vpop.f32.mrb[0].mxu0
    %1750 = vdwg.mxu0
    %vm1751 = vcmp.gt.f32.partialorder %v1737, 0.0
    %vm1752 = vcmp.gt.f32.partialorder %v1740, 0.0
    %vm1753 = vcmp.gt.f32.partialorder %v1745, 0.0
    %vm1754 = vcmp.gt.f32.partialorder %v1748, 0.0
    %v1755 = vmul.f32 %v1737, 0.2
    %v1756 = vmul.f32 %v1740, 0.2
    %v1757 = vmul.f32 %v1745, 0.2
    %v1758 = vmul.f32 %v1748, 0.2
    %v1759 = vsel %vm1751, %v1737, %v1755
    %v1760 = vsel %vm1752, %v1740, %v1756
    %v1761 = vsel %vm1753, %v1745, %v1757
    %v1762 = vsel %vm1754, %v1748, %v1758
    %v1763 = vpack.c.bf16 %v1760, %v1759
    %v1764 = vpack.c.bf16 %v1762, %v1761
    %vm1767 = vcmask 1041408
    %v1768 = vrot.slane %v1763, 6
    %v1769 = vrot.slane %v1764, 6
    %v1770 = vsel %vm1767, %v1768, %v1769
    %vm1772 = vcmask 1041408
    %v1774 = vsel %vm1772, 0, %v1768
    %vm1776 = vcmp.ge.s32.totalorder %v33, 4
    %vm1777 = vcmp.ge.s32.totalorder %v34, 4
    %vm1778 = vcmp.ge.s32.totalorder %v35, 4
    %vm1779 = vcmp.ge.s32.totalorder %v36, 4
    %vm1780 = vmand %vm1776, %vm68
    %vm1781 = vmand %vm1777, %vm69
    %vm1782 = vmand %vm1778, %vm70
    %vm1783 = vmand %vm1779, %vm71
    %vm1784 = vmpackc.low %vm1780, %vm1780
    %vm1785 = vmpackc.low %vm1781, %vm1781
    %vm1786 = vmpackc.low %vm1782, %vm1782
    %vm1787 = vmpackc.low %vm1783, %vm1783
    %v1788 = vsel %vm1784, 65537, 0
    %v1789 = vsel %vm1785, 65537, 0
    %v1790 = vsel %vm1786, 65537, 0
    %v1791 = vsel %vm1787, 65537, 0
    %v1792 = vunpack.c.l.b16 %v1788
    %v1793 = vunpack.c.l.b16 %v1789
    %v1794 = vunpack.c.l.b16 %v1790
    %v1795 = vunpack.c.l.b16 %v1791
    %v1796 = vpack.c.b16 %v1793, %v1792
    %v1797 = vpack.c.b16 %v1795, %v1794
    %vm1798 = vcmp.ne.s16.totalorder %v1796, 0
    %vm1799 = vcmp.ne.s16.totalorder %v1797, 0
    %v1800 = vsel %vm1798, %v1774, 0
    %v1801 = vsel %vm1799, %v1770, 0
    %v1802 = vrot.slane %v1763, 2
    %v1803 = vrot.slane %v1764, 2
    %v1804 = vsel %vm1243, %v1802, %v1803
    %v1807 = vsel %vm1248, %v1803, 0
    %vm1809 = vcmp.le.s32.totalorder %v33, 8
    %vm1810 = vcmp.le.s32.totalorder %v34, 8
    %vm1811 = vcmp.le.s32.totalorder %v35, 8
    %vm1812 = vcmp.le.s32.totalorder %v36, 8
    %vm1813 = vmand %vm105, %vm1809
    %vm1814 = vmand %vm106, %vm1810
    %vm1815 = vmand %vm107, %vm1811
    %vm1816 = vmand %vm108, %vm1812
    %vm1817 = vmpackc.low %vm1813, %vm1813
    %vm1818 = vmpackc.low %vm1814, %vm1814
    %vm1819 = vmpackc.low %vm1815, %vm1815
    %vm1820 = vmpackc.low %vm1816, %vm1816
    %v1821 = vsel %vm1817, 65537, 0
    %v1822 = vsel %vm1818, 65537, 0
    %v1823 = vsel %vm1819, 65537, 0
    %v1824 = vsel %vm1820, 65537, 0
    %v1825 = vunpack.c.l.b16 %v1821
    %v1826 = vunpack.c.l.b16 %v1822
    %v1827 = vunpack.c.l.b16 %v1823
    %v1828 = vunpack.c.l.b16 %v1824
    %v1829 = vpack.c.b16 %v1826, %v1825
    %v1830 = vpack.c.b16 %v1828, %v1827
    %vm1831 = vcmp.ne.s16.totalorder %v1829, 0
    %vm1832 = vcmp.ne.s16.totalorder %v1830, 0
    %v1833 = vsel %vm1831, %v1804, 0
    %v1834 = vsel %vm1832, %v1807, 0
    %v1835 = vld [vmem:[#allocation2 + $0x3a0] sm:$0xf]
    %v1836 = vld [vmem:[#allocation2 + $0x3a4] sm:$0xf]
    %v1837 = vld [vmem:[#allocation2 + $0x3a8] sm:$0xf]
    %v1838 = vld [vmem:[#allocation2 + $0x3ac] sm:$0xf]
    %v1839 = vld [vmem:[#allocation2 + $0x3b0] sm:$0xf]
    %v1840 = vld [vmem:[#allocation2 + $0x3b4] sm:$0xf]
    %v1841 = vld [vmem:[#allocation2 + $0x3b8] sm:$0xf]
    %v1842 = vld [vmem:[#allocation2 + $0x3bc] sm:$0xf]
    %v1843 = vld [vmem:[#allocation2 + $0x3c0] sm:$0xf]
    %v1844 = vld [vmem:[#allocation2 + $0x3c4] sm:$0xf]
    %v1845 = vld [vmem:[#allocation2 + $0x3c8] sm:$0xf]
    %v1846 = vld [vmem:[#allocation2 + $0x3cc] sm:$0xf]
    %v1847 = vld [vmem:[#allocation2 + $0x3d0] sm:$0xf]
    %v1848 = vld [vmem:[#allocation2 + $0x3d4] sm:$0xf]
    %v1849 = vld [vmem:[#allocation2 + $0x3d8] sm:$0xf]
    %v1850 = vld [vmem:[#allocation2 + $0x3dc] sm:$0xf]
    %v1851 = vld [vmem:[#allocation2 + $0x3e0] sm:$0xf]
    %v1852 = vld [vmem:[#allocation2 + $0x3e4] sm:$0xf]
    %v1853 = vld [vmem:[#allocation2 + $0x3e8] sm:$0xf]
    %v1854 = vld [vmem:[#allocation2 + $0x3ec] sm:$0xf]
    %v1855 = vld [vmem:[#allocation2 + $0x3f0] sm:$0xf]
    %v1856 = vld [vmem:[#allocation2 + $0x3f4] sm:$0xf]
    %v1857 = vld [vmem:[#allocation2 + $0x3f8] sm:$0xf]
    %v1858 = vld [vmem:[#allocation2 + $0x3fc] sm:$0xf]
    %v1859 = vld [vmem:[#allocation2 + $0x400] sm:$0xf]
    %v1860 = vld [vmem:[#allocation2 + $0x404] sm:$0xf]
    %v1861 = vld [vmem:[#allocation2 + $0x408] sm:$0xf]
    %v1862 = vld [vmem:[#allocation2 + $0x40c] sm:$0xf]
    %v1863 = vld [vmem:[#allocation2 + $0x410] sm:$0xf]
    %v1864 = vld [vmem:[#allocation2 + $0x414] sm:$0xf]
    %v1865 = vld [vmem:[#allocation2 + $0x418] sm:$0xf]
    %v1866 = vld [vmem:[#allocation2 + $0x41c] sm:$0xf]
    %v1867 = vld [vmem:[#allocation2 + $0x420] sm:$0xf]
    %v1868 = vld [vmem:[#allocation2 + $0x424] sm:$0xf]
    %v1869 = vld [vmem:[#allocation2 + $0x428] sm:$0xf]
    %v1870 = vld [vmem:[#allocation2 + $0x42c] sm:$0xf]
    %v1871 = vld [vmem:[#allocation2 + $0x430] sm:$0xf]
    %v1872 = vld [vmem:[#allocation2 + $0x434] sm:$0xf]
    %v1873 = vld [vmem:[#allocation2 + $0x438] sm:$0xf]
    %v1874 = vld [vmem:[#allocation2 + $0x43c] sm:$0xf]
    %v1875 = vld [vmem:[#allocation2 + $0x440] sm:$0xf]
    %v1876 = vld [vmem:[#allocation2 + $0x444] sm:$0xf]
    %v1877 = vld [vmem:[#allocation2 + $0x448] sm:$0xf]
    %v1878 = vld [vmem:[#allocation2 + $0x44c] sm:$0xf]
    %v1879 = vld [vmem:[#allocation2 + $0x450] sm:$0xf]
    %v1880 = vld [vmem:[#allocation2 + $0x454] sm:$0xf]
    %v1881 = vld [vmem:[#allocation2 + $0x458] sm:$0xf]
    %v1882 = vld [vmem:[#allocation2 + $0x45c] sm:$0xf]
    %v1883 = vld [vmem:[#allocation2 + $0x460] sm:$0x1]
    %v1884 = vunpack.c.l.bf16 %v1883
    %v1885 = vlaneseq
    %v1886 = vshrl.u32 %v1885, 7
    %v1887 = vsub.s32 0, %v1886
    %v1888 = vrot.slane %v1884, %v1887
    %v1937 = vunpack.c.l.b16 %v1835
    %v1938 = vunpack.c.l.b16 %v1836
    %v1939 = vunpack.c.l.b16 %v1837
    %v1940 = vunpack.c.l.b16 %v1838
    %v1941 = vunpack.c.l.b16 %v1839
    %v1942 = vunpack.c.l.b16 %v1840
    %v1943 = vunpack.c.l.b16 %v1841
    %v1944 = vunpack.c.l.b16 %v1842
    %v1945 = vunpack.c.l.b16 %v1843
    %v1946 = vunpack.c.l.b16 %v1844
    %v1947 = vunpack.c.l.b16 %v1845
    %v1948 = vunpack.c.l.b16 %v1846
    %v1949 = vunpack.c.l.b16 %v1847
    %v1950 = vunpack.c.l.b16 %v1848
    %v1951 = vunpack.c.l.b16 %v1849
    %v1952 = vunpack.c.l.b16 %v1850
    %v1953 = vunpack.c.l.b16 %v1851
    %v1954 = vunpack.c.l.b16 %v1852
    %v1955 = vunpack.c.l.b16 %v1853
    %v1956 = vunpack.c.l.b16 %v1854
    %v1957 = vunpack.c.l.b16 %v1855
    %v1958 = vunpack.c.l.b16 %v1856
    %v1959 = vunpack.c.l.b16 %v1857
    %v1960 = vunpack.c.l.b16 %v1858
    %v1961 = vunpack.c.l.b16 %v1859
    %v1962 = vunpack.c.l.b16 %v1860
    %v1963 = vunpack.c.l.b16 %v1861
    %v1964 = vunpack.c.l.b16 %v1862
    %v1965 = vunpack.c.l.b16 %v1863
    %v1966 = vunpack.c.l.b16 %v1864
    %v1967 = vunpack.c.l.b16 %v1865
    %v1968 = vunpack.c.l.b16 %v1866
    %v1969 = vunpack.c.l.b16 %v1867
    %v1970 = vunpack.c.l.b16 %v1868
    %v1971 = vunpack.c.l.b16 %v1869
    %v1972 = vunpack.c.l.b16 %v1870
    %v1973 = vunpack.c.l.b16 %v1871
    %v1974 = vunpack.c.l.b16 %v1872
    %v1975 = vunpack.c.l.b16 %v1873
    %v1976 = vunpack.c.l.b16 %v1874
    %v1977 = vunpack.c.l.b16 %v1875
    %v1978 = vunpack.c.l.b16 %v1876
    %v1979 = vunpack.c.l.b16 %v1877
    %v1980 = vunpack.c.l.b16 %v1878
    %v1981 = vunpack.c.l.b16 %v1879
    %v1982 = vunpack.c.l.b16 %v1880
    %v1983 = vunpack.c.l.b16 %v1881
    %v1984 = vunpack.c.l.b16 %v1882
    %v1985 = vpack.c.b16 %v1938, %v1937
    %v1986 = vpack.c.b16 %v1940, %v1939
    %v1987 = vpack.c.b16 %v1942, %v1941
    %v1988 = vpack.c.b16 %v1944, %v1943
    %v1989 = vpack.c.b16 %v1946, %v1945
    %v1990 = vpack.c.b16 %v1948, %v1947
    %v1991 = vpack.c.b16 %v1950, %v1949
    %v1992 = vpack.c.b16 %v1952, %v1951
    %v1993 = vpack.c.b16 %v1954, %v1953
    %v1994 = vpack.c.b16 %v1956, %v1955
    %v1995 = vpack.c.b16 %v1958, %v1957
    %v1996 = vpack.c.b16 %v1960, %v1959
    %v1997 = vpack.c.b16 %v1962, %v1961
    %v1998 = vpack.c.b16 %v1964, %v1963
    %v1999 = vpack.c.b16 %v1966, %v1965
    %v2000 = vpack.c.b16 %v1968, %v1967
    %v2001 = vpack.c.b16 %v1970, %v1969
    %v2002 = vpack.c.b16 %v1972, %v1971
    %v2003 = vpack.c.b16 %v1974, %v1973
    %v2004 = vpack.c.b16 %v1976, %v1975
    %v2005 = vpack.c.b16 %v1978, %v1977
    %v2006 = vpack.c.b16 %v1980, %v1979
    %v2007 = vpack.c.b16 %v1982, %v1981
    %v2008 = vpack.c.b16 %v1984, %v1983
    %2033 = vmatprep.subr.bf16.mxu0 0
    %2034 = vmatpush1.bf16.msra.mxu0 %v1985
    %2035 = vmatprep.subr.bf16.mxu0 0
    %2036 = vmatpush1.bf16.msra.mxu0 %v1986
    %2037 = vmatprep.subr.bf16.mxu0 0
    %2038 = vmatpush1.bf16.msra.mxu0 %v1987
    %2039 = vmatprep.subr.bf16.mxu0 0
    %2040 = vmatpush1.bf16.msra.mxu0 %v1988
    %2041 = vmatprep.subr.bf16.mxu0 0
    %2042 = vmatpush1.bf16.msra.mxu0 %v1989
    %2043 = vmatprep.subr.bf16.mxu0 0
    %2044 = vmatpush1.bf16.msra.mxu0 %v1990
    %2045 = vmatprep.subr.bf16.mxu0 0
    %2046 = vmatpush1.bf16.msra.mxu0 %v1991
    %2047 = vmatprep.subr.bf16.mxu0 0
    %2048 = vmatpush1.bf16.msra.mxu0 %v1992
    %2049 = vmatprep.subr.bf16.mxu0 0
    %2050 = vmatpush1.bf16.msra.mxu0 %v1993
    %2051 = vmatprep.subr.bf16.mxu0 0
    %2052 = vmatpush1.bf16.msra.mxu0 %v1994
    %2053 = vmatprep.subr.bf16.mxu0 0
    %2054 = vmatpush1.bf16.msra.mxu0 %v1995
    %2055 = vmatprep.subr.bf16.mxu0 0
    %2056 = vmatpush1.bf16.msra.mxu0 %v1996
    %2057 = vmatprep.subr.bf16.mxu0 0
    %2058 = vmatpush1.bf16.msra.mxu0 %v1997
    %2059 = vmatprep.subr.bf16.mxu0 0
    %2060 = vmatpush1.bf16.msra.mxu0 %v1998
    %2061 = vmatprep.subr.bf16.mxu0 0
    %2062 = vmatpush1.bf16.msra.mxu0 %v1999
    %2063 = vmatprep.subr.bf16.mxu0 0
    %2064 = vmatpush1.bf16.msra.mxu0 %v2000
    %2065 = vmatprep.mubr.bf16.mxu0 %v1763
    %2066 = vmatmul.mubr.bf16.gmra.mrb[0].mxu0 %v1800
    %v2067 = vpop.f32.mrb[0].mxu0
    %v2068 = vadd.f32 %v1888, %v2067
    %v2069 = vpop.f32.mrb[0].mxu0
    %v2070 = vpop.f32.mrb[0].mxu0
    %v2071 = vadd.f32 %v1888, %v2070
    %v2072 = vpop.f32.mrb[0].mxu0
    %2073 = vmatprep.mubr.bf16.mxu0 %v1764
    %2074 = vmatmul.mubr.bf16.gmra.mrb[0].mxu0 %v1801
    %v2075 = vpop.f32.mrb[0].mxu0
    %v2076 = vadd.f32 %v1888, %v2075
    %v2077 = vpop.f32.mrb[0].mxu0
    %v2078 = vpop.f32.mrb[0].mxu0
    %v2079 = vadd.f32 %v1888, %v2078
    %v2080 = vpop.f32.mrb[0].mxu0
    %2081 = vdwg.mxu0
    %2082 = vmatprep.subr.bf16.mxu0 0
    %2083 = vmatpush1.bf16.msra.mxu0 %v2001
    %2084 = vmatprep.subr.bf16.mxu0 0
    %2085 = vmatpush1.bf16.msra.mxu0 %v2002
    %2086 = vmatprep.subr.bf16.mxu0 0
    %2087 = vmatpush1.bf16.msra.mxu0 %v2003
    %2088 = vmatprep.subr.bf16.mxu0 0
    %2089 = vmatpush1.bf16.msra.mxu0 %v2004
    %2090 = vmatprep.subr.bf16.mxu0 0
    %2091 = vmatpush1.bf16.msra.mxu0 %v2005
    %2092 = vmatprep.subr.bf16.mxu0 0
    %2093 = vmatpush1.bf16.msra.mxu0 %v2006
    %2094 = vmatprep.subr.bf16.mxu0 0
    %2095 = vmatpush1.bf16.msra.mxu0 %v2007
    %2096 = vmatprep.subr.bf16.mxu0 0
    %2097 = vmatpush1.bf16.msra.mxu0 %v2008
    %2098 = vmatprep.subr.bf16.mxu0 0
    %2099 = vmatpush1.bf16.msra.mxu0 0
    %2100 = vmatprep.subr.bf16.mxu0 0
    %2101 = vmatpush1.bf16.msra.mxu0 0
    %2102 = vmatprep.subr.bf16.mxu0 0
    %2103 = vmatpush1.bf16.msra.mxu0 0
    %2104 = vmatprep.subr.bf16.mxu0 0
    %2105 = vmatpush1.bf16.msra.mxu0 0
    %2106 = vmatprep.subr.bf16.mxu0 0
    %2107 = vmatpush1.bf16.msra.mxu0 0
    %2108 = vmatprep.subr.bf16.mxu0 0
    %2109 = vmatpush1.bf16.msra.mxu0 0
    %2110 = vmatprep.subr.bf16.mxu0 0
    %2111 = vmatpush1.bf16.msra.mxu0 0
    %2112 = vmatprep.subr.bf16.mxu0 0
    %2113 = vmatpush1.bf16.msra.mxu0 0
    %2114 = vmatprep.mubr.bf16.mxu0 0
    %2115 = vmatmul.mubr.bf16.gmra.mrb[0].mxu0 %v1833
    %v2116 = vpop.f32.mrb[0].mxu0
    %v2117 = vadd.f32 %v2068, %v2116
    %v2118 = vpop.f32.mrb[0].mxu0
    %v2119 = vpop.f32.mrb[0].mxu0
    %v2120 = vadd.f32 %v2071, %v2119
    %v2121 = vpop.f32.mrb[0].mxu0
    %2122 = vmatprep.mubr.bf16.mxu0 0
    %2123 = vmatmul.mubr.bf16.gmra.mrb[0].mxu0 %v1834
    %v2124 = vpop.f32.mrb[0].mxu0
    %v2125 = vadd.f32 %v2076, %v2124
    %v2126 = vpop.f32.mrb[0].mxu0
    %v2127 = vpop.f32.mrb[0].mxu0
    %v2128 = vadd.f32 %v2079, %v2127
    %v2129 = vpop.f32.mrb[0].mxu0
    %2130 = vdwg.mxu0
    %vm2131 = vcmp.gt.f32.partialorder %v2117, 0.0
    %vm2132 = vcmp.gt.f32.partialorder %v2120, 0.0
    %vm2133 = vcmp.gt.f32.partialorder %v2125, 0.0
    %vm2134 = vcmp.gt.f32.partialorder %v2128, 0.0
    %v2135 = vmul.f32 %v2117, 0.2
    %v2136 = vmul.f32 %v2120, 0.2
    %v2137 = vmul.f32 %v2125, 0.2
    %v2138 = vmul.f32 %v2128, 0.2
    %v2139 = vsel %vm2131, %v2117, %v2135
    %v2140 = vsel %vm2132, %v2120, %v2136
    %v2141 = vsel %vm2133, %v2125, %v2137
    %v2142 = vsel %vm2134, %v2128, %v2138
    %v2143 = vpack.c.bf16 %v2140, %v2139
    %v2144 = vpack.c.bf16 %v2142, %v2141
    %v2147 = vrot.slane %v2143, 6
    %v2148 = vrot.slane %v2144, 6
    %v2149 = vsel %vm1767, %v2147, %v2148
    %v2152 = vsel %vm1772, 0, %v2147
    %v2154 = vsel %vm1798, %v2152, 0
    %v2155 = vsel %vm1799, %v2149, 0
    %v2156 = vrot.slane %v2143, 2
    %v2157 = vrot.slane %v2144, 2
    %v2158 = vsel %vm1243, %v2156, %v2157
    %v2161 = vsel %vm1248, %v2157, 0
    %vm2163 = vcmask 1043456
    %v2164 = vrot.slane %v2143, 4
    %v2165 = vrot.slane %v2144, 4
    %v2166 = vsel %vm2163, %v2164, %v2165
    %vm2168 = vcmask 1043456
    %v2170 = vsel %vm2168, %v2165, 0
    %vm2172 = vcmp.le.s32.totalorder %v33, 4
    %vm2173 = vcmp.le.s32.totalorder %v34, 4
    %vm2174 = vcmp.le.s32.totalorder %v35, 4
    %vm2175 = vcmp.le.s32.totalorder %v36, 4
    %vm2176 = vmand %vm105, %vm2172
    %vm2177 = vmand %vm106, %vm2173
    %vm2178 = vmand %vm107, %vm2174
    %vm2179 = vmand %vm108, %vm2175
    %vm2180 = vmpackc.low %vm2176, %vm2176
    %vm2181 = vmpackc.low %vm2177, %vm2177
    %vm2182 = vmpackc.low %vm2178, %vm2178
    %vm2183 = vmpackc.low %vm2179, %vm2179
    %v2184 = vsel %vm2180, 65537, 0
    %v2185 = vsel %vm2181, 65537, 0
    %v2186 = vsel %vm2182, 65537, 0
    %v2187 = vsel %vm2183, 65537, 0
    %v2188 = vunpack.c.l.b16 %v2184
    %v2189 = vunpack.c.l.b16 %v2185
    %v2190 = vunpack.c.l.b16 %v2186
    %v2191 = vunpack.c.l.b16 %v2187
    %v2192 = vpack.c.b16 %v2189, %v2188
    %v2193 = vpack.c.b16 %v2191, %v2190
    %vm2194 = vcmp.ne.s16.totalorder %v2192, 0
    %vm2195 = vcmp.ne.s16.totalorder %v2193, 0
    %v2196 = vsel %vm2194, %v2166, 0
    %v2197 = vsel %vm2195, %v2170, 0
    %v2198 = vld [vmem:[#allocation2 + $0x468] sm:$0xf]
    %v2199 = vld [vmem:[#allocation2 + $0x46c] sm:$0xf]
    %v2200 = vld [vmem:[#allocation2 + $0x470] sm:$0xf]
    %v2201 = vld [vmem:[#allocation2 + $0x474] sm:$0xf]
    %v2202 = vld [vmem:[#allocation2 + $0x478] sm:$0xf]
    %v2203 = vld [vmem:[#allocation2 + $0x47c] sm:$0xf]
    %v2204 = vld [vmem:[#allocation2 + $0x480] sm:$0xf]
    %v2205 = vld [vmem:[#allocation2 + $0x484] sm:$0xf]
    %v2206 = vld [vmem:[#allocation2 + $0x488] sm:$0xf]
    %v2207 = vld [vmem:[#allocation2 + $0x48c] sm:$0xf]
    %v2208 = vld [vmem:[#allocation2 + $0x490] sm:$0xf]
    %v2209 = vld [vmem:[#allocation2 + $0x494] sm:$0xf]
    %v2210 = vld [vmem:[#allocation2 + $0x498] sm:$0xf]
    %v2211 = vld [vmem:[#allocation2 + $0x49c] sm:$0xf]
    %v2212 = vld [vmem:[#allocation2 + $0x4a0] sm:$0xf]
    %v2213 = vld [vmem:[#allocation2 + $0x4a4] sm:$0xf]
    %v2214 = vld [vmem:[#allocation2 + $0x4a8] sm:$0xf]
    %v2215 = vld [vmem:[#allocation2 + $0x4ac] sm:$0xf]
    %v2216 = vld [vmem:[#allocation2 + $0x4b0] sm:$0xf]
    %v2217 = vld [vmem:[#allocation2 + $0x4b4] sm:$0xf]
    %v2218 = vld [vmem:[#allocation2 + $0x4b8] sm:$0xf]
    %v2219 = vld [vmem:[#allocation2 + $0x4bc] sm:$0xf]
    %v2220 = vld [vmem:[#allocation2 + $0x4c0] sm:$0xf]
    %v2221 = vld [vmem:[#allocation2 + $0x4c4] sm:$0xf]
    %v2222 = vld [vmem:[#allocation2 + $0x4c8] sm:$0xf]
    %v2223 = vld [vmem:[#allocation2 + $0x4cc] sm:$0xf]
    %v2224 = vld [vmem:[#allocation2 + $0x4d0] sm:$0xf]
    %v2225 = vld [vmem:[#allocation2 + $0x4d4] sm:$0xf]
    %v2226 = vld [vmem:[#allocation2 + $0x4d8] sm:$0xf]
    %v2227 = vld [vmem:[#allocation2 + $0x4dc] sm:$0xf]
    %v2228 = vld [vmem:[#allocation2 + $0x4e0] sm:$0xf]
    %v2229 = vld [vmem:[#allocation2 + $0x4e4] sm:$0xf]
    %v2230 = vld [vmem:[#allocation2 + $0x4e8] sm:$0xf]
    %v2231 = vld [vmem:[#allocation2 + $0x4ec] sm:$0xf]
    %v2232 = vld [vmem:[#allocation2 + $0x4f0] sm:$0xf]
    %v2233 = vld [vmem:[#allocation2 + $0x4f4] sm:$0xf]
    %v2234 = vld [vmem:[#allocation2 + $0x4f8] sm:$0xf]
    %v2235 = vld [vmem:[#allocation2 + $0x4fc] sm:$0xf]
    %v2236 = vld [vmem:[#allocation2 + $0x500] sm:$0xf]
    %v2237 = vld [vmem:[#allocation2 + $0x504] sm:$0xf]
    %v2238 = vld [vmem:[#allocation2 + $0x508] sm:$0xf]
    %v2239 = vld [vmem:[#allocation2 + $0x50c] sm:$0xf]
    %v2240 = vld [vmem:[#allocation2 + $0x510] sm:$0xf]
    %v2241 = vld [vmem:[#allocation2 + $0x514] sm:$0xf]
    %v2242 = vld [vmem:[#allocation2 + $0x518] sm:$0xf]
    %v2243 = vld [vmem:[#allocation2 + $0x51c] sm:$0xf]
    %v2244 = vld [vmem:[#allocation2 + $0x520] sm:$0xf]
    %v2245 = vld [vmem:[#allocation2 + $0x524] sm:$0xf]
    %v2246 = vld [vmem:[#allocation2 + $0x528] sm:$0xf]
    %v2247 = vld [vmem:[#allocation2 + $0x52c] sm:$0xf]
    %v2248 = vld [vmem:[#allocation2 + $0x530] sm:$0xf]
    %v2249 = vld [vmem:[#allocation2 + $0x534] sm:$0xf]
    %v2250 = vld [vmem:[#allocation2 + $0x538] sm:$0xf]
    %v2251 = vld [vmem:[#allocation2 + $0x53c] sm:$0xf]
    %v2252 = vld [vmem:[#allocation2 + $0x540] sm:$0xf]
    %v2253 = vld [vmem:[#allocation2 + $0x544] sm:$0xf]
    %v2254 = vld [vmem:[#allocation2 + $0x548] sm:$0xf]
    %v2255 = vld [vmem:[#allocation2 + $0x54c] sm:$0xf]
    %v2256 = vld [vmem:[#allocation2 + $0x550] sm:$0xf]
    %v2257 = vld [vmem:[#allocation2 + $0x554] sm:$0xf]
    %v2258 = vld [vmem:[#allocation2 + $0x558] sm:$0xf]
    %v2259 = vld [vmem:[#allocation2 + $0x55c] sm:$0xf]
    %v2260 = vld [vmem:[#allocation2 + $0x560] sm:$0xf]
    %v2261 = vld [vmem:[#allocation2 + $0x564] sm:$0xf]
    %v2262 = vld [vmem:[#allocation2 + $0x568] sm:$0xf]
    %v2263 = vld [vmem:[#allocation2 + $0x56c] sm:$0xf]
    %v2264 = vld [vmem:[#allocation2 + $0x570] sm:$0xf]
    %v2265 = vld [vmem:[#allocation2 + $0x574] sm:$0xf]
    %v2266 = vld [vmem:[#allocation2 + $0x578] sm:$0xf]
    %v2267 = vld [vmem:[#allocation2 + $0x57c] sm:$0xf]
    %v2268 = vld [vmem:[#allocation2 + $0x580] sm:$0xf]
    %v2269 = vld [vmem:[#allocation2 + $0x584] sm:$0xf]
    %v2270 = vld [vmem:[#allocation2 + $0x588] sm:$0xf]
    %v2271 = vld [vmem:[#allocation2 + $0x58c] sm:$0xf]
    %v2272 = vld [vmem:[#allocation2 + $0x590] sm:$0xf]
    %v2273 = vld [vmem:[#allocation2 + $0x594] sm:$0xf]
    %v2274 = vld [vmem:[#allocation2 + $0x598] sm:$0xf]
    %v2275 = vld [vmem:[#allocation2 + $0x59c] sm:$0xf]
    %v2276 = vld [vmem:[#allocation2 + $0x5a0] sm:$0xf]
    %v2277 = vld [vmem:[#allocation2 + $0x5a4] sm:$0xf]
    %v2278 = vld [vmem:[#allocation2 + $0x5a8] sm:$0x1]
    %v2279 = vunpack.c.l.bf16 %v2278
    %v2280 = vlaneseq
    %v2281 = vshrl.u32 %v2280, 7
    %v2282 = vsub.s32 0, %v2281
    %v2283 = vrot.slane %v2279, %v2282
    %v2364 = vunpack.c.l.b16 %v2198
    %v2365 = vunpack.c.l.b16 %v2199
    %v2366 = vunpack.c.l.b16 %v2200
    %v2367 = vunpack.c.l.b16 %v2201
    %v2368 = vunpack.c.l.b16 %v2202
    %v2369 = vunpack.c.l.b16 %v2203
    %v2370 = vunpack.c.l.b16 %v2204
    %v2371 = vunpack.c.l.b16 %v2205
    %v2372 = vunpack.c.l.b16 %v2206
    %v2373 = vunpack.c.l.b16 %v2207
    %v2374 = vunpack.c.l.b16 %v2208
    %v2375 = vunpack.c.l.b16 %v2209
    %v2376 = vunpack.c.l.b16 %v2210
    %v2377 = vunpack.c.l.b16 %v2211
    %v2378 = vunpack.c.l.b16 %v2212
    %v2379 = vunpack.c.l.b16 %v2213
    %v2380 = vunpack.c.l.b16 %v2214
    %v2381 = vunpack.c.l.b16 %v2215
    %v2382 = vunpack.c.l.b16 %v2216
    %v2383 = vunpack.c.l.b16 %v2217
    %v2384 = vunpack.c.l.b16 %v2218
    %v2385 = vunpack.c.l.b16 %v2219
    %v2386 = vunpack.c.l.b16 %v2220
    %v2387 = vunpack.c.l.b16 %v2221
    %v2388 = vunpack.c.l.b16 %v2222
    %v2389 = vunpack.c.l.b16 %v2223
    %v2390 = vunpack.c.l.b16 %v2224
    %v2391 = vunpack.c.l.b16 %v2225
    %v2392 = vunpack.c.l.b16 %v2226
    %v2393 = vunpack.c.l.b16 %v2227
    %v2394 = vunpack.c.l.b16 %v2228
    %v2395 = vunpack.c.l.b16 %v2229
    %v2396 = vunpack.c.l.b16 %v2230
    %v2397 = vunpack.c.l.b16 %v2231
    %v2398 = vunpack.c.l.b16 %v2232
    %v2399 = vunpack.c.l.b16 %v2233
    %v2400 = vunpack.c.l.b16 %v2234
    %v2401 = vunpack.c.l.b16 %v2235
    %v2402 = vunpack.c.l.b16 %v2236
    %v2403 = vunpack.c.l.b16 %v2237
    %v2404 = vunpack.c.l.b16 %v2238
    %v2405 = vunpack.c.l.b16 %v2239
    %v2406 = vunpack.c.l.b16 %v2240
    %v2407 = vunpack.c.l.b16 %v2241
    %v2408 = vunpack.c.l.b16 %v2242
    %v2409 = vunpack.c.l.b16 %v2243
    %v2410 = vunpack.c.l.b16 %v2244
    %v2411 = vunpack.c.l.b16 %v2245
    %v2412 = vunpack.c.l.b16 %v2246
    %v2413 = vunpack.c.l.b16 %v2247
    %v2414 = vunpack.c.l.b16 %v2248
    %v2415 = vunpack.c.l.b16 %v2249
    %v2416 = vunpack.c.l.b16 %v2250
    %v2417 = vunpack.c.l.b16 %v2251
    %v2418 = vunpack.c.l.b16 %v2252
    %v2419 = vunpack.c.l.b16 %v2253
    %v2420 = vunpack.c.l.b16 %v2254
    %v2421 = vunpack.c.l.b16 %v2255
    %v2422 = vunpack.c.l.b16 %v2256
    %v2423 = vunpack.c.l.b16 %v2257
    %v2424 = vunpack.c.l.b16 %v2258
    %v2425 = vunpack.c.l.b16 %v2259
    %v2426 = vunpack.c.l.b16 %v2260
    %v2427 = vunpack.c.l.b16 %v2261
    %v2428 = vunpack.c.l.b16 %v2262
    %v2429 = vunpack.c.l.b16 %v2263
    %v2430 = vunpack.c.l.b16 %v2264
    %v2431 = vunpack.c.l.b16 %v2265
    %v2432 = vunpack.c.l.b16 %v2266
    %v2433 = vunpack.c.l.b16 %v2267
    %v2434 = vunpack.c.l.b16 %v2268
    %v2435 = vunpack.c.l.b16 %v2269
    %v2436 = vunpack.c.l.b16 %v2270
    %v2437 = vunpack.c.l.b16 %v2271
    %v2438 = vunpack.c.l.b16 %v2272
    %v2439 = vunpack.c.l.b16 %v2273
    %v2440 = vunpack.c.l.b16 %v2274
    %v2441 = vunpack.c.l.b16 %v2275
    %v2442 = vunpack.c.l.b16 %v2276
    %v2443 = vunpack.c.l.b16 %v2277
    %v2444 = vpack.c.b16 %v2365, %v2364
    %v2445 = vpack.c.b16 %v2367, %v2366
    %v2446 = vpack.c.b16 %v2369, %v2368
    %v2447 = vpack.c.b16 %v2371, %v2370
    %v2448 = vpack.c.b16 %v2373, %v2372
    %v2449 = vpack.c.b16 %v2375, %v2374
    %v2450 = vpack.c.b16 %v2377, %v2376
    %v2451 = vpack.c.b16 %v2379, %v2378
    %v2452 = vpack.c.b16 %v2381, %v2380
    %v2453 = vpack.c.b16 %v2383, %v2382
    %v2454 = vpack.c.b16 %v2385, %v2384
    %v2455 = vpack.c.b16 %v2387, %v2386
    %v2456 = vpack.c.b16 %v2389, %v2388
    %v2457 = vpack.c.b16 %v2391, %v2390
    %v2458 = vpack.c.b16 %v2393, %v2392
    %v2459 = vpack.c.b16 %v2395, %v2394
    %v2460 = vpack.c.b16 %v2397, %v2396
    %v2461 = vpack.c.b16 %v2399, %v2398
    %v2462 = vpack.c.b16 %v2401, %v2400
    %v2463 = vpack.c.b16 %v2403, %v2402
    %v2464 = vpack.c.b16 %v2405, %v2404
    %v2465 = vpack.c.b16 %v2407, %v2406
    %v2466 = vpack.c.b16 %v2409, %v2408
    %v2467 = vpack.c.b16 %v2411, %v2410
    %v2468 = vpack.c.b16 %v2413, %v2412
    %v2469 = vpack.c.b16 %v2415, %v2414
    %v2470 = vpack.c.b16 %v2417, %v2416
    %v2471 = vpack.c.b16 %v2419, %v2418
    %v2472 = vpack.c.b16 %v2421, %v2420
    %v2473 = vpack.c.b16 %v2423, %v2422
    %v2474 = vpack.c.b16 %v2425, %v2424
    %v2475 = vpack.c.b16 %v2427, %v2426
    %v2476 = vpack.c.b16 %v2429, %v2428
    %v2477 = vpack.c.b16 %v2431, %v2430
    %v2478 = vpack.c.b16 %v2433, %v2432
    %v2479 = vpack.c.b16 %v2435, %v2434
    %v2480 = vpack.c.b16 %v2437, %v2436
    %v2481 = vpack.c.b16 %v2439, %v2438
    %v2482 = vpack.c.b16 %v2441, %v2440
    %v2483 = vpack.c.b16 %v2443, %v2442
    %2524 = vmatprep.subr.bf16.mxu0 0
    %2525 = vmatpush1.bf16.msra.mxu0 %v2444
    %2526 = vmatprep.subr.bf16.mxu0 0
    %2527 = vmatpush1.bf16.msra.mxu0 %v2445
    %2528 = vmatprep.subr.bf16.mxu0 0
    %2529 = vmatpush1.bf16.msra.mxu0 %v2446
    %2530 = vmatprep.subr.bf16.mxu0 0
    %2531 = vmatpush1.bf16.msra.mxu0 %v2447
    %2532 = vmatprep.subr.bf16.mxu0 0
    %2533 = vmatpush1.bf16.msra.mxu0 %v2448
    %2534 = vmatprep.subr.bf16.mxu0 0
    %2535 = vmatpush1.bf16.msra.mxu0 %v2449
    %2536 = vmatprep.subr.bf16.mxu0 0
    %2537 = vmatpush1.bf16.msra.mxu0 %v2450
    %2538 = vmatprep.subr.bf16.mxu0 0
    %2539 = vmatpush1.bf16.msra.mxu0 %v2451
    %2540 = vmatprep.subr.bf16.mxu0 0
    %2541 = vmatpush1.bf16.msra.mxu0 %v2452
    %2542 = vmatprep.subr.bf16.mxu0 0
    %2543 = vmatpush1.bf16.msra.mxu0 %v2453
    %2544 = vmatprep.subr.bf16.mxu0 0
    %2545 = vmatpush1.bf16.msra.mxu0 %v2454
    %2546 = vmatprep.subr.bf16.mxu0 0
    %2547 = vmatpush1.bf16.msra.mxu0 %v2455
    %2548 = vmatprep.subr.bf16.mxu0 0
    %2549 = vmatpush1.bf16.msra.mxu0 %v2456
    %2550 = vmatprep.subr.bf16.mxu0 0
    %2551 = vmatpush1.bf16.msra.mxu0 %v2457
    %2552 = vmatprep.subr.bf16.mxu0 0
    %2553 = vmatpush1.bf16.msra.mxu0 %v2458
    %2554 = vmatprep.subr.bf16.mxu0 0
    %2555 = vmatpush1.bf16.msra.mxu0 %v2459
    %2556 = vmatprep.mubr.bf16.mxu0 %v2143
    %2557 = vmatmul.mubr.bf16.gmra.mrb[0].mxu0 %v2154
    %v2558 = vpop.f32.mrb[0].mxu0
    %v2559 = vadd.f32 %v2283, %v2558
    %v2560 = vpop.f32.mrb[0].mxu0
    %v2561 = vpop.f32.mrb[0].mxu0
    %v2562 = vadd.f32 %v2283, %v2561
    %v2563 = vpop.f32.mrb[0].mxu0
    %2564 = vmatprep.mubr.bf16.mxu0 %v2144
    %2565 = vmatmul.mubr.bf16.gmra.mrb[0].mxu0 %v2155
    %v2566 = vpop.f32.mrb[0].mxu0
    %v2567 = vadd.f32 %v2283, %v2566
    %v2568 = vpop.f32.mrb[0].mxu0
    %v2569 = vpop.f32.mrb[0].mxu0
    %v2570 = vadd.f32 %v2283, %v2569
    %v2571 = vpop.f32.mrb[0].mxu0
    %2572 = vdwg.mxu0
    %2573 = vmatprep.subr.bf16.mxu0 0
    %2574 = vmatpush1.bf16.msra.mxu0 %v2460
    %2575 = vmatprep.subr.bf16.mxu0 0
    %2576 = vmatpush1.bf16.msra.mxu0 %v2461
    %2577 = vmatprep.subr.bf16.mxu0 0
    %2578 = vmatpush1.bf16.msra.mxu0 %v2462
    %2579 = vmatprep.subr.bf16.mxu0 0
    %2580 = vmatpush1.bf16.msra.mxu0 %v2463
    %2581 = vmatprep.subr.bf16.mxu0 0
    %2582 = vmatpush1.bf16.msra.mxu0 %v2464
    %2583 = vmatprep.subr.bf16.mxu0 0
    %2584 = vmatpush1.bf16.msra.mxu0 %v2465
    %2585 = vmatprep.subr.bf16.mxu0 0
    %2586 = vmatpush1.bf16.msra.mxu0 %v2466
    %2587 = vmatprep.subr.bf16.mxu0 0
    %2588 = vmatpush1.bf16.msra.mxu0 %v2467
    %2589 = vmatprep.subr.bf16.mxu0 0
    %2590 = vmatpush1.bf16.msra.mxu0 %v2468
    %2591 = vmatprep.subr.bf16.mxu0 0
    %2592 = vmatpush1.bf16.msra.mxu0 %v2469
    %2593 = vmatprep.subr.bf16.mxu0 0
    %2594 = vmatpush1.bf16.msra.mxu0 %v2470
    %2595 = vmatprep.subr.bf16.mxu0 0
    %2596 = vmatpush1.bf16.msra.mxu0 %v2471
    %2597 = vmatprep.subr.bf16.mxu0 0
    %2598 = vmatpush1.bf16.msra.mxu0 %v2472
    %2599 = vmatprep.subr.bf16.mxu0 0
    %2600 = vmatpush1.bf16.msra.mxu0 %v2473
    %2601 = vmatprep.subr.bf16.mxu0 0
    %2602 = vmatpush1.bf16.msra.mxu0 %v2474
    %2603 = vmatprep.subr.bf16.mxu0 0
    %2604 = vmatpush1.bf16.msra.mxu0 %v2475
    %2605 = vmatprep.mubr.bf16.mxu0 %v2196
    %2606 = vmatmul.mubr.bf16.gmra.mrb[0].mxu0 %v2158
    %v2607 = vpop.f32.mrb[0].mxu0
    %v2608 = vadd.f32 %v2559, %v2607
    %v2609 = vpop.f32.mrb[0].mxu0
    %v2610 = vpop.f32.mrb[0].mxu0
    %v2611 = vadd.f32 %v2562, %v2610
    %v2612 = vpop.f32.mrb[0].mxu0
    %2613 = vmatprep.mubr.bf16.mxu0 %v2197
    %2614 = vmatmul.mubr.bf16.gmra.mrb[0].mxu0 %v2161
    %v2615 = vpop.f32.mrb[0].mxu0
    %v2616 = vadd.f32 %v2567, %v2615
    %v2617 = vpop.f32.mrb[0].mxu0
    %v2618 = vpop.f32.mrb[0].mxu0
    %v2619 = vadd.f32 %v2570, %v2618
    %v2620 = vpop.f32.mrb[0].mxu0
    %2621 = vdwg.mxu0
    %2622 = vmatprep.subr.bf16.mxu0 0
    %2623 = vmatpush1.bf16.msra.mxu0 %v2476
    %2624 = vmatprep.subr.bf16.mxu0 0
    %2625 = vmatpush1.bf16.msra.mxu0 %v2477
    %2626 = vmatprep.subr.bf16.mxu0 0
    %2627 = vmatpush1.bf16.msra.mxu0 %v2478
    %2628 = vmatprep.subr.bf16.mxu0 0
    %2629 = vmatpush1.bf16.msra.mxu0 %v2479
    %2630 = vmatprep.subr.bf16.mxu0 0
    %2631 = vmatpush1.bf16.msra.mxu0 %v2480
    %2632 = vmatprep.subr.bf16.mxu0 0
    %2633 = vmatpush1.bf16.msra.mxu0 %v2481
    %2634 = vmatprep.subr.bf16.mxu0 0
    %2635 = vmatpush1.bf16.msra.mxu0 %v2482
    %2636 = vmatprep.subr.bf16.mxu0 0
    %2637 = vmatpush1.bf16.msra.mxu0 %v2483
    %2638 = vmatprep.subr.bf16.mxu0 0
    %2639 = vmatpush1.bf16.msra.mxu0 0
    %2640 = vmatprep.subr.bf16.mxu0 0
    %2641 = vmatpush1.bf16.msra.mxu0 0
    %2642 = vmatprep.subr.bf16.mxu0 0
    %2643 = vmatpush1.bf16.msra.mxu0 0
    %2644 = vmatprep.subr.bf16.mxu0 0
    %2645 = vmatpush1.bf16.msra.mxu0 0
    %2646 = vmatprep.subr.bf16.mxu0 0
    %2647 = vmatpush1.bf16.msra.mxu0 0
    %2648 = vmatprep.subr.bf16.mxu0 0
    %2649 = vmatpush1.bf16.msra.mxu0 0
    %2650 = vmatprep.subr.bf16.mxu0 0
    %2651 = vmatpush1.bf16.msra.mxu0 0
    %2652 = vmatprep.subr.bf16.mxu0 0
    %2653 = vmatpush1.bf16.msra.mxu0 0
    %2654 = vmatprep.mubr.bf16.mxu0 0
    %2655 = vmatmul.mubr.bf16.gmra.mrb[0].mxu0 %v1763
    %v2656 = vpop.f32.mrb[0].mxu0
    %v2657 = vadd.f32 %v2608, %v2656
    %v2658 = vpop.f32.mrb[0].mxu0
    %v2659 = vpop.f32.mrb[0].mxu0
    %v2660 = vadd.f32 %v2611, %v2659
    %v2661 = vpop.f32.mrb[0].mxu0
    %2662 = vmatprep.mubr.bf16.mxu0 0
    %2663 = vmatmul.mubr.bf16.gmra.mrb[0].mxu0 %v1764
    %v2664 = vpop.f32.mrb[0].mxu0
    %v2665 = vadd.f32 %v2616, %v2664
    %v2666 = vpop.f32.mrb[0].mxu0
    %v2667 = vpop.f32.mrb[0].mxu0
    %v2668 = vadd.f32 %v2619, %v2667
    %v2669 = vpop.f32.mrb[0].mxu0
    %2670 = vdwg.mxu0
    %vm2671 = vcmp.gt.f32.partialorder %v2657, 0.0
    %vm2672 = vcmp.gt.f32.partialorder %v2660, 0.0
    %vm2673 = vcmp.gt.f32.partialorder %v2665, 0.0
    %vm2674 = vcmp.gt.f32.partialorder %v2668, 0.0
    %v2675 = vmul.f32 %v2657, 0.2
    %v2676 = vmul.f32 %v2660, 0.2
    %v2677 = vmul.f32 %v2665, 0.2
    %v2678 = vmul.f32 %v2668, 0.2
    %v2679 = vsel %vm2671, %v2657, %v2675
    %v2680 = vsel %vm2672, %v2660, %v2676
    %v2681 = vsel %vm2673, %v2665, %v2677
    %v2682 = vsel %vm2674, %v2668, %v2678
    %v2683 = vpack.c.bf16 %v2680, %v2679
    %v2684 = vpack.c.bf16 %v2682, %v2681
    %v2687 = vrot.slane %v2683, 4
    %v2688 = vrot.slane %v2684, 4
    %v2689 = vsel %vm2163, %v2687, %v2688
    %v2692 = vsel %vm2168, 0, %v2687
    %vm2694 = vcmp.ge.s32.totalorder %v33, 8
    %vm2695 = vcmp.ge.s32.totalorder %v34, 8
    %vm2696 = vcmp.ge.s32.totalorder %v35, 8
    %vm2697 = vcmp.ge.s32.totalorder %v36, 8
    %vm2698 = vmand %vm2694, %vm68
    %vm2699 = vmand %vm2695, %vm69
    %vm2700 = vmand %vm2696, %vm70
    %vm2701 = vmand %vm2697, %vm71
    %vm2702 = vmpackc.low %vm2698, %vm2698
    %vm2703 = vmpackc.low %vm2699, %vm2699
    %vm2704 = vmpackc.low %vm2700, %vm2700
    %vm2705 = vmpackc.low %vm2701, %vm2701
    %v2706 = vsel %vm2702, 65537, 0
    %v2707 = vsel %vm2703, 65537, 0
    %v2708 = vsel %vm2704, 65537, 0
    %v2709 = vsel %vm2705, 65537, 0
    %v2710 = vunpack.c.l.b16 %v2706
    %v2711 = vunpack.c.l.b16 %v2707
    %v2712 = vunpack.c.l.b16 %v2708
    %v2713 = vunpack.c.l.b16 %v2709
    %v2714 = vpack.c.b16 %v2711, %v2710
    %v2715 = vpack.c.b16 %v2713, %v2712
    %vm2716 = vcmp.ne.s16.totalorder %v2714, 0
    %vm2717 = vcmp.ne.s16.totalorder %v2715, 0
    %v2718 = vsel %vm2716, %v2692, 0
    %v2719 = vsel %vm2717, %v2689, 0
    %v2721 = vsel %vm2168, %v2688, 0
    %vm2723 = vcmp.le.s32.totalorder %v33, 0
    %vm2724 = vcmp.le.s32.totalorder %v34, 0
    %vm2725 = vcmp.le.s32.totalorder %v35, 0
    %vm2726 = vcmp.le.s32.totalorder %v36, 0
    %vm2727 = vmand %vm105, %vm2723
    %vm2728 = vmand %vm106, %vm2724
    %vm2729 = vmand %vm107, %vm2725
    %vm2730 = vmand %vm108, %vm2726
    %vm2731 = vmpackc.low %vm2727, %vm2727
    %vm2732 = vmpackc.low %vm2728, %vm2728
    %vm2733 = vmpackc.low %vm2729, %vm2729
    %vm2734 = vmpackc.low %vm2730, %vm2730
    %v2735 = vsel %vm2731, 65537, 0
    %v2736 = vsel %vm2732, 65537, 0
    %v2737 = vsel %vm2733, 65537, 0
    %v2738 = vsel %vm2734, 65537, 0
    %v2739 = vunpack.c.l.b16 %v2735
    %v2740 = vunpack.c.l.b16 %v2736
    %v2741 = vunpack.c.l.b16 %v2737
    %v2742 = vunpack.c.l.b16 %v2738
    %v2743 = vpack.c.b16 %v2740, %v2739
    %v2744 = vpack.c.b16 %v2742, %v2741
    %vm2745 = vcmp.ne.s16.totalorder %v2743, 0
    %vm2746 = vcmp.ne.s16.totalorder %v2744, 0
    %v2747 = vsel %vm2745, %v2689, 0
    %v2748 = vsel %vm2746, %v2721, 0
    %v2749 = vld [vmem:[#allocation2 + $0x5b0] sm:$0xf]
    %v2750 = vld [vmem:[#allocation2 + $0x5b4] sm:$0xf]
    %v2751 = vld [vmem:[#allocation2 + $0x5b8] sm:$0xf]
    %v2752 = vld [vmem:[#allocation2 + $0x5bc] sm:$0xf]
    %v2753 = vld [vmem:[#allocation2 + $0x5c0] sm:$0xf]
    %v2754 = vld [vmem:[#allocation2 + $0x5c4] sm:$0xf]
    %v2755 = vld [vmem:[#allocation2 + $0x5c8] sm:$0xf]
    %v2756 = vld [vmem:[#allocation2 + $0x5cc] sm:$0xf]
    %v2757 = vld [vmem:[#allocation2 + $0x5d0] sm:$0xf]
    %v2758 = vld [vmem:[#allocation2 + $0x5d4] sm:$0xf]
    %v2759 = vld [vmem:[#allocation2 + $0x5d8] sm:$0xf]
    %v2760 = vld [vmem:[#allocation2 + $0x5dc] sm:$0xf]
    %v2761 = vld [vmem:[#allocation2 + $0x5e0] sm:$0xf]
    %v2762 = vld [vmem:[#allocation2 + $0x5e4] sm:$0xf]
    %v2763 = vld [vmem:[#allocation2 + $0x5e8] sm:$0xf]
    %v2764 = vld [vmem:[#allocation2 + $0x5ec] sm:$0xf]
    %v2765 = vld [vmem:[#allocation2 + $0x5f0] sm:$0xf]
    %v2766 = vld [vmem:[#allocation2 + $0x5f4] sm:$0xf]
    %v2767 = vld [vmem:[#allocation2 + $0x5f8] sm:$0xf]
    %v2768 = vld [vmem:[#allocation2 + $0x5fc] sm:$0xf]
    %v2769 = vld [vmem:[#allocation2 + $0x600] sm:$0xf]
    %v2770 = vld [vmem:[#allocation2 + $0x604] sm:$0xf]
    %v2771 = vld [vmem:[#allocation2 + $0x608] sm:$0xf]
    %v2772 = vld [vmem:[#allocation2 + $0x60c] sm:$0xf]
    %v2773 = vld [vmem:[#allocation2 + $0x610] sm:$0xf]
    %v2774 = vld [vmem:[#allocation2 + $0x614] sm:$0xf]
    %v2775 = vld [vmem:[#allocation2 + $0x618] sm:$0xf]
    %v2776 = vld [vmem:[#allocation2 + $0x61c] sm:$0xf]
    %v2777 = vld [vmem:[#allocation2 + $0x620] sm:$0xf]
    %v2778 = vld [vmem:[#allocation2 + $0x624] sm:$0xf]
    %v2779 = vld [vmem:[#allocation2 + $0x628] sm:$0xf]
    %v2780 = vld [vmem:[#allocation2 + $0x62c] sm:$0xf]
    %v2781 = vld [vmem:[#allocation2 + $0x630] sm:$0xf]
    %v2782 = vld [vmem:[#allocation2 + $0x634] sm:$0xf]
    %v2783 = vld [vmem:[#allocation2 + $0x638] sm:$0xf]
    %v2784 = vld [vmem:[#allocation2 + $0x63c] sm:$0xf]
    %v2785 = vld [vmem:[#allocation2 + $0x640] sm:$0xf]
    %v2786 = vld [vmem:[#allocation2 + $0x644] sm:$0xf]
    %v2787 = vld [vmem:[#allocation2 + $0x648] sm:$0xf]
    %v2788 = vld [vmem:[#allocation2 + $0x64c] sm:$0xf]
    %v2789 = vld [vmem:[#allocation2 + $0x650] sm:$0xf]
    %v2790 = vld [vmem:[#allocation2 + $0x654] sm:$0xf]
    %v2791 = vld [vmem:[#allocation2 + $0x658] sm:$0xf]
    %v2792 = vld [vmem:[#allocation2 + $0x65c] sm:$0xf]
    %v2793 = vld [vmem:[#allocation2 + $0x660] sm:$0xf]
    %v2794 = vld [vmem:[#allocation2 + $0x664] sm:$0xf]
    %v2795 = vld [vmem:[#allocation2 + $0x668] sm:$0xf]
    %v2796 = vld [vmem:[#allocation2 + $0x66c] sm:$0xf]
    %v2797 = vld [vmem:[#allocation2 + $0x670] sm:$0x1]
    %v2798 = vunpack.c.l.bf16 %v2797
    %v2799 = vlaneseq
    %v2800 = vshrl.u32 %v2799, 7
    %v2801 = vsub.s32 0, %v2800
    %v2802 = vrot.slane %v2798, %v2801
    %v2851 = vunpack.c.l.b16 %v2749
    %v2852 = vunpack.c.l.b16 %v2750
    %v2853 = vunpack.c.l.b16 %v2751
    %v2854 = vunpack.c.l.b16 %v2752
    %v2855 = vunpack.c.l.b16 %v2753
    %v2856 = vunpack.c.l.b16 %v2754
    %v2857 = vunpack.c.l.b16 %v2755
    %v2858 = vunpack.c.l.b16 %v2756
    %v2859 = vunpack.c.l.b16 %v2757
    %v2860 = vunpack.c.l.b16 %v2758
    %v2861 = vunpack.c.l.b16 %v2759
    %v2862 = vunpack.c.l.b16 %v2760
    %v2863 = vunpack.c.l.b16 %v2761
    %v2864 = vunpack.c.l.b16 %v2762
    %v2865 = vunpack.c.l.b16 %v2763
    %v2866 = vunpack.c.l.b16 %v2764
    %v2867 = vunpack.c.l.b16 %v2765
    %v2868 = vunpack.c.l.b16 %v2766
    %v2869 = vunpack.c.l.b16 %v2767
    %v2870 = vunpack.c.l.b16 %v2768
    %v2871 = vunpack.c.l.b16 %v2769
    %v2872 = vunpack.c.l.b16 %v2770
    %v2873 = vunpack.c.l.b16 %v2771
    %v2874 = vunpack.c.l.b16 %v2772
    %v2875 = vunpack.c.l.b16 %v2773
    %v2876 = vunpack.c.l.b16 %v2774
    %v2877 = vunpack.c.l.b16 %v2775
    %v2878 = vunpack.c.l.b16 %v2776
    %v2879 = vunpack.c.l.b16 %v2777
    %v2880 = vunpack.c.l.b16 %v2778
    %v2881 = vunpack.c.l.b16 %v2779
    %v2882 = vunpack.c.l.b16 %v2780
    %v2883 = vunpack.c.l.b16 %v2781
    %v2884 = vunpack.c.l.b16 %v2782
    %v2885 = vunpack.c.l.b16 %v2783
    %v2886 = vunpack.c.l.b16 %v2784
    %v2887 = vunpack.c.l.b16 %v2785
    %v2888 = vunpack.c.l.b16 %v2786
    %v2889 = vunpack.c.l.b16 %v2787
    %v2890 = vunpack.c.l.b16 %v2788
    %v2891 = vunpack.c.l.b16 %v2789
    %v2892 = vunpack.c.l.b16 %v2790
    %v2893 = vunpack.c.l.b16 %v2791
    %v2894 = vunpack.c.l.b16 %v2792
    %v2895 = vunpack.c.l.b16 %v2793
    %v2896 = vunpack.c.l.b16 %v2794
    %v2897 = vunpack.c.l.b16 %v2795
    %v2898 = vunpack.c.l.b16 %v2796
    %v2899 = vpack.c.b16 %v2852, %v2851
    %v2900 = vpack.c.b16 %v2854, %v2853
    %v2901 = vpack.c.b16 %v2856, %v2855
    %v2902 = vpack.c.b16 %v2858, %v2857
    %v2903 = vpack.c.b16 %v2860, %v2859
    %v2904 = vpack.c.b16 %v2862, %v2861
    %v2905 = vpack.c.b16 %v2864, %v2863
    %v2906 = vpack.c.b16 %v2866, %v2865
    %v2907 = vpack.c.b16 %v2868, %v2867
    %v2908 = vpack.c.b16 %v2870, %v2869
    %v2909 = vpack.c.b16 %v2872, %v2871
    %v2910 = vpack.c.b16 %v2874, %v2873
    %v2911 = vpack.c.b16 %v2876, %v2875
    %v2912 = vpack.c.b16 %v2878, %v2877
    %v2913 = vpack.c.b16 %v2880, %v2879
    %v2914 = vpack.c.b16 %v2882, %v2881
    %v2915 = vpack.c.b16 %v2884, %v2883
    %v2916 = vpack.c.b16 %v2886, %v2885
    %v2917 = vpack.c.b16 %v2888, %v2887
    %v2918 = vpack.c.b16 %v2890, %v2889
    %v2919 = vpack.c.b16 %v2892, %v2891
    %v2920 = vpack.c.b16 %v2894, %v2893
    %v2921 = vpack.c.b16 %v2896, %v2895
    %v2922 = vpack.c.b16 %v2898, %v2897
    %2947 = vmatprep.subr.bf16.mxu0 0
    %2948 = vmatpush1.bf16.msra.mxu0 %v2899
    %2949 = vmatprep.subr.bf16.mxu0 0
    %2950 = vmatpush1.bf16.msra.mxu0 %v2900
    %2951 = vmatprep.subr.bf16.mxu0 0
    %2952 = vmatpush1.bf16.msra.mxu0 %v2901
    %2953 = vmatprep.subr.bf16.mxu0 0
    %2954 = vmatpush1.bf16.msra.mxu0 %v2902
    %2955 = vmatprep.subr.bf16.mxu0 0
    %2956 = vmatpush1.bf16.msra.mxu0 %v2903
    %2957 = vmatprep.subr.bf16.mxu0 0
    %2958 = vmatpush1.bf16.msra.mxu0 %v2904
    %2959 = vmatprep.subr.bf16.mxu0 0
    %2960 = vmatpush1.bf16.msra.mxu0 %v2905
    %2961 = vmatprep.subr.bf16.mxu0 0
    %2962 = vmatpush1.bf16.msra.mxu0 %v2906
    %2963 = vmatprep.subr.bf16.mxu0 0
    %2964 = vmatpush1.bf16.msra.mxu0 %v2907
    %2965 = vmatprep.subr.bf16.mxu0 0
    %2966 = vmatpush1.bf16.msra.mxu0 %v2908
    %2967 = vmatprep.subr.bf16.mxu0 0
    %2968 = vmatpush1.bf16.msra.mxu0 %v2909
    %2969 = vmatprep.subr.bf16.mxu0 0
    %2970 = vmatpush1.bf16.msra.mxu0 %v2910
    %2971 = vmatprep.subr.bf16.mxu0 0
    %2972 = vmatpush1.bf16.msra.mxu0 %v2911
    %2973 = vmatprep.subr.bf16.mxu0 0
    %2974 = vmatpush1.bf16.msra.mxu0 %v2912
    %2975 = vmatprep.subr.bf16.mxu0 0
    %2976 = vmatpush1.bf16.msra.mxu0 %v2913
    %2977 = vmatprep.subr.bf16.mxu0 0
    %2978 = vmatpush1.bf16.msra.mxu0 %v2914
    %2979 = vmatprep.mubr.bf16.mxu0 %v2683
    %2980 = vmatmul.mubr.bf16.gmra.mrb[0].mxu0 %v2718
    %v2981 = vpop.f32.mrb[0].mxu0
    %v2982 = vadd.f32 %v2802, %v2981
    %v2983 = vpop.f32.mrb[0].mxu0
    %v2984 = vpop.f32.mrb[0].mxu0
    %v2985 = vadd.f32 %v2802, %v2984
    %v2986 = vpop.f32.mrb[0].mxu0
    %2987 = vmatprep.mubr.bf16.mxu0 %v2684
    %2988 = vmatmul.mubr.bf16.gmra.mrb[0].mxu0 %v2719
    %v2989 = vpop.f32.mrb[0].mxu0
    %v2990 = vadd.f32 %v2802, %v2989
    %v2991 = vpop.f32.mrb[0].mxu0
    %v2992 = vpop.f32.mrb[0].mxu0
    %v2993 = vadd.f32 %v2802, %v2992
    %v2994 = vpop.f32.mrb[0].mxu0
    %2995 = vdwg.mxu0
    %2996 = vmatprep.subr.bf16.mxu0 0
    %2997 = vmatpush1.bf16.msra.mxu0 %v2915
    %2998 = vmatprep.subr.bf16.mxu0 0
    %2999 = vmatpush1.bf16.msra.mxu0 %v2916
    %3000 = vmatprep.subr.bf16.mxu0 0
    %3001 = vmatpush1.bf16.msra.mxu0 %v2917
    %3002 = vmatprep.subr.bf16.mxu0 0
    %3003 = vmatpush1.bf16.msra.mxu0 %v2918
    %3004 = vmatprep.subr.bf16.mxu0 0
    %3005 = vmatpush1.bf16.msra.mxu0 %v2919
    %3006 = vmatprep.subr.bf16.mxu0 0
    %3007 = vmatpush1.bf16.msra.mxu0 %v2920
    %3008 = vmatprep.subr.bf16.mxu0 0
    %3009 = vmatpush1.bf16.msra.mxu0 %v2921
    %3010 = vmatprep.subr.bf16.mxu0 0
    %3011 = vmatpush1.bf16.msra.mxu0 %v2922
    %3012 = vmatprep.subr.bf16.mxu0 0
    %3013 = vmatpush1.bf16.msra.mxu0 0
    %3014 = vmatprep.subr.bf16.mxu0 0
    %3015 = vmatpush1.bf16.msra.mxu0 0
    %3016 = vmatprep.subr.bf16.mxu0 0
    %3017 = vmatpush1.bf16.msra.mxu0 0
    %3018 = vmatprep.subr.bf16.mxu0 0
    %3019 = vmatpush1.bf16.msra.mxu0 0
    %3020 = vmatprep.subr.bf16.mxu0 0
    %3021 = vmatpush1.bf16.msra.mxu0 0
    %3022 = vmatprep.subr.bf16.mxu0 0
    %3023 = vmatpush1.bf16.msra.mxu0 0
    %3024 = vmatprep.subr.bf16.mxu0 0
    %3025 = vmatpush1.bf16.msra.mxu0 0
    %3026 = vmatprep.subr.bf16.mxu0 0
    %3027 = vmatpush1.bf16.msra.mxu0 0
    %3028 = vmatprep.mubr.bf16.mxu0 0
    %3029 = vmatmul.mubr.bf16.gmra.mrb[0].mxu0 %v2747
    %v3030 = vpop.f32.mrb[0].mxu0
    %v3031 = vadd.f32 %v2982, %v3030
    %v3032 = vpop.f32.mrb[0].mxu0
    %v3033 = vpop.f32.mrb[0].mxu0
    %v3034 = vadd.f32 %v2985, %v3033
    %v3035 = vpop.f32.mrb[0].mxu0
    %3036 = vmatprep.mubr.bf16.mxu0 0
    %3037 = vmatmul.mubr.bf16.gmra.mrb[0].mxu0 %v2748
    %v3038 = vpop.f32.mrb[0].mxu0
    %v3039 = vadd.f32 %v2990, %v3038
    %v3040 = vpop.f32.mrb[0].mxu0
    %v3041 = vpop.f32.mrb[0].mxu0
    %v3042 = vadd.f32 %v2993, %v3041
    %v3043 = vpop.f32.mrb[0].mxu0
    %3044 = vdwg.mxu0
    %vm3045 = vcmp.gt.f32.partialorder %v3031, 0.0
    %vm3046 = vcmp.gt.f32.partialorder %v3034, 0.0
    %vm3047 = vcmp.gt.f32.partialorder %v3039, 0.0
    %vm3048 = vcmp.gt.f32.partialorder %v3042, 0.0
    %v3049 = vmul.f32 %v3031, 0.2
    %v3050 = vmul.f32 %v3034, 0.2
    %v3051 = vmul.f32 %v3039, 0.2
    %v3052 = vmul.f32 %v3042, 0.2
    %v3053 = vsel %vm3045, %v3031, %v3049
    %v3054 = vsel %vm3046, %v3034, %v3050
    %v3055 = vsel %vm3047, %v3039, %v3051
    %v3056 = vsel %vm3048, %v3042, %v3052
    %v3057 = vpack.c.bf16 %v3054, %v3053
    %v3058 = vpack.c.bf16 %v3056, %v3055
    %v3061 = vrot.slane %v3057, 4
    %v3062 = vrot.slane %v3058, 4
    %v3063 = vsel %vm2163, %v3061, %v3062
    %v3066 = vsel %vm2168, %v3062, 0
    %v3068 = vld [vmem:[#allocation2 + $0x678] sm:$0xf]
    %v3069 = vld [vmem:[#allocation2 + $0x67c] sm:$0xf]
    %v3070 = vld [vmem:[#allocation2 + $0x680] sm:$0xf]
    %v3071 = vld [vmem:[#allocation2 + $0x684] sm:$0xf]
    %v3072 = vld [vmem:[#allocation2 + $0x688] sm:$0xf]
    %v3073 = vld [vmem:[#allocation2 + $0x68c] sm:$0xf]
    %v3074 = vld [vmem:[#allocation2 + $0x690] sm:$0xf]
    %v3075 = vld [vmem:[#allocation2 + $0x694] sm:$0xf]
    %v3076 = vld [vmem:[#allocation2 + $0x698] sm:$0xf]
    %v3077 = vld [vmem:[#allocation2 + $0x69c] sm:$0xf]
    %v3078 = vld [vmem:[#allocation2 + $0x6a0] sm:$0xf]
    %v3079 = vld [vmem:[#allocation2 + $0x6a4] sm:$0xf]
    %v3080 = vld [vmem:[#allocation2 + $0x6a8] sm:$0xf]
    %v3081 = vld [vmem:[#allocation2 + $0x6ac] sm:$0xf]
    %v3082 = vld [vmem:[#allocation2 + $0x6b0] sm:$0xf]
    %v3083 = vld [vmem:[#allocation2 + $0x6b4] sm:$0xf]
    %v3084 = vld [vmem:[#allocation2 + $0x6b8] sm:$0xf]
    %v3085 = vld [vmem:[#allocation2 + $0x6bc] sm:$0xf]
    %v3086 = vld [vmem:[#allocation2 + $0x6c0] sm:$0xf]
    %v3087 = vld [vmem:[#allocation2 + $0x6c4] sm:$0xf]
    %v3088 = vld [vmem:[#allocation2 + $0x6c8] sm:$0xf]
    %v3089 = vld [vmem:[#allocation2 + $0x6cc] sm:$0xf]
    %v3090 = vld [vmem:[#allocation2 + $0x6d0] sm:$0xf]
    %v3091 = vld [vmem:[#allocation2 + $0x6d4] sm:$0xf]
    %v3092 = vld [vmem:[#allocation2 + $0x6d8] sm:$0xf]
    %v3093 = vld [vmem:[#allocation2 + $0x6dc] sm:$0xf]
    %v3094 = vld [vmem:[#allocation2 + $0x6e0] sm:$0xf]
    %v3095 = vld [vmem:[#allocation2 + $0x6e4] sm:$0xf]
    %v3096 = vld [vmem:[#allocation2 + $0x6e8] sm:$0xf]
    %v3097 = vld [vmem:[#allocation2 + $0x6ec] sm:$0xf]
    %v3098 = vld [vmem:[#allocation2 + $0x6f0] sm:$0xf]
    %v3099 = vld [vmem:[#allocation2 + $0x6f4] sm:$0xf]
    %v3100 = vld [vmem:[#allocation2 + $0x6f8] sm:$0xf]
    %v3101 = vld [vmem:[#allocation2 + $0x6fc] sm:$0xf]
    %v3102 = vld [vmem:[#allocation2 + $0x700] sm:$0xf]
    %v3103 = vld [vmem:[#allocation2 + $0x704] sm:$0xf]
    %v3104 = vld [vmem:[#allocation2 + $0x708] sm:$0xf]
    %v3105 = vld [vmem:[#allocation2 + $0x70c] sm:$0xf]
    %v3106 = vld [vmem:[#allocation2 + $0x710] sm:$0xf]
    %v3107 = vld [vmem:[#allocation2 + $0x714] sm:$0xf]
    %v3108 = vld [vmem:[#allocation2 + $0x718] sm:$0xf]
    %v3109 = vld [vmem:[#allocation2 + $0x71c] sm:$0xf]
    %v3110 = vld [vmem:[#allocation2 + $0x720] sm:$0xf]
    %v3111 = vld [vmem:[#allocation2 + $0x724] sm:$0xf]
    %v3112 = vld [vmem:[#allocation2 + $0x728] sm:$0xf]
    %v3113 = vld [vmem:[#allocation2 + $0x72c] sm:$0xf]
    %v3114 = vld [vmem:[#allocation2 + $0x730] sm:$0xf]
    %v3115 = vld [vmem:[#allocation2 + $0x734] sm:$0xf]
    %v3116 = vld [vmem:[#allocation2 + $0x738] sm:$0x1]
    %v3117 = vunpack.c.l.bf16 %v3116
    %v3118 = vlaneseq
    %v3119 = vshrl.u32 %v3118, 7
    %v3120 = vsub.s32 0, %v3119
    %v3121 = vrot.slane %v3117, %v3120
    %v3170 = vunpack.c.l.b16 %v3068
    %v3171 = vunpack.c.l.b16 %v3069
    %v3172 = vunpack.c.l.b16 %v3070
    %v3173 = vunpack.c.l.b16 %v3071
    %v3174 = vunpack.c.l.b16 %v3072
    %v3175 = vunpack.c.l.b16 %v3073
    %v3176 = vunpack.c.l.b16 %v3074
    %v3177 = vunpack.c.l.b16 %v3075
    %v3178 = vunpack.c.l.b16 %v3076
    %v3179 = vunpack.c.l.b16 %v3077
    %v3180 = vunpack.c.l.b16 %v3078
    %v3181 = vunpack.c.l.b16 %v3079
    %v3182 = vunpack.c.l.b16 %v3080
    %v3183 = vunpack.c.l.b16 %v3081
    %v3184 = vunpack.c.l.b16 %v3082
    %v3185 = vunpack.c.l.b16 %v3083
    %v3186 = vunpack.c.l.b16 %v3084
    %v3187 = vunpack.c.l.b16 %v3085
    %v3188 = vunpack.c.l.b16 %v3086
    %v3189 = vunpack.c.l.b16 %v3087
    %v3190 = vunpack.c.l.b16 %v3088
    %v3191 = vunpack.c.l.b16 %v3089
    %v3192 = vunpack.c.l.b16 %v3090
    %v3193 = vunpack.c.l.b16 %v3091
    %v3194 = vunpack.c.l.b16 %v3092
    %v3195 = vunpack.c.l.b16 %v3093
    %v3196 = vunpack.c.l.b16 %v3094
    %v3197 = vunpack.c.l.b16 %v3095
    %v3198 = vunpack.c.l.b16 %v3096
    %v3199 = vunpack.c.l.b16 %v3097
    %v3200 = vunpack.c.l.b16 %v3098
    %v3201 = vunpack.c.l.b16 %v3099
    %v3202 = vunpack.c.l.b16 %v3100
    %v3203 = vunpack.c.l.b16 %v3101
    %v3204 = vunpack.c.l.b16 %v3102
    %v3205 = vunpack.c.l.b16 %v3103
    %v3206 = vunpack.c.l.b16 %v3104
    %v3207 = vunpack.c.l.b16 %v3105
    %v3208 = vunpack.c.l.b16 %v3106
    %v3209 = vunpack.c.l.b16 %v3107
    %v3210 = vunpack.c.l.b16 %v3108
    %v3211 = vunpack.c.l.b16 %v3109
    %v3212 = vunpack.c.l.b16 %v3110
    %v3213 = vunpack.c.l.b16 %v3111
    %v3214 = vunpack.c.l.b16 %v3112
    %v3215 = vunpack.c.l.b16 %v3113
    %v3216 = vunpack.c.l.b16 %v3114
    %v3217 = vunpack.c.l.b16 %v3115
    %v3218 = vpack.c.b16 %v3171, %v3170
    %v3219 = vpack.c.b16 %v3173, %v3172
    %v3220 = vpack.c.b16 %v3175, %v3174
    %v3221 = vpack.c.b16 %v3177, %v3176
    %v3222 = vpack.c.b16 %v3179, %v3178
    %v3223 = vpack.c.b16 %v3181, %v3180
    %v3224 = vpack.c.b16 %v3183, %v3182
    %v3225 = vpack.c.b16 %v3185, %v3184
    %v3226 = vpack.c.b16 %v3187, %v3186
    %v3227 = vpack.c.b16 %v3189, %v3188
    %v3228 = vpack.c.b16 %v3191, %v3190
    %v3229 = vpack.c.b16 %v3193, %v3192
    %v3230 = vpack.c.b16 %v3195, %v3194
    %v3231 = vpack.c.b16 %v3197, %v3196
    %v3232 = vpack.c.b16 %v3199, %v3198
    %v3233 = vpack.c.b16 %v3201, %v3200
    %v3234 = vpack.c.b16 %v3203, %v3202
    %v3235 = vpack.c.b16 %v3205, %v3204
    %v3236 = vpack.c.b16 %v3207, %v3206
    %v3237 = vpack.c.b16 %v3209, %v3208
    %v3238 = vpack.c.b16 %v3211, %v3210
    %v3239 = vpack.c.b16 %v3213, %v3212
    %v3240 = vpack.c.b16 %v3215, %v3214
    %v3241 = vpack.c.b16 %v3217, %v3216
    %3266 = vmatprep.subr.bf16.mxu0 0
    %3267 = vmatpush1.bf16.msra.mxu0 %v3218
    %3268 = vmatprep.subr.bf16.mxu0 0
    %3269 = vmatpush1.bf16.msra.mxu0 %v3219
    %3270 = vmatprep.subr.bf16.mxu0 0
    %3271 = vmatpush1.bf16.msra.mxu0 %v3220
    %3272 = vmatprep.subr.bf16.mxu0 0
    %3273 = vmatpush1.bf16.msra.mxu0 %v3221
    %3274 = vmatprep.subr.bf16.mxu0 0
    %3275 = vmatpush1.bf16.msra.mxu0 %v3222
    %3276 = vmatprep.subr.bf16.mxu0 0
    %3277 = vmatpush1.bf16.msra.mxu0 %v3223
    %3278 = vmatprep.subr.bf16.mxu0 0
    %3279 = vmatpush1.bf16.msra.mxu0 %v3224
    %3280 = vmatprep.subr.bf16.mxu0 0
    %3281 = vmatpush1.bf16.msra.mxu0 %v3225
    %3282 = vmatprep.subr.bf16.mxu0 0
    %3283 = vmatpush1.bf16.msra.mxu0 %v3226
    %3284 = vmatprep.subr.bf16.mxu0 0
    %3285 = vmatpush1.bf16.msra.mxu0 %v3227
    %3286 = vmatprep.subr.bf16.mxu0 0
    %3287 = vmatpush1.bf16.msra.mxu0 %v3228
    %3288 = vmatprep.subr.bf16.mxu0 0
    %3289 = vmatpush1.bf16.msra.mxu0 %v3229
    %3290 = vmatprep.subr.bf16.mxu0 0
    %3291 = vmatpush1.bf16.msra.mxu0 %v3230
    %3292 = vmatprep.subr.bf16.mxu0 0
    %3293 = vmatpush1.bf16.msra.mxu0 %v3231
    %3294 = vmatprep.subr.bf16.mxu0 0
    %3295 = vmatpush1.bf16.msra.mxu0 %v3232
    %3296 = vmatprep.subr.bf16.mxu0 0
    %3297 = vmatpush1.bf16.msra.mxu0 %v3233
    %3298 = vmatprep.mubr.bf16.mxu0 %v3063
    %3299 = vmatmul.mubr.bf16.gmra.mrb[0].mxu0 %v3057
    %v3300 = vpop.f32.mrb[0].mxu0
    %v3301 = vadd.f32 %v3121, %v3300
    %v3302 = vpop.f32.mrb[0].mxu0
    %v3303 = vpop.f32.mrb[0].mxu0
    %v3304 = vadd.f32 %v3121, %v3303
    %v3305 = vpop.f32.mrb[0].mxu0
    %3306 = vmatprep.mubr.bf16.mxu0 %v3066
    %3307 = vmatmul.mubr.bf16.gmra.mrb[0].mxu0 %v3058
    %v3308 = vpop.f32.mrb[0].mxu0
    %v3309 = vadd.f32 %v3121, %v3308
    %v3310 = vpop.f32.mrb[0].mxu0
    %v3311 = vpop.f32.mrb[0].mxu0
    %v3312 = vadd.f32 %v3121, %v3311
    %v3313 = vpop.f32.mrb[0].mxu0
    %3314 = vdwg.mxu0
    %3315 = vmatprep.subr.bf16.mxu0 0
    %3316 = vmatpush1.bf16.msra.mxu0 %v3234
    %3317 = vmatprep.subr.bf16.mxu0 0
    %3318 = vmatpush1.bf16.msra.mxu0 %v3235
    %3319 = vmatprep.subr.bf16.mxu0 0
    %3320 = vmatpush1.bf16.msra.mxu0 %v3236
    %3321 = vmatprep.subr.bf16.mxu0 0
    %3322 = vmatpush1.bf16.msra.mxu0 %v3237
    %3323 = vmatprep.subr.bf16.mxu0 0
    %3324 = vmatpush1.bf16.msra.mxu0 %v3238
    %3325 = vmatprep.subr.bf16.mxu0 0
    %3326 = vmatpush1.bf16.msra.mxu0 %v3239
    %3327 = vmatprep.subr.bf16.mxu0 0
    %3328 = vmatpush1.bf16.msra.mxu0 %v3240
    %3329 = vmatprep.subr.bf16.mxu0 0
    %3330 = vmatpush1.bf16.msra.mxu0 %v3241
    %3331 = vmatprep.subr.bf16.mxu0 0
    %3332 = vmatpush1.bf16.msra.mxu0 0
    %3333 = vmatprep.subr.bf16.mxu0 0
    %3334 = vmatpush1.bf16.msra.mxu0 0
    %3335 = vmatprep.subr.bf16.mxu0 0
    %3336 = vmatpush1.bf16.msra.mxu0 0
    %3337 = vmatprep.subr.bf16.mxu0 0
    %3338 = vmatpush1.bf16.msra.mxu0 0
    %3339 = vmatprep.subr.bf16.mxu0 0
    %3340 = vmatpush1.bf16.msra.mxu0 0
    %3341 = vmatprep.subr.bf16.mxu0 0
    %3342 = vmatpush1.bf16.msra.mxu0 0
    %3343 = vmatprep.subr.bf16.mxu0 0
    %3344 = vmatpush1.bf16.msra.mxu0 0
    %3345 = vmatprep.subr.bf16.mxu0 0
    %3346 = vmatpush1.bf16.msra.mxu0 0
    %3347 = vmatprep.mubr.bf16.mxu0 0
    %3348 = vmatmul.mubr.bf16.gmra.mrb[0].mxu0 %v2683
    %v3349 = vpop.f32.mrb[0].mxu0
    %v3350 = vadd.f32 %v3301, %v3349
    %v3351 = vpop.f32.mrb[0].mxu0
    %v3352 = vpop.f32.mrb[0].mxu0
    %v3353 = vadd.f32 %v3304, %v3352
    %v3354 = vpop.f32.mrb[0].mxu0
    %3355 = vmatprep.mubr.bf16.mxu0 0
    %3356 = vmatmul.mubr.bf16.gmra.mrb[0].mxu0 %v2684
    %v3357 = vpop.f32.mrb[0].mxu0
    %v3358 = vadd.f32 %v3309, %v3357
    %v3359 = vpop.f32.mrb[0].mxu0
    %v3360 = vpop.f32.mrb[0].mxu0
    %v3361 = vadd.f32 %v3312, %v3360
    %v3362 = vpop.f32.mrb[0].mxu0
    %3363 = vdwg.mxu0
    %vm3364 = vcmp.gt.f32.partialorder %v3350, 0.0
    %vm3365 = vcmp.gt.f32.partialorder %v3353, 0.0
    %vm3366 = vcmp.gt.f32.partialorder %v3358, 0.0
    %vm3367 = vcmp.gt.f32.partialorder %v3361, 0.0
    %v3368 = vmul.f32 %v3350, 0.2
    %v3369 = vmul.f32 %v3353, 0.2
    %v3370 = vmul.f32 %v3358, 0.2
    %v3371 = vmul.f32 %v3361, 0.2
    %v3372 = vsel %vm3364, %v3350, %v3368
    %v3373 = vsel %vm3365, %v3353, %v3369
    %v3374 = vsel %vm3366, %v3358, %v3370
    %v3375 = vsel %vm3367, %v3361, %v3371
    %v3376 = vpack.c.bf16 %v3373, %v3372
    %v3377 = vpack.c.bf16 %v3375, %v3374
    %v3378 = vld [vmem:[#allocation2 + $0x740] sm:$0xf]
    %vm3379 = vcmask 261120
    %v3381 = vsel %vm3379, %v3378, 0
    %3383 = vmatprep.subr.bf16.mxu0 0
    %3384 = vmatpush1.bf16.msra.mxu0 %v3376
    %3385 = vmatprep.subr.bf16.mxu0 0
    %3386 = vmatpush1.bf16.msra.mxu0 %v3377
    %3387 = vmatprep.subr.bf16.mxu0 0
    %3388 = vmatpush1.bf16.msra.mxu0 0
    %3389 = vmatprep.subr.bf16.mxu0 0
    %3390 = vmatpush1.bf16.msra.mxu0 0
    %3391 = vmatprep.subr.bf16.mxu0 0
    %3392 = vmatpush1.bf16.msra.mxu0 0
    %3393 = vmatprep.subr.bf16.mxu0 0
    %3394 = vmatpush1.bf16.msra.mxu0 0
    %3395 = vmatprep.subr.bf16.mxu0 0
    %3396 = vmatpush1.bf16.msra.mxu0 0
    %3397 = vmatprep.subr.bf16.mxu0 0
    %3398 = vmatpush1.bf16.msra.mxu0 0
    %3399 = vmatprep.subr.bf16.mxu0 0
    %3400 = vmatpush1.bf16.msra.mxu0 0
    %3401 = vmatprep.subr.bf16.mxu0 0
    %3402 = vmatpush1.bf16.msra.mxu0 0
    %3403 = vmatprep.subr.bf16.mxu0 0
    %3404 = vmatpush1.bf16.msra.mxu0 0
    %3405 = vmatprep.subr.bf16.mxu0 0
    %3406 = vmatpush1.bf16.msra.mxu0 0
    %3407 = vmatprep.subr.bf16.mxu0 0
    %3408 = vmatpush1.bf16.msra.mxu0 0
    %3409 = vmatprep.subr.bf16.mxu0 0
    %3410 = vmatpush1.bf16.msra.mxu0 0
    %3411 = vmatprep.subr.bf16.mxu0 0
    %3412 = vmatpush1.bf16.msra.mxu0 0
    %3413 = vmatprep.subr.bf16.mxu0 0
    %3414 = vmatpush1.bf16.msra.mxu0 0
    %3415 = vmatprep.mubr.bf16.mxu0 0
    %3416 = vmatmul.mubr.bf16.gmra.mrb[0].mxu0 %v3381
    %v3417 = vpop.f32.mrb[0].mxu0
    %v3418 = vadd.f32 0.0, %v3417
    %v3419 = vpop.f32.mrb[0].mxu0
    %v3420 = vpop.f32.mrb[0].mxu0
    %v3421 = vpop.f32.mrb[0].mxu0
    %3422 = vdwg.mxu0
    %v3423 = vpack.c.bf16 %v3418, %v3418
    %v3424 = vld [vmem:[#allocation2 + $0x748] sm:$0xf]
    %v3425 = vld [vmem:[#allocation2 + $0x74c] sm:$0xf]
    %v3426 = vld [vmem:[#allocation2 + $0x750] sm:$0xf]
    %v3427 = vld [vmem:[#allocation2 + $0x754] sm:$0xf]
    %v3428 = vld [vmem:[#allocation2 + $0x758] sm:$0xf]
    %v3429 = vld [vmem:[#allocation2 + $0x75c] sm:$0xf]
    %v3430 = vld [vmem:[#allocation2 + $0x760] sm:$0xf]
    %v3431 = vld [vmem:[#allocation2 + $0x764] sm:$0xf]
    %v3432 = vld [vmem:[#allocation2 + $0x768] sm:$0xf]
    %v3433 = vld [vmem:[#allocation2 + $0x76c] sm:$0xf]
    %v3434 = vld [vmem:[#allocation2 + $0x770] sm:$0xf]
    %v3435 = vld [vmem:[#allocation2 + $0x774] sm:$0xf]
    %v3436 = vld [vmem:[#allocation2 + $0x778] sm:$0xf]
    %v3437 = vld [vmem:[#allocation2 + $0x77c] sm:$0xf]
    %v3438 = vld [vmem:[#allocation2 + $0x780] sm:$0xf]
    %v3439 = vld [vmem:[#allocation2 + $0x784] sm:$0xf]
    %v3440 = vld [vmem:[#allocation2 + $0x788] sm:$0x1]
    %v3441 = vunpack.c.l.bf16 %v3440
    %v3442 = vlaneseq
    %v3443 = vshrl.u32 %v3442, 7
    %v3444 = vsub.s32 0, %v3443
    %v3445 = vrot.slane %v3441, %v3444
    %v3462 = vunpack.c.l.b16 %v3424
    %v3463 = vunpack.c.l.b16 %v3425
    %v3464 = vunpack.c.l.b16 %v3426
    %v3465 = vunpack.c.l.b16 %v3427
    %v3466 = vunpack.c.l.b16 %v3428
    %v3467 = vunpack.c.l.b16 %v3429
    %v3468 = vunpack.c.l.b16 %v3430
    %v3469 = vunpack.c.l.b16 %v3431
    %v3470 = vunpack.c.l.b16 %v3432
    %v3471 = vunpack.c.l.b16 %v3433
    %v3472 = vunpack.c.l.b16 %v3434
    %v3473 = vunpack.c.l.b16 %v3435
    %v3474 = vunpack.c.l.b16 %v3436
    %v3475 = vunpack.c.l.b16 %v3437
    %v3476 = vunpack.c.l.b16 %v3438
    %v3477 = vunpack.c.l.b16 %v3439
    %v3478 = vpack.c.b16 %v3463, %v3462
    %v3479 = vpack.c.b16 %v3465, %v3464
    %v3480 = vpack.c.b16 %v3467, %v3466
    %v3481 = vpack.c.b16 %v3469, %v3468
    %v3482 = vpack.c.b16 %v3471, %v3470
    %v3483 = vpack.c.b16 %v3473, %v3472
    %v3484 = vpack.c.b16 %v3475, %v3474
    %v3485 = vpack.c.b16 %v3477, %v3476
    %3494 = vmatprep.subr.bf16.mxu0 0
    %3495 = vmatpush1.bf16.msra.mxu0 %v3478
    %3496 = vmatprep.subr.bf16.mxu0 0
    %3497 = vmatpush1.bf16.msra.mxu0 %v3479
    %3498 = vmatprep.subr.bf16.mxu0 0
    %3499 = vmatpush1.bf16.msra.mxu0 %v3480
    %3500 = vmatprep.subr.bf16.mxu0 0
    %3501 = vmatpush1.bf16.msra.mxu0 %v3481
    %3502 = vmatprep.subr.bf16.mxu0 0
    %3503 = vmatpush1.bf16.msra.mxu0 %v3482
    %3504 = vmatprep.subr.bf16.mxu0 0
    %3505 = vmatpush1.bf16.msra.mxu0 %v3483
    %3506 = vmatprep.subr.bf16.mxu0 0
    %3507 = vmatpush1.bf16.msra.mxu0 %v3484
    %3508 = vmatprep.subr.bf16.mxu0 0
    %3509 = vmatpush1.bf16.msra.mxu0 %v3485
    %3510 = vmatprep.subr.bf16.mxu0 0
    %3511 = vmatpush1.bf16.msra.mxu0 0
    %3512 = vmatprep.subr.bf16.mxu0 0
    %3513 = vmatpush1.bf16.msra.mxu0 0
    %3514 = vmatprep.subr.bf16.mxu0 0
    %3515 = vmatpush1.bf16.msra.mxu0 0
    %3516 = vmatprep.subr.bf16.mxu0 0
    %3517 = vmatpush1.bf16.msra.mxu0 0
    %3518 = vmatprep.subr.bf16.mxu0 0
    %3519 = vmatpush1.bf16.msra.mxu0 0
    %3520 = vmatprep.subr.bf16.mxu0 0
    %3521 = vmatpush1.bf16.msra.mxu0 0
    %3522 = vmatprep.subr.bf16.mxu0 0
    %3523 = vmatpush1.bf16.msra.mxu0 0
    %3524 = vmatprep.subr.bf16.mxu0 0
    %3525 = vmatpush1.bf16.msra.mxu0 0
    %3526 = vmatprep.mubr.bf16.mxu0 0
    %3527 = vmatmul.mubr.bf16.gmra.mrb[0].mxu0 %v3423
    %v3528 = vpop.f32.mrb[0].mxu0
    %v3529 = vadd.f32 %v3445, %v3528
    %v3530 = vpop.f32.mrb[0].mxu0
    %v3531 = vpop.f32.mrb[0].mxu0
    %v3532 = vpop.f32.mrb[0].mxu0
    %3533 = vdwg.mxu0
    %vm3534 = vcmp.gt.f32.partialorder %v3529, 0.0
    %v3535 = vmul.f32 %v3529, 0.2
    %v3536 = vsel %vm3534, %v3529, %v3535
    %v3537 = vld [vmem:[#allocation2 + $0x790] sm:$0x1]
    %v3538 = vunpack.c.l.bf16 %v3537
    %v3539 = vld [vmem:[#allocation2 + $0x798] sm:$0x1]
    %v3540 = vunpack.c.l.bf16 %v3539
    %v3541 = vlaneseq
    %v3542 = vshrl.u32 %v3541, 7
    %v3543 = vsub.s32 0, %v3542
    %v3544 = vrot.slane %v3538, %v3543
    %v3545 = vmul.f32 %v3536, %v3544
    %3546 = vadd.xlane.f32.xlu0 %v3545
    %v3547 = vpop.xlane.xlu0 %3546
    %v3548 = vlaneseq
    %v3549 = vshrl.u32 %v3548, 7
    %v3550 = vsub.s32 0, %v3549
    %v3551 = vrot.slane %v3540, %v3550
    %v3552 = vadd.f32 %v3547, %v3551
    %3554 = vset.pattern.permute.xlu0 0
    %3555 = vperm.xlu0 %3554, %v3552
    %v3556 = vpop.permute.xlu0 %3555
    %3558 = vst [vmem:[%s2] sm:$0xff] %v3556
    // Predicated region
    $region14: #{_lambda_.1} parent=1 // pred_check
      _
    $region15: #{_lambda_.1} parent=1 // pred_check_branch
      %3560 = sbr.rel (0) target = $region17
    $region16: #{_lambda_.1} parent=1 // pred_region
      _
    $region17: #{_lambda_.1} parent=1 // pred_fallthru
      _
    // Predicated region
    $region18: #{_lambda_.1} parent=1 // pred_check
      _
    $region19: #{_lambda_.1} parent=1 // pred_check_branch
      %3562 = sbr.rel (0) target = $region21
    $region20: #{_lambda_.1} parent=1 // pred_region
      _
    $region21: #{_lambda_.1} parent=1 // pred_fallthru
      _
    %3563 = vsyncpa [#allocation3], 1

</llo_original>
